<compile_context>
chip_gen: v5e
topology: v5e:2x2
jax: 0.10.0
libtpu: 0.0.40
codegen_flags: <defaults>
</compile_context>

<pallas_src>
import functools
import math

import jax
import jax.numpy as jnp
from jax.experimental import pallas as pl
from jax.experimental.pallas import tpu as pltpu


def _round_up(a, b):
    return -(-a // b) * b


def _grad_mag_kernel(x_ref, o_ref, *, H, W):
    # x_ref / o_ref: (R, W) with R = B*H rows (B whole planes stacked along
    # the sublane axis).  Zero "conv padding" is realized by masking the
    # wrap-around rows/cols of the rolled operands at plane boundaries.
    R = o_ref.shape[0]
    x = x_ref[...].astype(jnp.float32)

    # Per-row / per-column edge masks (thin (R,1)/(1,W) iotas, broadcast later).
    row = jax.lax.broadcasted_iota(jnp.int32, (R, 1), 0)
    rin = jax.lax.rem(row, jnp.int32(H))            # row index inside its plane
    first_row = rin == 0
    last_row = rin == H - 1
    col = jax.lax.broadcasted_iota(jnp.int32, (1, W), 1)
    first_col = col == 0
    last_col = col == W - 1

    # +/-1 row shifts via XLU sublane rotates; wrap-around masked to zero.
    up = jnp.where(first_row, 0.0, pltpu.roll(x, 1, axis=0))       # x[i-1, j]
    down = jnp.where(last_row, 0.0, pltpu.roll(x, R - 1, axis=0))  # x[i+1, j]

    # Separable Sobel (cross-correlation, same signs as F.conv2d):
    #   kx = [1,2,1]^T (rows) x [1,0,-1] (cols)
    #   ky = [1,0,-1]^T (rows) x [1,2,1] (cols)
    v1 = up + 2.0 * x + down      # vertical smooth -> feeds gx
    v2 = up - down                # vertical diff   -> feeds gy

    def left(v):                  # v[i, j-1], zero at j == 0
        return jnp.where(first_col, 0.0, pltpu.roll(v, 1, axis=1))

    def right(v):                 # v[i, j+1], zero at j == W-1
        return jnp.where(last_col, 0.0, pltpu.roll(v, W - 1, axis=1))

    gx = left(v1) - right(v1)
    gy = left(v2) + 2.0 * v2 + right(v2)

    o_ref[...] = jnp.sqrt(gx * gx + gy * gy).astype(o_ref.dtype)


def gradient_loss_block(pred):
    """pred: (N, 3, H, W) float array. Returns (N, 3, H, W) gradient magnitude."""
    N, C, H, W = pred.shape
    assert C == 3
    NC = N * C
    x2 = pred.reshape(NC * H, W)          # metadata-only reshape, no copy
    itemsize = jnp.dtype(pred.dtype).itemsize

    # TODO(synk): kernel targets lane-dense planes (W a multiple of 128, e.g.
    # FSRNet's 128x128 faces); for narrow W add a lane-packed variant so output
    # stores are not masked partial vst.

    # --- layout-aware per-plane VMEM working-set estimate (bytes) ------------
    w_pad = _round_up(W, 128)
    h_pad = _round_up(H, 8)
    # 2x double-buffered input DMA + 2x output DMA (input dtype) plus ~10
    # materialized f32 whole-tile temporaries (rolls break in-vreg fusion).
    per_plane = 4 * h_pad * w_pad * itemsize + 10 * h_pad * w_pad * 4

    vmem_cap = 64 * 1024 * 1024           # v7x floor; v5e/v6e have 128 MiB
    num_cores = 1
    try:
        info = pltpu.get_tpu_info()
        vmem_cap = int(getattr(info, "vmem_capacity_bytes", vmem_cap))
        num_cores = int(getattr(info, "num_cores", 1) or 1)
    except Exception:
        pass
    budget = max(per_plane, int(0.40 * vmem_cap))
    vmem_limit = min(int(0.90 * vmem_cap), 96 * 1024 * 1024)

    # --- planes per grid step -------------------------------------------------
    B = int(max(1, min(NC, budget // per_plane)))
    # Only split a single full block when there really are >= 2 TensorCores.
    if num_cores >= 2 and B >= NC and NC >= 2:
        B = -(-NC // 2)
    # (8,128) rule: the sublane block dim (B*H) must be a multiple of 8 unless
    # the block spans the full row axis (B == NC).
    step = 8 // math.gcd(H, 8)
    if B < NC:
        B = max(step, (B // step) * step)
        B = min(B, NC)
    grid = pl.cdiv(NC, B)                 # masked partial tail block if needed
    rows_blk = B * H

    kernel = functools.partial(_grad_mag_kernel, H=H, W=W)
    out = pl.pallas_call(
        kernel,
        out_shape=jax.ShapeDtypeStruct((NC * H, W), pred.dtype),
        grid_spec=pltpu.PrefetchScalarGridSpec(
            num_scalar_prefetch=0,
            grid=(grid,),
            in_specs=[pl.BlockSpec((rows_blk, W), lambda i: (i, 0))],
            out_specs=pl.BlockSpec((rows_blk, W), lambda i: (i, 0)),
        ),
        compiler_params=pltpu.CompilerParams(
            dimension_semantics=("parallel",),
            vmem_limit_bytes=int(vmem_limit),
        ),
        cost_estimate=pl.CostEstimate(
            flops=20 * NC * H * W,
            transcendentals=NC * H * W,
            bytes_accessed=2 * NC * H * W * itemsize,
        ),
    )(x2)
    return out.reshape(N, C, H, W)


def _reference(pred):
    # Pure-JAX reference (depthwise Sobel + magnitude) for sanity check.
    kx = jnp.array([[1., 0., -1.], [2., 0., -2.], [1., 0., -1.]], jnp.float32)
    ky = jnp.array([[1., 2., 1.], [0., 0., 0.], [-1., -2., -1.]], jnp.float32)
    p = jnp.pad(pred.astype(jnp.float32), ((0, 0), (0, 0), (1, 1), (1, 1)))
    N, C, H, W = pred.shape
    gx = jnp.zeros((N, C, H, W), jnp.float32)
    gy = jnp.zeros((N, C, H, W), jnp.float32)
    for di in range(3):
        for dj in range(3):
            sl = p[:, :, di:di + H, dj:dj + W]
            gx = gx + kx[di, dj] * sl
            gy = gy + ky[di, dj] * sl
    return jnp.sqrt(gx * gx + gy * gy).astype(pred.dtype)


if __name__ == "__main__":
    key = jax.random.PRNGKey(0)
    # FSRNet operates on 128x128 face crops; W = 128 keeps the lane dim dense.
    x = jax.random.normal(key, (2, 3, 128, 128), dtype=jnp.float32)

    out = gradient_loss_block(x)
    jax.block_until_ready(out)

    ref = _reference(x)
    assert out.shape == x.shape
    assert jnp.allclose(out, ref, atol=1e-4, rtol=1e-4)
    print("KERNEL_OK")
</pallas_src>

<mosaic_0001>
module attributes {stable_mosaic.version = 11 : i64} {
  func.func @_grad_mag_kernel(%arg0: i32, %arg1: memref<768x128xf32, #tpu.memory_space<vmem>>, %arg2: memref<768x128xf32, #tpu.memory_space<vmem>>) attributes {dimension_semantics = [#tpu.dimension_semantics<parallel>], iteration_bounds = array<i64: 1>, scalar_prefetch = 0 : i64, scratch_operands = 0 : i64, tpu.core_type = #tpu.core_type<tc>, window_params = [{transform_indices = @transform_0, window_bounds = array<i64: 768, 128>}, {transform_indices = @transform_1, window_bounds = array<i64: 768, 128>}]} {
    %c0 = arith.constant 0 : index
    %c0_0 = arith.constant 0 : index
    %0 = vector.load %arg1[%c0, %c0_0] : memref<768x128xf32, #tpu.memory_space<vmem>>, vector<768x128xf32>
    %1 = tpu.iota {dimensions = array<i32: 0>} : vector<768x1xi32>
    %c128_i32 = arith.constant 128 : i32
    %2 = vector.broadcast %c128_i32 : i32 to vector<768x1xi32>
    %3 = arith.remsi %1, %2 : vector<768x1xi32>
    %c0_i32 = arith.constant 0 : i32
    %4 = vector.broadcast %c0_i32 : i32 to vector<768x1xi32>
    %5 = arith.cmpi eq, %3, %4 : vector<768x1xi32>
    %c127_i32 = arith.constant 127 : i32
    %6 = vector.broadcast %c127_i32 : i32 to vector<768x1xi32>
    %7 = arith.cmpi eq, %3, %6 : vector<768x1xi32>
    %8 = tpu.iota {dimensions = array<i32: 1>} : vector<1x128xi32>
    %c0_i32_1 = arith.constant 0 : i32
    %9 = vector.broadcast %c0_i32_1 : i32 to vector<1x128xi32>
    %10 = arith.cmpi eq, %8, %9 : vector<1x128xi32>
    %c127_i32_2 = arith.constant 127 : i32
    %11 = vector.broadcast %c127_i32_2 : i32 to vector<1x128xi32>
    %12 = arith.cmpi eq, %8, %11 : vector<1x128xi32>
    %c1_i32 = arith.constant 1 : i32
    %13 = tpu.dynamic_rotate %0 by %c1_i32 dim 0 : vector<768x128xf32>, i32 -> vector<768x128xf32>
    %cst = arith.constant 0.000000e+00 : f32
    %14 = vector.shape_cast %5 : vector<768x1xi1> to vector<768x1xi1>
    %15 = vector.broadcast %14 : vector<768x1xi1> to vector<768x128xi1>
    %16 = vector.broadcast %cst : f32 to vector<768x128xf32>
    %17 = arith.select %15, %16, %13 : vector<768x128xi1>, vector<768x128xf32>
    %c767_i32 = arith.constant 767 : i32
    %18 = tpu.dynamic_rotate %0 by %c767_i32 dim 0 : vector<768x128xf32>, i32 -> vector<768x128xf32>
    %cst_3 = arith.constant 0.000000e+00 : f32
    %19 = vector.shape_cast %7 : vector<768x1xi1> to vector<768x1xi1>
    %20 = vector.broadcast %19 : vector<768x1xi1> to vector<768x128xi1>
    %21 = vector.broadcast %cst_3 : f32 to vector<768x128xf32>
    %22 = arith.select %20, %21, %18 : vector<768x128xi1>, vector<768x128xf32>
    %cst_4 = arith.constant 2.000000e+00 : f32
    %23 = vector.broadcast %cst_4 : f32 to vector<768x128xf32>
    %24 = arith.mulf %23, %0 : vector<768x128xf32>
    %25 = arith.addf %17, %24 : vector<768x128xf32>
    %26 = arith.addf %25, %22 : vector<768x128xf32>
    %27 = arith.subf %17, %22 : vector<768x128xf32>
    %c1_i32_5 = arith.constant 1 : i32
    %28 = tpu.dynamic_rotate %26 by %c1_i32_5 dim 1 : vector<768x128xf32>, i32 -> vector<768x128xf32>
    %cst_6 = arith.constant 0.000000e+00 : f32
    %29 = vector.shape_cast %10 : vector<1x128xi1> to vector<1x128xi1>
    %30 = vector.broadcast %29 : vector<1x128xi1> to vector<768x128xi1>
    %31 = vector.broadcast %cst_6 : f32 to vector<768x128xf32>
    %32 = arith.select %30, %31, %28 : vector<768x128xi1>, vector<768x128xf32>
    %c127_i32_7 = arith.constant 127 : i32
    %33 = tpu.dynamic_rotate %26 by %c127_i32_7 dim 1 : vector<768x128xf32>, i32 -> vector<768x128xf32>
    %cst_8 = arith.constant 0.000000e+00 : f32
    %34 = vector.shape_cast %12 : vector<1x128xi1> to vector<1x128xi1>
    %35 = vector.broadcast %34 : vector<1x128xi1> to vector<768x128xi1>
    %36 = vector.broadcast %cst_8 : f32 to vector<768x128xf32>
    %37 = arith.select %35, %36, %33 : vector<768x128xi1>, vector<768x128xf32>
    %38 = arith.subf %32, %37 : vector<768x128xf32>
    %c1_i32_9 = arith.constant 1 : i32
    %39 = tpu.dynamic_rotate %27 by %c1_i32_9 dim 1 : vector<768x128xf32>, i32 -> vector<768x128xf32>
    %cst_10 = arith.constant 0.000000e+00 : f32
    %40 = vector.shape_cast %10 : vector<1x128xi1> to vector<1x128xi1>
    %41 = vector.broadcast %40 : vector<1x128xi1> to vector<768x128xi1>
    %42 = vector.broadcast %cst_10 : f32 to vector<768x128xf32>
    %43 = arith.select %41, %42, %39 : vector<768x128xi1>, vector<768x128xf32>
    %cst_11 = arith.constant 2.000000e+00 : f32
    %44 = vector.broadcast %cst_11 : f32 to vector<768x128xf32>
    %45 = arith.mulf %44, %27 : vector<768x128xf32>
    %46 = arith.addf %43, %45 : vector<768x128xf32>
    %c127_i32_12 = arith.constant 127 : i32
    %47 = tpu.dynamic_rotate %27 by %c127_i32_12 dim 1 : vector<768x128xf32>, i32 -> vector<768x128xf32>
    %cst_13 = arith.constant 0.000000e+00 : f32
    %48 = vector.shape_cast %12 : vector<1x128xi1> to vector<1x128xi1>
    %49 = vector.broadcast %48 : vector<1x128xi1> to vector<768x128xi1>
    %50 = vector.broadcast %cst_13 : f32 to vector<768x128xf32>
    %51 = arith.select %49, %50, %47 : vector<768x128xi1>, vector<768x128xf32>
    %52 = arith.addf %46, %51 : vector<768x128xf32>
    %53 = arith.mulf %38, %38 : vector<768x128xf32>
    %54 = arith.mulf %52, %52 : vector<768x128xf32>
    %55 = arith.addf %53, %54 : vector<768x128xf32>
    %56 = math.sqrt %55 : vector<768x128xf32>
    %c0_14 = arith.constant 0 : index
    %c0_15 = arith.constant 0 : index
    %57 = vector.load %arg2[%c0_14, %c0_15] : memref<768x128xf32, #tpu.memory_space<vmem>>, vector<768x128xf32>
    tpu.vector_store %arg2[%c0_14, %c0_15], %56 {strides = array<i32>} : memref<768x128xf32, #tpu.memory_space<vmem>>, vector<768x128xf32>,
    return
  }
  func.func @transform_0(%arg0: i32) -> (i32, i32) {
    %c0_i32 = arith.constant 0 : i32
    %c0_i32_0 = arith.constant 0 : i32
    return %arg0, %c0_i32 : i32, i32
  }
  func.func @transform_1(%arg0: i32) -> (i32, i32) {
    %c0_i32 = arith.constant 0 : i32
    %c0_i32_0 = arith.constant 0 : i32
    return %arg0, %c0_i32 : i32, i32
  }
}

</mosaic_0001>

<llo_original>
// kernel: tpu_custom_call.1
$region0: #{tpu_custom_call.1}
  #allocation0 [shape = 'u32[]', space=smem, size = 0x4, offset = 0x4, fixed_abs, tag = 'smem constant byte address 0x4 - core index']
  #allocation1 [shape = 'u32[72,128]{1,0:T(1,128)}', space=vmem, size = 0x9000, scoped, tag = 'internal scratch']
  %s0 = inlined_call_operand.hbm [shape: f32[768,128], index: 0, kind: input, shape index: {}]
  %s1 = inlined_call_operand.hbm [shape: f32[768,128], index: 1, kind: output, shape index: {}]
  %s2 = sld [smem:[#allocation0]]
  $region18: #{tpu_custom_call.1} parent=0
    _
  %s4 = ssub.s32 1, %s2
  %s5 = scalar_select 0, %s4, %s2
  $region1: #{tpu_custom_call.1} parent=0
    #allocation2 [shape = 'u8[393216]{0}', space=vmem, size = 0x60000, scoped, tag = 'input window, operand 0, single buffered']
    #allocation3 [shape = 's32[1]{0}', space=sflag, size = 0x4, scoped, tag = 'scoped memory for tpu_custom_call.1']
    #allocation4 [shape = 's32[1]{0}', space=sflag, size = 0x4, scoped, tag = 'scoped memory for tpu_custom_call.1']
    #allocation5 [shape = 'u8[393216]{0}', space=vmem, size = 0x60000, scoped, tag = 'output window, operand 0, single buffered']
    %6 = vsyncpa [#allocation3], 0
    %7 = vsyncpa [#allocation4], 0
    // Predicated region
    $region2: #{tpu_custom_call.1} parent=1 // pred_check
      _
    $region3: #{tpu_custom_call.1} parent=1 // pred_check_branch
      %9 = sbr.rel (0) target = $region5
    $region4: #{tpu_custom_call.1} parent=1 // pred_region
      %11 = vsyncadd [#allocation3], 0
      %s12 = sshll.u32 %s0, 4
      %s13 = int_to_ptr.hbm [resolvable:$true] %s12
      %s14 = sshll.u32 [#allocation2], 4
      %s15 = int_to_ptr.vmem [resolvable:$true] %s14
      %20 = dma.hbm_to_vmem [thread:$0]  %s13, 12288, %s15, [#allocation3], 128, 128, 8
    $region5: #{tpu_custom_call.1} parent=1 // pred_fallthru
      _
    // Predicated region
    $region6: #{tpu_custom_call.1} parent=1 // pred_check
      _
    $region7: #{tpu_custom_call.1} parent=1 // pred_check_branch
      %22 = sbr.rel (0) target = $region9
    $region8: #{tpu_custom_call.1} parent=1 // pred_region
      %24 = dma.done [#allocation3], 12288
    $region9: #{tpu_custom_call.1} parent=1 // pred_fallthru
      _
    %v25 = vld [vmem:[#allocation2] sm:$0xff]
    %v26 = vld [vmem:[#allocation2 + $0x8] sm:$0xff]
    %v27 = vld [vmem:[#allocation2 + $0x10] sm:$0xff]
    %v28 = vld [vmem:[#allocation2 + $0x18] sm:$0xff]
    %v29 = vld [vmem:[#allocation2 + $0x20] sm:$0xff]
    %v30 = vld [vmem:[#allocation2 + $0x28] sm:$0xff]
    %v31 = vld [vmem:[#allocation2 + $0x30] sm:$0xff]
    %v32 = vld [vmem:[#allocation2 + $0x38] sm:$0xff]
    %v33 = vld [vmem:[#allocation2 + $0x40] sm:$0xff]
    %v34 = vld [vmem:[#allocation2 + $0x48] sm:$0xff]
    %v35 = vld [vmem:[#allocation2 + $0x50] sm:$0xff]
    %v36 = vld [vmem:[#allocation2 + $0x58] sm:$0xff]
    %v37 = vld [vmem:[#allocation2 + $0x60] sm:$0xff]
    %v38 = vld [vmem:[#allocation2 + $0x68] sm:$0xff]
    %v39 = vld [vmem:[#allocation2 + $0x70] sm:$0xff]
    %v40 = vld [vmem:[#allocation2 + $0x78] sm:$0xff]
    %v41 = vld [vmem:[#allocation2 + $0x80] sm:$0xff]
    %v42 = vld [vmem:[#allocation2 + $0x88] sm:$0xff]
    %v43 = vld [vmem:[#allocation2 + $0x90] sm:$0xff]
    %v44 = vld [vmem:[#allocation2 + $0x98] sm:$0xff]
    %v45 = vld [vmem:[#allocation2 + $0xa0] sm:$0xff]
    %v46 = vld [vmem:[#allocation2 + $0xa8] sm:$0xff]
    %v47 = vld [vmem:[#allocation2 + $0xb0] sm:$0xff]
    %v48 = vld [vmem:[#allocation2 + $0xb8] sm:$0xff]
    %v49 = vld [vmem:[#allocation2 + $0xc0] sm:$0xff]
    %v50 = vld [vmem:[#allocation2 + $0xc8] sm:$0xff]
    %v51 = vld [vmem:[#allocation2 + $0xd0] sm:$0xff]
    %v52 = vld [vmem:[#allocation2 + $0xd8] sm:$0xff]
    %v53 = vld [vmem:[#allocation2 + $0xe0] sm:$0xff]
    %v54 = vld [vmem:[#allocation2 + $0xe8] sm:$0xff]
    %v55 = vld [vmem:[#allocation2 + $0xf0] sm:$0xff]
    %v56 = vld [vmem:[#allocation2 + $0xf8] sm:$0xff]
    %v57 = vld [vmem:[#allocation2 + $0x100] sm:$0xff]
    %v58 = vld [vmem:[#allocation2 + $0x108] sm:$0xff]
    %v59 = vld [vmem:[#allocation2 + $0x110] sm:$0xff]
    %v60 = vld [vmem:[#allocation2 + $0x118] sm:$0xff]
    %v61 = vld [vmem:[#allocation2 + $0x120] sm:$0xff]
    %v62 = vld [vmem:[#allocation2 + $0x128] sm:$0xff]
    %v63 = vld [vmem:[#allocation2 + $0x130] sm:$0xff]
    %v64 = vld [vmem:[#allocation2 + $0x138] sm:$0xff]
    %v65 = vld [vmem:[#allocation2 + $0x140] sm:$0xff]
    %v66 = vld [vmem:[#allocation2 + $0x148] sm:$0xff]
    %v67 = vld [vmem:[#allocation2 + $0x150] sm:$0xff]
    %v68 = vld [vmem:[#allocation2 + $0x158] sm:$0xff]
    %v69 = vld [vmem:[#allocation2 + $0x160] sm:$0xff]
    %v70 = vld [vmem:[#allocation2 + $0x168] sm:$0xff]
    %v71 = vld [vmem:[#allocation2 + $0x170] sm:$0xff]
    %v72 = vld [vmem:[#allocation2 + $0x178] sm:$0xff]
    %v73 = vld [vmem:[#allocation2 + $0x180] sm:$0xff]
    %v74 = vld [vmem:[#allocation2 + $0x188] sm:$0xff]
    %v75 = vld [vmem:[#allocation2 + $0x190] sm:$0xff]
    %v76 = vld [vmem:[#allocation2 + $0x198] sm:$0xff]
    %v77 = vld [vmem:[#allocation2 + $0x1a0] sm:$0xff]
    %v78 = vld [vmem:[#allocation2 + $0x1a8] sm:$0xff]
    %v79 = vld [vmem:[#allocation2 + $0x1b0] sm:$0xff]
    %v80 = vld [vmem:[#allocation2 + $0x1b8] sm:$0xff]
    %v81 = vld [vmem:[#allocation2 + $0x1c0] sm:$0xff]
    %v82 = vld [vmem:[#allocation2 + $0x1c8] sm:$0xff]
    %v83 = vld [vmem:[#allocation2 + $0x1d0] sm:$0xff]
    %v84 = vld [vmem:[#allocation2 + $0x1d8] sm:$0xff]
    %v85 = vld [vmem:[#allocation2 + $0x1e0] sm:$0xff]
    %v86 = vld [vmem:[#allocation2 + $0x1e8] sm:$0xff]
    %v87 = vld [vmem:[#allocation2 + $0x1f0] sm:$0xff]
    %v88 = vld [vmem:[#allocation2 + $0x1f8] sm:$0xff]
    %v89 = vld [vmem:[#allocation2 + $0x200] sm:$0xff]
    %v90 = vld [vmem:[#allocation2 + $0x208] sm:$0xff]
    %v91 = vld [vmem:[#allocation2 + $0x210] sm:$0xff]
    %v92 = vld [vmem:[#allocation2 + $0x218] sm:$0xff]
    %v93 = vld [vmem:[#allocation2 + $0x220] sm:$0xff]
    %v94 = vld [vmem:[#allocation2 + $0x228] sm:$0xff]
    %v95 = vld [vmem:[#allocation2 + $0x230] sm:$0xff]
    %v96 = vld [vmem:[#allocation2 + $0x238] sm:$0xff]
    %v97 = vld [vmem:[#allocation2 + $0x240] sm:$0xff]
    %v98 = vld [vmem:[#allocation2 + $0x248] sm:$0xff]
    %v99 = vld [vmem:[#allocation2 + $0x250] sm:$0xff]
    %v100 = vld [vmem:[#allocation2 + $0x258] sm:$0xff]
    %v101 = vld [vmem:[#allocation2 + $0x260] sm:$0xff]
    %v102 = vld [vmem:[#allocation2 + $0x268] sm:$0xff]
    %v103 = vld [vmem:[#allocation2 + $0x270] sm:$0xff]
    %v104 = vld [vmem:[#allocation2 + $0x278] sm:$0xff]
    %v105 = vld [vmem:[#allocation2 + $0x280] sm:$0xff]
    %v106 = vld [vmem:[#allocation2 + $0x288] sm:$0xff]
    %v107 = vld [vmem:[#allocation2 + $0x290] sm:$0xff]
    %v108 = vld [vmem:[#allocation2 + $0x298] sm:$0xff]
    %v109 = vld [vmem:[#allocation2 + $0x2a0] sm:$0xff]
    %v110 = vld [vmem:[#allocation2 + $0x2a8] sm:$0xff]
    %v111 = vld [vmem:[#allocation2 + $0x2b0] sm:$0xff]
    %v112 = vld [vmem:[#allocation2 + $0x2b8] sm:$0xff]
    %v113 = vld [vmem:[#allocation2 + $0x2c0] sm:$0xff]
    %v114 = vld [vmem:[#allocation2 + $0x2c8] sm:$0xff]
    %v115 = vld [vmem:[#allocation2 + $0x2d0] sm:$0xff]
    %v116 = vld [vmem:[#allocation2 + $0x2d8] sm:$0xff]
    %v117 = vld [vmem:[#allocation2 + $0x2e0] sm:$0xff]
    %v118 = vld [vmem:[#allocation2 + $0x2e8] sm:$0xff]
    %v119 = vld [vmem:[#allocation2 + $0x2f0] sm:$0xff]
    %v120 = vld [vmem:[#allocation2 + $0x2f8] sm:$0xff]
    %v121 = vlaneseq
    %v122 = vshrl.u32 %v121, 7
    %v123 = vadd.s32 %v122, 8
    %v124 = vadd.s32 %v122, 16
    %v125 = vadd.s32 %v122, 24
    %v126 = vadd.s32 %v122, 32
    %v127 = vadd.s32 %v122, 40
    %v128 = vadd.s32 %v122, 48
    %v129 = vadd.s32 %v122, 56
    %v130 = vadd.s32 %v122, 64
    %v131 = vadd.s32 %v122, 72
    %v132 = vadd.s32 %v122, 80
    %v133 = vadd.s32 %v122, 88
    %v134 = vadd.s32 %v122, 96
    %v135 = vadd.s32 %v122, 104
    %v136 = vadd.s32 %v122, 112
    %v137 = vadd.s32 %v122, 120
    %v138 = vadd.s32 %v122, 128
    %v139 = vadd.s32 %v122, 136
    %v140 = vadd.s32 %v122, 144
    %v141 = vadd.s32 %v122, 152
    %v142 = vadd.s32 %v122, 160
    %v143 = vadd.s32 %v122, 168
    %v144 = vadd.s32 %v122, 176
    %v145 = vadd.s32 %v122, 184
    %v146 = vadd.s32 %v122, 192
    %v147 = vadd.s32 %v122, 200
    %v148 = vadd.s32 %v122, 208
    %v149 = vadd.s32 %v122, 216
    %v150 = vadd.s32 %v122, 224
    %v151 = vadd.s32 %v122, 232
    %v152 = vadd.s32 %v122, 240
    %v153 = vadd.s32 %v122, 248
    %v154 = vadd.s32 %v122, 256
    %v155 = vadd.s32 %v122, 264
    %v156 = vadd.s32 %v122, 272
    %v157 = vadd.s32 %v122, 280
    %v158 = vadd.s32 %v122, 288
    %v159 = vadd.s32 %v122, 296
    %v160 = vadd.s32 %v122, 304
    %v161 = vadd.s32 %v122, 312
    %v162 = vadd.s32 %v122, 320
    %v163 = vadd.s32 %v122, 328
    %v164 = vadd.s32 %v122, 336
    %v165 = vadd.s32 %v122, 344
    %v166 = vadd.s32 %v122, 352
    %v167 = vadd.s32 %v122, 360
    %v168 = vadd.s32 %v122, 368
    %v169 = vadd.s32 %v122, 376
    %v170 = vadd.s32 %v122, 384
    %v171 = vadd.s32 %v122, 392
    %v172 = vadd.s32 %v122, 400
    %v173 = vadd.s32 %v122, 408
    %v174 = vadd.s32 %v122, 416
    %v175 = vadd.s32 %v122, 424
    %v176 = vadd.s32 %v122, 432
    %v177 = vadd.s32 %v122, 440
    %v178 = vadd.s32 %v122, 448
    %v179 = vadd.s32 %v122, 456
    %v180 = vadd.s32 %v122, 464
    %v181 = vadd.s32 %v122, 472
    %v182 = vadd.s32 %v122, 480
    %v183 = vadd.s32 %v122, 488
    %v184 = vadd.s32 %v122, 496
    %v185 = vadd.s32 %v122, 504
    %v186 = vadd.s32 %v122, 512
    %v187 = vadd.s32 %v122, 520
    %v188 = vadd.s32 %v122, 528
    %v189 = vadd.s32 %v122, 536
    %v190 = vadd.s32 %v122, 544
    %v191 = vadd.s32 %v122, 552
    %v192 = vadd.s32 %v122, 560
    %v193 = vadd.s32 %v122, 568
    %v194 = vadd.s32 %v122, 576
    %v195 = vadd.s32 %v122, 584
    %v196 = vadd.s32 %v122, 592
    %v197 = vadd.s32 %v122, 600
    %v198 = vadd.s32 %v122, 608
    %v199 = vadd.s32 %v122, 616
    %v200 = vadd.s32 %v122, 624
    %v201 = vadd.s32 %v122, 632
    %v202 = vadd.s32 %v122, 640
    %v203 = vadd.s32 %v122, 648
    %v204 = vadd.s32 %v122, 656
    %v205 = vadd.s32 %v122, 664
    %v206 = vadd.s32 %v122, 672
    %v207 = vadd.s32 %v122, 680
    %v208 = vadd.s32 %v122, 688
    %v209 = vadd.s32 %v122, 696
    %v210 = vadd.s32 %v122, 704
    %v211 = vadd.s32 %v122, 712
    %v212 = vadd.s32 %v122, 720
    %v213 = vadd.s32 %v122, 728
    %v214 = vadd.s32 %v122, 736
    %v215 = vadd.s32 %v122, 744
    %v216 = vadd.s32 %v122, 752
    %v217 = vadd.s32 %v122, 760
    %vm218 = vcmp.lt.s32.totalorder %v122, 0
    %v219 = vsub.s32 0, %v122
    %v220 = vsel %vm218, %v219, %v122
    %v221 = vshrl.u32 %v220, 7
    %v222 = vand.u32 %v220, 127
    %v223 = vsub.s32 0, %v222
    %v224 = vsel %vm218, %v223, %v222
    %vm225 = vcmp.lt.s32.totalorder %v123, 0
    %v226 = vsub.s32 0, %v123
    %v227 = vsel %vm225, %v226, %v123
    %v228 = vshrl.u32 %v227, 7
    %v229 = vand.u32 %v227, 127
    %v230 = vsub.s32 0, %v229
    %v231 = vsel %vm225, %v230, %v229
    %vm232 = vcmp.lt.s32.totalorder %v124, 0
    %v233 = vsub.s32 0, %v124
    %v234 = vsel %vm232, %v233, %v124
    %v235 = vshrl.u32 %v234, 7
    %v236 = vand.u32 %v234, 127
    %v237 = vsub.s32 0, %v236
    %v238 = vsel %vm232, %v237, %v236
    %vm239 = vcmp.lt.s32.totalorder %v125, 0
    %v240 = vsub.s32 0, %v125
    %v241 = vsel %vm239, %v240, %v125
    %v242 = vshrl.u32 %v241, 7
    %v243 = vand.u32 %v241, 127
    %v244 = vsub.s32 0, %v243
    %v245 = vsel %vm239, %v244, %v243
    %vm246 = vcmp.lt.s32.totalorder %v126, 0
    %v247 = vsub.s32 0, %v126
    %v248 = vsel %vm246, %v247, %v126
    %v249 = vshrl.u32 %v248, 7
    %v250 = vand.u32 %v248, 127
    %v251 = vsub.s32 0, %v250
    %v252 = vsel %vm246, %v251, %v250
    %vm253 = vcmp.lt.s32.totalorder %v127, 0
    %v254 = vsub.s32 0, %v127
    %v255 = vsel %vm253, %v254, %v127
    %v256 = vshrl.u32 %v255, 7
    %v257 = vand.u32 %v255, 127
    %v258 = vsub.s32 0, %v257
    %v259 = vsel %vm253, %v258, %v257
    %vm260 = vcmp.lt.s32.totalorder %v128, 0
    %v261 = vsub.s32 0, %v128
    %v262 = vsel %vm260, %v261, %v128
    %v263 = vshrl.u32 %v262, 7
    %v264 = vand.u32 %v262, 127
    %v265 = vsub.s32 0, %v264
    %v266 = vsel %vm260, %v265, %v264
    %vm267 = vcmp.lt.s32.totalorder %v129, 0
    %v268 = vsub.s32 0, %v129
    %v269 = vsel %vm267, %v268, %v129
    %v270 = vshrl.u32 %v269, 7
    %v271 = vand.u32 %v269, 127
    %v272 = vsub.s32 0, %v271
    %v273 = vsel %vm267, %v272, %v271
    %vm274 = vcmp.lt.s32.totalorder %v130, 0
    %v275 = vsub.s32 0, %v130
    %v276 = vsel %vm274, %v275, %v130
    %v277 = vshrl.u32 %v276, 7
    %v278 = vand.u32 %v276, 127
    %v279 = vsub.s32 0, %v278
    %v280 = vsel %vm274, %v279, %v278
    %vm281 = vcmp.lt.s32.totalorder %v131, 0
    %v282 = vsub.s32 0, %v131
    %v283 = vsel %vm281, %v282, %v131
    %v284 = vshrl.u32 %v283, 7
    %v285 = vand.u32 %v283, 127
    %v286 = vsub.s32 0, %v285
    %v287 = vsel %vm281, %v286, %v285
    %vm288 = vcmp.lt.s32.totalorder %v132, 0
    %v289 = vsub.s32 0, %v132
    %v290 = vsel %vm288, %v289, %v132
    %v291 = vshrl.u32 %v290, 7
    %v292 = vand.u32 %v290, 127
    %v293 = vsub.s32 0, %v292
    %v294 = vsel %vm288, %v293, %v292
    %vm295 = vcmp.lt.s32.totalorder %v133, 0
    %v296 = vsub.s32 0, %v133
    %v297 = vsel %vm295, %v296, %v133
    %v298 = vshrl.u32 %v297, 7
    %v299 = vand.u32 %v297, 127
    %v300 = vsub.s32 0, %v299
    %v301 = vsel %vm295, %v300, %v299
    %vm302 = vcmp.lt.s32.totalorder %v134, 0
    %v303 = vsub.s32 0, %v134
    %v304 = vsel %vm302, %v303, %v134
    %v305 = vshrl.u32 %v304, 7
    %v306 = vand.u32 %v304, 127
    %v307 = vsub.s32 0, %v306
    %v308 = vsel %vm302, %v307, %v306
    %vm309 = vcmp.lt.s32.totalorder %v135, 0
    %v310 = vsub.s32 0, %v135
    %v311 = vsel %vm309, %v310, %v135
    %v312 = vshrl.u32 %v311, 7
    %v313 = vand.u32 %v311, 127
    %v314 = vsub.s32 0, %v313
    %v315 = vsel %vm309, %v314, %v313
    %vm316 = vcmp.lt.s32.totalorder %v136, 0
    %v317 = vsub.s32 0, %v136
    %v318 = vsel %vm316, %v317, %v136
    %v319 = vshrl.u32 %v318, 7
    %v320 = vand.u32 %v318, 127
    %v321 = vsub.s32 0, %v320
    %v322 = vsel %vm316, %v321, %v320
    %vm323 = vcmp.lt.s32.totalorder %v137, 0
    %v324 = vsub.s32 0, %v137
    %v325 = vsel %vm323, %v324, %v137
    %v326 = vshrl.u32 %v325, 7
    %v327 = vand.u32 %v325, 127
    %v328 = vsub.s32 0, %v327
    %v329 = vsel %vm323, %v328, %v327
    %vm330 = vcmp.lt.s32.totalorder %v138, 0
    %v331 = vsub.s32 0, %v138
    %v332 = vsel %vm330, %v331, %v138
    %v333 = vshrl.u32 %v332, 7
    %v334 = vand.u32 %v332, 127
    %v335 = vsub.s32 0, %v334
    %v336 = vsel %vm330, %v335, %v334
    %vm337 = vcmp.lt.s32.totalorder %v139, 0
    %v338 = vsub.s32 0, %v139
    %v339 = vsel %vm337, %v338, %v139
    %v340 = vshrl.u32 %v339, 7
    %v341 = vand.u32 %v339, 127
    %v342 = vsub.s32 0, %v341
    %v343 = vsel %vm337, %v342, %v341
    %vm344 = vcmp.lt.s32.totalorder %v140, 0
    %v345 = vsub.s32 0, %v140
    %v346 = vsel %vm344, %v345, %v140
    %v347 = vshrl.u32 %v346, 7
    %v348 = vand.u32 %v346, 127
    %v349 = vsub.s32 0, %v348
    %v350 = vsel %vm344, %v349, %v348
    %vm351 = vcmp.lt.s32.totalorder %v141, 0
    %v352 = vsub.s32 0, %v141
    %v353 = vsel %vm351, %v352, %v141
    %v354 = vshrl.u32 %v353, 7
    %v355 = vand.u32 %v353, 127
    %v356 = vsub.s32 0, %v355
    %v357 = vsel %vm351, %v356, %v355
    %vm358 = vcmp.lt.s32.totalorder %v142, 0
    %v359 = vsub.s32 0, %v142
    %v360 = vsel %vm358, %v359, %v142
    %v361 = vshrl.u32 %v360, 7
    %v362 = vand.u32 %v360, 127
    %v363 = vsub.s32 0, %v362
    %v364 = vsel %vm358, %v363, %v362
    %vm365 = vcmp.lt.s32.totalorder %v143, 0
    %v366 = vsub.s32 0, %v143
    %v367 = vsel %vm365, %v366, %v143
    %v368 = vshrl.u32 %v367, 7
    %v369 = vand.u32 %v367, 127
    %v370 = vsub.s32 0, %v369
    %v371 = vsel %vm365, %v370, %v369
    %vm372 = vcmp.lt.s32.totalorder %v144, 0
    %v373 = vsub.s32 0, %v144
    %v374 = vsel %vm372, %v373, %v144
    %v375 = vshrl.u32 %v374, 7
    %v376 = vand.u32 %v374, 127
    %v377 = vsub.s32 0, %v376
    %v378 = vsel %vm372, %v377, %v376
    %vm379 = vcmp.lt.s32.totalorder %v145, 0
    %v380 = vsub.s32 0, %v145
    %v381 = vsel %vm379, %v380, %v145
    %v382 = vshrl.u32 %v381, 7
    %v383 = vand.u32 %v381, 127
    %v384 = vsub.s32 0, %v383
    %v385 = vsel %vm379, %v384, %v383
    %vm386 = vcmp.lt.s32.totalorder %v146, 0
    %v387 = vsub.s32 0, %v146
    %v388 = vsel %vm386, %v387, %v146
    %v389 = vshrl.u32 %v388, 7
    %v390 = vand.u32 %v388, 127
    %v391 = vsub.s32 0, %v390
    %v392 = vsel %vm386, %v391, %v390
    %vm393 = vcmp.lt.s32.totalorder %v147, 0
    %v394 = vsub.s32 0, %v147
    %v395 = vsel %vm393, %v394, %v147
    %v396 = vshrl.u32 %v395, 7
    %v397 = vand.u32 %v395, 127
    %v398 = vsub.s32 0, %v397
    %v399 = vsel %vm393, %v398, %v397
    %vm400 = vcmp.lt.s32.totalorder %v148, 0
    %v401 = vsub.s32 0, %v148
    %v402 = vsel %vm400, %v401, %v148
    %v403 = vshrl.u32 %v402, 7
    %v404 = vand.u32 %v402, 127
    %v405 = vsub.s32 0, %v404
    %v406 = vsel %vm400, %v405, %v404
    %vm407 = vcmp.lt.s32.totalorder %v149, 0
    %v408 = vsub.s32 0, %v149
    %v409 = vsel %vm407, %v408, %v149
    %v410 = vshrl.u32 %v409, 7
    %v411 = vand.u32 %v409, 127
    %v412 = vsub.s32 0, %v411
    %v413 = vsel %vm407, %v412, %v411
    %vm414 = vcmp.lt.s32.totalorder %v150, 0
    %v415 = vsub.s32 0, %v150
    %v416 = vsel %vm414, %v415, %v150
    %v417 = vshrl.u32 %v416, 7
    %v418 = vand.u32 %v416, 127
    %v419 = vsub.s32 0, %v418
    %v420 = vsel %vm414, %v419, %v418
    %vm421 = vcmp.lt.s32.totalorder %v151, 0
    %v422 = vsub.s32 0, %v151
    %v423 = vsel %vm421, %v422, %v151
    %v424 = vshrl.u32 %v423, 7
    %v425 = vand.u32 %v423, 127
    %v426 = vsub.s32 0, %v425
    %v427 = vsel %vm421, %v426, %v425
    %vm428 = vcmp.lt.s32.totalorder %v152, 0
    %v429 = vsub.s32 0, %v152
    %v430 = vsel %vm428, %v429, %v152
    %v431 = vshrl.u32 %v430, 7
    %v432 = vand.u32 %v430, 127
    %v433 = vsub.s32 0, %v432
    %v434 = vsel %vm428, %v433, %v432
    %vm435 = vcmp.lt.s32.totalorder %v153, 0
    %v436 = vsub.s32 0, %v153
    %v437 = vsel %vm435, %v436, %v153
    %v438 = vshrl.u32 %v437, 7
    %v439 = vand.u32 %v437, 127
    %v440 = vsub.s32 0, %v439
    %v441 = vsel %vm435, %v440, %v439
    %vm442 = vcmp.lt.s32.totalorder %v154, 0
    %v443 = vsub.s32 0, %v154
    %v444 = vsel %vm442, %v443, %v154
    %v445 = vshrl.u32 %v444, 7
    %v446 = vand.u32 %v444, 127
    %v447 = vsub.s32 0, %v446
    %v448 = vsel %vm442, %v447, %v446
    %vm449 = vcmp.lt.s32.totalorder %v155, 0
    %v450 = vsub.s32 0, %v155
    %v451 = vsel %vm449, %v450, %v155
    %v452 = vshrl.u32 %v451, 7
    %v453 = vand.u32 %v451, 127
    %v454 = vsub.s32 0, %v453
    %v455 = vsel %vm449, %v454, %v453
    %vm456 = vcmp.lt.s32.totalorder %v156, 0
    %v457 = vsub.s32 0, %v156
    %v458 = vsel %vm456, %v457, %v156
    %v459 = vshrl.u32 %v458, 7
    %v460 = vand.u32 %v458, 127
    %v461 = vsub.s32 0, %v460
    %v462 = vsel %vm456, %v461, %v460
    %vm463 = vcmp.lt.s32.totalorder %v157, 0
    %v464 = vsub.s32 0, %v157
    %v465 = vsel %vm463, %v464, %v157
    %v466 = vshrl.u32 %v465, 7
    %v467 = vand.u32 %v465, 127
    %v468 = vsub.s32 0, %v467
    %v469 = vsel %vm463, %v468, %v467
    %vm470 = vcmp.lt.s32.totalorder %v158, 0
    %v471 = vsub.s32 0, %v158
    %v472 = vsel %vm470, %v471, %v158
    %v473 = vshrl.u32 %v472, 7
    %v474 = vand.u32 %v472, 127
    %v475 = vsub.s32 0, %v474
    %v476 = vsel %vm470, %v475, %v474
    %vm477 = vcmp.lt.s32.totalorder %v159, 0
    %v478 = vsub.s32 0, %v159
    %v479 = vsel %vm477, %v478, %v159
    %v480 = vshrl.u32 %v479, 7
    %v481 = vand.u32 %v479, 127
    %v482 = vsub.s32 0, %v481
    %v483 = vsel %vm477, %v482, %v481
    %vm484 = vcmp.lt.s32.totalorder %v160, 0
    %v485 = vsub.s32 0, %v160
    %v486 = vsel %vm484, %v485, %v160
    %v487 = vshrl.u32 %v486, 7
    %v488 = vand.u32 %v486, 127
    %v489 = vsub.s32 0, %v488
    %v490 = vsel %vm484, %v489, %v488
    %vm491 = vcmp.lt.s32.totalorder %v161, 0
    %v492 = vsub.s32 0, %v161
    %v493 = vsel %vm491, %v492, %v161
    %v494 = vshrl.u32 %v493, 7
    %v495 = vand.u32 %v493, 127
    %v496 = vsub.s32 0, %v495
    %v497 = vsel %vm491, %v496, %v495
    %vm498 = vcmp.lt.s32.totalorder %v162, 0
    %v499 = vsub.s32 0, %v162
    %v500 = vsel %vm498, %v499, %v162
    %v501 = vshrl.u32 %v500, 7
    %v502 = vand.u32 %v500, 127
    %v503 = vsub.s32 0, %v502
    %v504 = vsel %vm498, %v503, %v502
    %vm505 = vcmp.lt.s32.totalorder %v163, 0
    %v506 = vsub.s32 0, %v163
    %v507 = vsel %vm505, %v506, %v163
    %v508 = vshrl.u32 %v507, 7
    %v509 = vand.u32 %v507, 127
    %v510 = vsub.s32 0, %v509
    %v511 = vsel %vm505, %v510, %v509
    %vm512 = vcmp.lt.s32.totalorder %v164, 0
    %v513 = vsub.s32 0, %v164
    %v514 = vsel %vm512, %v513, %v164
    %v515 = vshrl.u32 %v514, 7
    %v516 = vand.u32 %v514, 127
    %v517 = vsub.s32 0, %v516
    %v518 = vsel %vm512, %v517, %v516
    %vm519 = vcmp.lt.s32.totalorder %v165, 0
    %v520 = vsub.s32 0, %v165
    %v521 = vsel %vm519, %v520, %v165
    %v522 = vshrl.u32 %v521, 7
    %v523 = vand.u32 %v521, 127
    %v524 = vsub.s32 0, %v523
    %v525 = vsel %vm519, %v524, %v523
    %vm526 = vcmp.lt.s32.totalorder %v166, 0
    %v527 = vsub.s32 0, %v166
    %v528 = vsel %vm526, %v527, %v166
    %v529 = vshrl.u32 %v528, 7
    %v530 = vand.u32 %v528, 127
    %v531 = vsub.s32 0, %v530
    %v532 = vsel %vm526, %v531, %v530
    %vm533 = vcmp.lt.s32.totalorder %v167, 0
    %v534 = vsub.s32 0, %v167
    %v535 = vsel %vm533, %v534, %v167
    %v536 = vshrl.u32 %v535, 7
    %v537 = vand.u32 %v535, 127
    %v538 = vsub.s32 0, %v537
    %v539 = vsel %vm533, %v538, %v537
    %vm540 = vcmp.lt.s32.totalorder %v168, 0
    %v541 = vsub.s32 0, %v168
    %v542 = vsel %vm540, %v541, %v168
    %v543 = vshrl.u32 %v542, 7
    %v544 = vand.u32 %v542, 127
    %v545 = vsub.s32 0, %v544
    %v546 = vsel %vm540, %v545, %v544
    %vm547 = vcmp.lt.s32.totalorder %v169, 0
    %v548 = vsub.s32 0, %v169
    %v549 = vsel %vm547, %v548, %v169
    %v550 = vshrl.u32 %v549, 7
    %v551 = vand.u32 %v549, 127
    %v552 = vsub.s32 0, %v551
    %v553 = vsel %vm547, %v552, %v551
    %vm554 = vcmp.lt.s32.totalorder %v170, 0
    %v555 = vsub.s32 0, %v170
    %v556 = vsel %vm554, %v555, %v170
    %v557 = vshrl.u32 %v556, 7
    %v558 = vand.u32 %v556, 127
    %v559 = vsub.s32 0, %v558
    %v560 = vsel %vm554, %v559, %v558
    %vm561 = vcmp.lt.s32.totalorder %v171, 0
    %v562 = vsub.s32 0, %v171
    %v563 = vsel %vm561, %v562, %v171
    %v564 = vshrl.u32 %v563, 7
    %v565 = vand.u32 %v563, 127
    %v566 = vsub.s32 0, %v565
    %v567 = vsel %vm561, %v566, %v565
    %vm568 = vcmp.lt.s32.totalorder %v172, 0
    %v569 = vsub.s32 0, %v172
    %v570 = vsel %vm568, %v569, %v172
    %v571 = vshrl.u32 %v570, 7
    %v572 = vand.u32 %v570, 127
    %v573 = vsub.s32 0, %v572
    %v574 = vsel %vm568, %v573, %v572
    %vm575 = vcmp.lt.s32.totalorder %v173, 0
    %v576 = vsub.s32 0, %v173
    %v577 = vsel %vm575, %v576, %v173
    %v578 = vshrl.u32 %v577, 7
    %v579 = vand.u32 %v577, 127
    %v580 = vsub.s32 0, %v579
    %v581 = vsel %vm575, %v580, %v579
    %vm582 = vcmp.lt.s32.totalorder %v174, 0
    %v583 = vsub.s32 0, %v174
    %v584 = vsel %vm582, %v583, %v174
    %v585 = vshrl.u32 %v584, 7
    %v586 = vand.u32 %v584, 127
    %v587 = vsub.s32 0, %v586
    %v588 = vsel %vm582, %v587, %v586
    %vm589 = vcmp.lt.s32.totalorder %v175, 0
    %v590 = vsub.s32 0, %v175
    %v591 = vsel %vm589, %v590, %v175
    %v592 = vshrl.u32 %v591, 7
    %v593 = vand.u32 %v591, 127
    %v594 = vsub.s32 0, %v593
    %v595 = vsel %vm589, %v594, %v593
    %vm596 = vcmp.lt.s32.totalorder %v176, 0
    %v597 = vsub.s32 0, %v176
    %v598 = vsel %vm596, %v597, %v176
    %v599 = vshrl.u32 %v598, 7
    %v600 = vand.u32 %v598, 127
    %v601 = vsub.s32 0, %v600
    %v602 = vsel %vm596, %v601, %v600
    %vm603 = vcmp.lt.s32.totalorder %v177, 0
    %v604 = vsub.s32 0, %v177
    %v605 = vsel %vm603, %v604, %v177
    %v606 = vshrl.u32 %v605, 7
    %v607 = vand.u32 %v605, 127
    %v608 = vsub.s32 0, %v607
    %v609 = vsel %vm603, %v608, %v607
    %vm610 = vcmp.lt.s32.totalorder %v178, 0
    %v611 = vsub.s32 0, %v178
    %v612 = vsel %vm610, %v611, %v178
    %v613 = vshrl.u32 %v612, 7
    %v614 = vand.u32 %v612, 127
    %v615 = vsub.s32 0, %v614
    %v616 = vsel %vm610, %v615, %v614
    %vm617 = vcmp.lt.s32.totalorder %v179, 0
    %v618 = vsub.s32 0, %v179
    %v619 = vsel %vm617, %v618, %v179
    %v620 = vshrl.u32 %v619, 7
    %v621 = vand.u32 %v619, 127
    %v622 = vsub.s32 0, %v621
    %v623 = vsel %vm617, %v622, %v621
    %vm624 = vcmp.lt.s32.totalorder %v180, 0
    %v625 = vsub.s32 0, %v180
    %v626 = vsel %vm624, %v625, %v180
    %v627 = vshrl.u32 %v626, 7
    %v628 = vand.u32 %v626, 127
    %v629 = vsub.s32 0, %v628
    %v630 = vsel %vm624, %v629, %v628
    %vm631 = vcmp.lt.s32.totalorder %v181, 0
    %v632 = vsub.s32 0, %v181
    %v633 = vsel %vm631, %v632, %v181
    %v634 = vshrl.u32 %v633, 7
    %v635 = vand.u32 %v633, 127
    %v636 = vsub.s32 0, %v635
    %v637 = vsel %vm631, %v636, %v635
    %vm638 = vcmp.lt.s32.totalorder %v182, 0
    %v639 = vsub.s32 0, %v182
    %v640 = vsel %vm638, %v639, %v182
    %v641 = vshrl.u32 %v640, 7
    %v642 = vand.u32 %v640, 127
    %v643 = vsub.s32 0, %v642
    %v644 = vsel %vm638, %v643, %v642
    %vm645 = vcmp.lt.s32.totalorder %v183, 0
    %v646 = vsub.s32 0, %v183
    %v647 = vsel %vm645, %v646, %v183
    %v648 = vshrl.u32 %v647, 7
    %v649 = vand.u32 %v647, 127
    %v650 = vsub.s32 0, %v649
    %v651 = vsel %vm645, %v650, %v649
    %vm652 = vcmp.lt.s32.totalorder %v184, 0
    %v653 = vsub.s32 0, %v184
    %v654 = vsel %vm652, %v653, %v184
    %v655 = vshrl.u32 %v654, 7
    %v656 = vand.u32 %v654, 127
    %v657 = vsub.s32 0, %v656
    %v658 = vsel %vm652, %v657, %v656
    %vm659 = vcmp.lt.s32.totalorder %v185, 0
    %v660 = vsub.s32 0, %v185
    %v661 = vsel %vm659, %v660, %v185
    %v662 = vshrl.u32 %v661, 7
    %v663 = vand.u32 %v661, 127
    %v664 = vsub.s32 0, %v663
    %v665 = vsel %vm659, %v664, %v663
    %vm666 = vcmp.lt.s32.totalorder %v186, 0
    %v667 = vsub.s32 0, %v186
    %v668 = vsel %vm666, %v667, %v186
    %v669 = vshrl.u32 %v668, 7
    %v670 = vand.u32 %v668, 127
    %v671 = vsub.s32 0, %v670
    %v672 = vsel %vm666, %v671, %v670
    %vm673 = vcmp.lt.s32.totalorder %v187, 0
    %v674 = vsub.s32 0, %v187
    %v675 = vsel %vm673, %v674, %v187
    %v676 = vshrl.u32 %v675, 7
    %v677 = vand.u32 %v675, 127
    %v678 = vsub.s32 0, %v677
    %v679 = vsel %vm673, %v678, %v677
    %vm680 = vcmp.lt.s32.totalorder %v188, 0
    %v681 = vsub.s32 0, %v188
    %v682 = vsel %vm680, %v681, %v188
    %v683 = vshrl.u32 %v682, 7
    %v684 = vand.u32 %v682, 127
    %v685 = vsub.s32 0, %v684
    %v686 = vsel %vm680, %v685, %v684
    %vm687 = vcmp.lt.s32.totalorder %v189, 0
    %v688 = vsub.s32 0, %v189
    %v689 = vsel %vm687, %v688, %v189
    %v690 = vshrl.u32 %v689, 7
    %v691 = vand.u32 %v689, 127
    %v692 = vsub.s32 0, %v691
    %v693 = vsel %vm687, %v692, %v691
    %vm694 = vcmp.lt.s32.totalorder %v190, 0
    %v695 = vsub.s32 0, %v190
    %v696 = vsel %vm694, %v695, %v190
    %v697 = vshrl.u32 %v696, 7
    %v698 = vand.u32 %v696, 127
    %v699 = vsub.s32 0, %v698
    %v700 = vsel %vm694, %v699, %v698
    %vm701 = vcmp.lt.s32.totalorder %v191, 0
    %v702 = vsub.s32 0, %v191
    %v703 = vsel %vm701, %v702, %v191
    %v704 = vshrl.u32 %v703, 7
    %v705 = vand.u32 %v703, 127
    %v706 = vsub.s32 0, %v705
    %v707 = vsel %vm701, %v706, %v705
    %vm708 = vcmp.lt.s32.totalorder %v192, 0
    %v709 = vsub.s32 0, %v192
    %v710 = vsel %vm708, %v709, %v192
    %v711 = vshrl.u32 %v710, 7
    %v712 = vand.u32 %v710, 127
    %v713 = vsub.s32 0, %v712
    %v714 = vsel %vm708, %v713, %v712
    %vm715 = vcmp.lt.s32.totalorder %v193, 0
    %v716 = vsub.s32 0, %v193
    %v717 = vsel %vm715, %v716, %v193
    %v718 = vshrl.u32 %v717, 7
    %v719 = vand.u32 %v717, 127
    %v720 = vsub.s32 0, %v719
    %v721 = vsel %vm715, %v720, %v719
    %vm722 = vcmp.lt.s32.totalorder %v194, 0
    %v723 = vsub.s32 0, %v194
    %v724 = vsel %vm722, %v723, %v194
    %v725 = vshrl.u32 %v724, 7
    %v726 = vand.u32 %v724, 127
    %v727 = vsub.s32 0, %v726
    %v728 = vsel %vm722, %v727, %v726
    %vm729 = vcmp.lt.s32.totalorder %v195, 0
    %v730 = vsub.s32 0, %v195
    %v731 = vsel %vm729, %v730, %v195
    %v732 = vshrl.u32 %v731, 7
    %v733 = vand.u32 %v731, 127
    %v734 = vsub.s32 0, %v733
    %v735 = vsel %vm729, %v734, %v733
    %vm736 = vcmp.lt.s32.totalorder %v196, 0
    %v737 = vsub.s32 0, %v196
    %v738 = vsel %vm736, %v737, %v196
    %v739 = vshrl.u32 %v738, 7
    %v740 = vand.u32 %v738, 127
    %v741 = vsub.s32 0, %v740
    %v742 = vsel %vm736, %v741, %v740
    %vm743 = vcmp.lt.s32.totalorder %v197, 0
    %v744 = vsub.s32 0, %v197
    %v745 = vsel %vm743, %v744, %v197
    %v746 = vshrl.u32 %v745, 7
    %v747 = vand.u32 %v745, 127
    %v748 = vsub.s32 0, %v747
    %v749 = vsel %vm743, %v748, %v747
    %vm750 = vcmp.lt.s32.totalorder %v198, 0
    %v751 = vsub.s32 0, %v198
    %v752 = vsel %vm750, %v751, %v198
    %v753 = vshrl.u32 %v752, 7
    %v754 = vand.u32 %v752, 127
    %v755 = vsub.s32 0, %v754
    %v756 = vsel %vm750, %v755, %v754
    %vm757 = vcmp.lt.s32.totalorder %v199, 0
    %v758 = vsub.s32 0, %v199
    %v759 = vsel %vm757, %v758, %v199
    %v760 = vshrl.u32 %v759, 7
    %v761 = vand.u32 %v759, 127
    %v762 = vsub.s32 0, %v761
    %v763 = vsel %vm757, %v762, %v761
    %vm764 = vcmp.lt.s32.totalorder %v200, 0
    %v765 = vsub.s32 0, %v200
    %v766 = vsel %vm764, %v765, %v200
    %v767 = vshrl.u32 %v766, 7
    %v768 = vand.u32 %v766, 127
    %v769 = vsub.s32 0, %v768
    %v770 = vsel %vm764, %v769, %v768
    %vm771 = vcmp.lt.s32.totalorder %v201, 0
    %v772 = vsub.s32 0, %v201
    %v773 = vsel %vm771, %v772, %v201
    %v774 = vshrl.u32 %v773, 7
    %v775 = vand.u32 %v773, 127
    %v776 = vsub.s32 0, %v775
    %v777 = vsel %vm771, %v776, %v775
    %vm778 = vcmp.lt.s32.totalorder %v202, 0
    %v779 = vsub.s32 0, %v202
    %v780 = vsel %vm778, %v779, %v202
    %v781 = vshrl.u32 %v780, 7
    %v782 = vand.u32 %v780, 127
    %v783 = vsub.s32 0, %v782
    %v784 = vsel %vm778, %v783, %v782
    %vm785 = vcmp.lt.s32.totalorder %v203, 0
    %v786 = vsub.s32 0, %v203
    %v787 = vsel %vm785, %v786, %v203
    %v788 = vshrl.u32 %v787, 7
    %v789 = vand.u32 %v787, 127
    %v790 = vsub.s32 0, %v789
    %v791 = vsel %vm785, %v790, %v789
    %vm792 = vcmp.lt.s32.totalorder %v204, 0
    %v793 = vsub.s32 0, %v204
    %v794 = vsel %vm792, %v793, %v204
    %v795 = vshrl.u32 %v794, 7
    %v796 = vand.u32 %v794, 127
    %v797 = vsub.s32 0, %v796
    %v798 = vsel %vm792, %v797, %v796
    %vm799 = vcmp.lt.s32.totalorder %v205, 0
    %v800 = vsub.s32 0, %v205
    %v801 = vsel %vm799, %v800, %v205
    %v802 = vshrl.u32 %v801, 7
    %v803 = vand.u32 %v801, 127
    %v804 = vsub.s32 0, %v803
    %v805 = vsel %vm799, %v804, %v803
    %vm806 = vcmp.lt.s32.totalorder %v206, 0
    %v807 = vsub.s32 0, %v206
    %v808 = vsel %vm806, %v807, %v206
    %v809 = vshrl.u32 %v808, 7
    %v810 = vand.u32 %v808, 127
    %v811 = vsub.s32 0, %v810
    %v812 = vsel %vm806, %v811, %v810
    %vm813 = vcmp.lt.s32.totalorder %v207, 0
    %v814 = vsub.s32 0, %v207
    %v815 = vsel %vm813, %v814, %v207
    %v816 = vshrl.u32 %v815, 7
    %v817 = vand.u32 %v815, 127
    %v818 = vsub.s32 0, %v817
    %v819 = vsel %vm813, %v818, %v817
    %vm820 = vcmp.lt.s32.totalorder %v208, 0
    %v821 = vsub.s32 0, %v208
    %v822 = vsel %vm820, %v821, %v208
    %v823 = vshrl.u32 %v822, 7
    %v824 = vand.u32 %v822, 127
    %v825 = vsub.s32 0, %v824
    %v826 = vsel %vm820, %v825, %v824
    %vm827 = vcmp.lt.s32.totalorder %v209, 0
    %v828 = vsub.s32 0, %v209
    %v829 = vsel %vm827, %v828, %v209
    %v830 = vshrl.u32 %v829, 7
    %v831 = vand.u32 %v829, 127
    %v832 = vsub.s32 0, %v831
    %v833 = vsel %vm827, %v832, %v831
    %vm834 = vcmp.lt.s32.totalorder %v210, 0
    %v835 = vsub.s32 0, %v210
    %v836 = vsel %vm834, %v835, %v210
    %v837 = vshrl.u32 %v836, 7
    %v838 = vand.u32 %v836, 127
    %v839 = vsub.s32 0, %v838
    %v840 = vsel %vm834, %v839, %v838
    %vm841 = vcmp.lt.s32.totalorder %v211, 0
    %v842 = vsub.s32 0, %v211
    %v843 = vsel %vm841, %v842, %v211
    %v844 = vshrl.u32 %v843, 7
    %v845 = vand.u32 %v843, 127
    %v846 = vsub.s32 0, %v845
    %v847 = vsel %vm841, %v846, %v845
    %vm848 = vcmp.lt.s32.totalorder %v212, 0
    %v849 = vsub.s32 0, %v212
    %v850 = vsel %vm848, %v849, %v212
    %v851 = vshrl.u32 %v850, 7
    %v852 = vand.u32 %v850, 127
    %v853 = vsub.s32 0, %v852
    %v854 = vsel %vm848, %v853, %v852
    %vm855 = vcmp.lt.s32.totalorder %v213, 0
    %v856 = vsub.s32 0, %v213
    %v857 = vsel %vm855, %v856, %v213
    %v858 = vshrl.u32 %v857, 7
    %v859 = vand.u32 %v857, 127
    %v860 = vsub.s32 0, %v859
    %v861 = vsel %vm855, %v860, %v859
    %vm862 = vcmp.lt.s32.totalorder %v214, 0
    %v863 = vsub.s32 0, %v214
    %v864 = vsel %vm862, %v863, %v214
    %v865 = vshrl.u32 %v864, 7
    %v866 = vand.u32 %v864, 127
    %v867 = vsub.s32 0, %v866
    %v868 = vsel %vm862, %v867, %v866
    %vm869 = vcmp.lt.s32.totalorder %v215, 0
    %v870 = vsub.s32 0, %v215
    %v871 = vsel %vm869, %v870, %v215
    %v872 = vshrl.u32 %v871, 7
    %v873 = vand.u32 %v871, 127
    %v874 = vsub.s32 0, %v873
    %v875 = vsel %vm869, %v874, %v873
    %vm876 = vcmp.lt.s32.totalorder %v216, 0
    %v877 = vsub.s32 0, %v216
    %v878 = vsel %vm876, %v877, %v216
    %v879 = vshrl.u32 %v878, 7
    %v880 = vand.u32 %v878, 127
    %v881 = vsub.s32 0, %v880
    %v882 = vsel %vm876, %v881, %v880
    %vm883 = vcmp.lt.s32.totalorder %v217, 0
    %v884 = vsub.s32 0, %v217
    %v885 = vsel %vm883, %v884, %v217
    %v886 = vshrl.u32 %v885, 7
    %v887 = vand.u32 %v885, 127
    %v888 = vsub.s32 0, %v887
    %v889 = vsel %vm883, %v888, %v887
    %vm890 = vcmp.eq.s32.totalorder %v224, 0
    %vm891 = vcmp.eq.s32.totalorder %v231, 0
    %vm892 = vcmp.eq.s32.totalorder %v238, 0
    %vm893 = vcmp.eq.s32.totalorder %v245, 0
    %vm894 = vcmp.eq.s32.totalorder %v252, 0
    %vm895 = vcmp.eq.s32.totalorder %v259, 0
    %vm896 = vcmp.eq.s32.totalorder %v266, 0
    %vm897 = vcmp.eq.s32.totalorder %v273, 0
    %vm898 = vcmp.eq.s32.totalorder %v280, 0
    %vm899 = vcmp.eq.s32.totalorder %v287, 0
    %vm900 = vcmp.eq.s32.totalorder %v294, 0
    %vm901 = vcmp.eq.s32.totalorder %v301, 0
    %vm902 = vcmp.eq.s32.totalorder %v308, 0
    %vm903 = vcmp.eq.s32.totalorder %v315, 0
    %vm904 = vcmp.eq.s32.totalorder %v322, 0
    %vm905 = vcmp.eq.s32.totalorder %v329, 0
    %vm906 = vcmp.eq.s32.totalorder %v336, 0
    %vm907 = vcmp.eq.s32.totalorder %v343, 0
    %vm908 = vcmp.eq.s32.totalorder %v350, 0
    %vm909 = vcmp.eq.s32.totalorder %v357, 0
    %vm910 = vcmp.eq.s32.totalorder %v364, 0
    %vm911 = vcmp.eq.s32.totalorder %v371, 0
    %vm912 = vcmp.eq.s32.totalorder %v378, 0
    %vm913 = vcmp.eq.s32.totalorder %v385, 0
    %vm914 = vcmp.eq.s32.totalorder %v392, 0
    %vm915 = vcmp.eq.s32.totalorder %v399, 0
    %vm916 = vcmp.eq.s32.totalorder %v406, 0
    %vm917 = vcmp.eq.s32.totalorder %v413, 0
    %vm918 = vcmp.eq.s32.totalorder %v420, 0
    %vm919 = vcmp.eq.s32.totalorder %v427, 0
    %vm920 = vcmp.eq.s32.totalorder %v434, 0
    %vm921 = vcmp.eq.s32.totalorder %v441, 0
    %vm922 = vcmp.eq.s32.totalorder %v448, 0
    %vm923 = vcmp.eq.s32.totalorder %v455, 0
    %vm924 = vcmp.eq.s32.totalorder %v462, 0
    %vm925 = vcmp.eq.s32.totalorder %v469, 0
    %vm926 = vcmp.eq.s32.totalorder %v476, 0
    %vm927 = vcmp.eq.s32.totalorder %v483, 0
    %vm928 = vcmp.eq.s32.totalorder %v490, 0
    %vm929 = vcmp.eq.s32.totalorder %v497, 0
    %vm930 = vcmp.eq.s32.totalorder %v504, 0
    %vm931 = vcmp.eq.s32.totalorder %v511, 0
    %vm932 = vcmp.eq.s32.totalorder %v518, 0
    %vm933 = vcmp.eq.s32.totalorder %v525, 0
    %vm934 = vcmp.eq.s32.totalorder %v532, 0
    %vm935 = vcmp.eq.s32.totalorder %v539, 0
    %vm936 = vcmp.eq.s32.totalorder %v546, 0
    %vm937 = vcmp.eq.s32.totalorder %v553, 0
    %vm938 = vcmp.eq.s32.totalorder %v560, 0
    %vm939 = vcmp.eq.s32.totalorder %v567, 0
    %vm940 = vcmp.eq.s32.totalorder %v574, 0
    %vm941 = vcmp.eq.s32.totalorder %v581, 0
    %vm942 = vcmp.eq.s32.totalorder %v588, 0
    %vm943 = vcmp.eq.s32.totalorder %v595, 0
    %vm944 = vcmp.eq.s32.totalorder %v602, 0
    %vm945 = vcmp.eq.s32.totalorder %v609, 0
    %vm946 = vcmp.eq.s32.totalorder %v616, 0
    %vm947 = vcmp.eq.s32.totalorder %v623, 0
    %vm948 = vcmp.eq.s32.totalorder %v630, 0
    %vm949 = vcmp.eq.s32.totalorder %v637, 0
    %vm950 = vcmp.eq.s32.totalorder %v644, 0
    %vm951 = vcmp.eq.s32.totalorder %v651, 0
    %vm952 = vcmp.eq.s32.totalorder %v658, 0
    %vm953 = vcmp.eq.s32.totalorder %v665, 0
    %vm954 = vcmp.eq.s32.totalorder %v672, 0
    %vm955 = vcmp.eq.s32.totalorder %v679, 0
    %vm956 = vcmp.eq.s32.totalorder %v686, 0
    %vm957 = vcmp.eq.s32.totalorder %v693, 0
    %vm958 = vcmp.eq.s32.totalorder %v700, 0
    %vm959 = vcmp.eq.s32.totalorder %v707, 0
    %vm960 = vcmp.eq.s32.totalorder %v714, 0
    %vm961 = vcmp.eq.s32.totalorder %v721, 0
    %vm962 = vcmp.eq.s32.totalorder %v728, 0
    %vm963 = vcmp.eq.s32.totalorder %v735, 0
    %vm964 = vcmp.eq.s32.totalorder %v742, 0
    %vm965 = vcmp.eq.s32.totalorder %v749, 0
    %vm966 = vcmp.eq.s32.totalorder %v756, 0
    %vm967 = vcmp.eq.s32.totalorder %v763, 0
    %vm968 = vcmp.eq.s32.totalorder %v770, 0
    %vm969 = vcmp.eq.s32.totalorder %v777, 0
    %vm970 = vcmp.eq.s32.totalorder %v784, 0
    %vm971 = vcmp.eq.s32.totalorder %v791, 0
    %vm972 = vcmp.eq.s32.totalorder %v798, 0
    %vm973 = vcmp.eq.s32.totalorder %v805, 0
    %vm974 = vcmp.eq.s32.totalorder %v812, 0
    %vm975 = vcmp.eq.s32.totalorder %v819, 0
    %vm976 = vcmp.eq.s32.totalorder %v826, 0
    %vm977 = vcmp.eq.s32.totalorder %v833, 0
    %vm978 = vcmp.eq.s32.totalorder %v840, 0
    %vm979 = vcmp.eq.s32.totalorder %v847, 0
    %vm980 = vcmp.eq.s32.totalorder %v854, 0
    %vm981 = vcmp.eq.s32.totalorder %v861, 0
    %vm982 = vcmp.eq.s32.totalorder %v868, 0
    %vm983 = vcmp.eq.s32.totalorder %v875, 0
    %vm984 = vcmp.eq.s32.totalorder %v882, 0
    %vm985 = vcmp.eq.s32.totalorder %v889, 0
    %vm986 = vcmp.eq.s32.totalorder %v224, 127
    %vm987 = vcmp.eq.s32.totalorder %v231, 127
    %vm988 = vcmp.eq.s32.totalorder %v238, 127
    %vm989 = vcmp.eq.s32.totalorder %v245, 127
    %vm990 = vcmp.eq.s32.totalorder %v252, 127
    %vm991 = vcmp.eq.s32.totalorder %v259, 127
    %vm992 = vcmp.eq.s32.totalorder %v266, 127
    %vm993 = vcmp.eq.s32.totalorder %v273, 127
    %vm994 = vcmp.eq.s32.totalorder %v280, 127
    %vm995 = vcmp.eq.s32.totalorder %v287, 127
    %vm996 = vcmp.eq.s32.totalorder %v294, 127
    %vm997 = vcmp.eq.s32.totalorder %v301, 127
    %vm998 = vcmp.eq.s32.totalorder %v308, 127
    %vm999 = vcmp.eq.s32.totalorder %v315, 127
    %vm1000 = vcmp.eq.s32.totalorder %v322, 127
    %vm1001 = vcmp.eq.s32.totalorder %v329, 127
    %vm1002 = vcmp.eq.s32.totalorder %v336, 127
    %vm1003 = vcmp.eq.s32.totalorder %v343, 127
    %vm1004 = vcmp.eq.s32.totalorder %v350, 127
    %vm1005 = vcmp.eq.s32.totalorder %v357, 127
    %vm1006 = vcmp.eq.s32.totalorder %v364, 127
    %vm1007 = vcmp.eq.s32.totalorder %v371, 127
    %vm1008 = vcmp.eq.s32.totalorder %v378, 127
    %vm1009 = vcmp.eq.s32.totalorder %v385, 127
    %vm1010 = vcmp.eq.s32.totalorder %v392, 127
    %vm1011 = vcmp.eq.s32.totalorder %v399, 127
    %vm1012 = vcmp.eq.s32.totalorder %v406, 127
    %vm1013 = vcmp.eq.s32.totalorder %v413, 127
    %vm1014 = vcmp.eq.s32.totalorder %v420, 127
    %vm1015 = vcmp.eq.s32.totalorder %v427, 127
    %vm1016 = vcmp.eq.s32.totalorder %v434, 127
    %vm1017 = vcmp.eq.s32.totalorder %v441, 127
    %vm1018 = vcmp.eq.s32.totalorder %v448, 127
    %vm1019 = vcmp.eq.s32.totalorder %v455, 127
    %vm1020 = vcmp.eq.s32.totalorder %v462, 127
    %vm1021 = vcmp.eq.s32.totalorder %v469, 127
    %vm1022 = vcmp.eq.s32.totalorder %v476, 127
    %vm1023 = vcmp.eq.s32.totalorder %v483, 127
    %vm1024 = vcmp.eq.s32.totalorder %v490, 127
    %vm1025 = vcmp.eq.s32.totalorder %v497, 127
    %vm1026 = vcmp.eq.s32.totalorder %v504, 127
    %vm1027 = vcmp.eq.s32.totalorder %v511, 127
    %vm1028 = vcmp.eq.s32.totalorder %v518, 127
    %vm1029 = vcmp.eq.s32.totalorder %v525, 127
    %vm1030 = vcmp.eq.s32.totalorder %v532, 127
    %vm1031 = vcmp.eq.s32.totalorder %v539, 127
    %vm1032 = vcmp.eq.s32.totalorder %v546, 127
    %vm1033 = vcmp.eq.s32.totalorder %v553, 127
    %vm1034 = vcmp.eq.s32.totalorder %v560, 127
    %vm1035 = vcmp.eq.s32.totalorder %v567, 127
    %vm1036 = vcmp.eq.s32.totalorder %v574, 127
    %vm1037 = vcmp.eq.s32.totalorder %v581, 127
    %vm1038 = vcmp.eq.s32.totalorder %v588, 127
    %vm1039 = vcmp.eq.s32.totalorder %v595, 127
    %vm1040 = vcmp.eq.s32.totalorder %v602, 127
    %vm1041 = vcmp.eq.s32.totalorder %v609, 127
    %vm1042 = vcmp.eq.s32.totalorder %v616, 127
    %vm1043 = vcmp.eq.s32.totalorder %v623, 127
    %vm1044 = vcmp.eq.s32.totalorder %v630, 127
    %vm1045 = vcmp.eq.s32.totalorder %v637, 127
    %vm1046 = vcmp.eq.s32.totalorder %v644, 127
    %vm1047 = vcmp.eq.s32.totalorder %v651, 127
    %vm1048 = vcmp.eq.s32.totalorder %v658, 127
    %vm1049 = vcmp.eq.s32.totalorder %v665, 127
    %vm1050 = vcmp.eq.s32.totalorder %v672, 127
    %vm1051 = vcmp.eq.s32.totalorder %v679, 127
    %vm1052 = vcmp.eq.s32.totalorder %v686, 127
    %vm1053 = vcmp.eq.s32.totalorder %v693, 127
    %vm1054 = vcmp.eq.s32.totalorder %v700, 127
    %vm1055 = vcmp.eq.s32.totalorder %v707, 127
    %vm1056 = vcmp.eq.s32.totalorder %v714, 127
    %vm1057 = vcmp.eq.s32.totalorder %v721, 127
    %vm1058 = vcmp.eq.s32.totalorder %v728, 127
    %vm1059 = vcmp.eq.s32.totalorder %v735, 127
    %vm1060 = vcmp.eq.s32.totalorder %v742, 127
    %vm1061 = vcmp.eq.s32.totalorder %v749, 127
    %vm1062 = vcmp.eq.s32.totalorder %v756, 127
    %vm1063 = vcmp.eq.s32.totalorder %v763, 127
    %vm1064 = vcmp.eq.s32.totalorder %v770, 127
    %vm1065 = vcmp.eq.s32.totalorder %v777, 127
    %vm1066 = vcmp.eq.s32.totalorder %v784, 127
    %vm1067 = vcmp.eq.s32.totalorder %v791, 127
    %vm1068 = vcmp.eq.s32.totalorder %v798, 127
    %vm1069 = vcmp.eq.s32.totalorder %v805, 127
    %vm1070 = vcmp.eq.s32.totalorder %v812, 127
    %vm1071 = vcmp.eq.s32.totalorder %v819, 127
    %vm1072 = vcmp.eq.s32.totalorder %v826, 127
    %vm1073 = vcmp.eq.s32.totalorder %v833, 127
    %vm1074 = vcmp.eq.s32.totalorder %v840, 127
    %vm1075 = vcmp.eq.s32.totalorder %v847, 127
    %vm1076 = vcmp.eq.s32.totalorder %v854, 127
    %vm1077 = vcmp.eq.s32.totalorder %v861, 127
    %vm1078 = vcmp.eq.s32.totalorder %v868, 127
    %vm1079 = vcmp.eq.s32.totalorder %v875, 127
    %vm1080 = vcmp.eq.s32.totalorder %v882, 127
    %vm1081 = vcmp.eq.s32.totalorder %v889, 127
    %v1082 = vlaneseq
    %v1083 = vand.u32 %v1082, 127
    %vm1084 = vcmp.eq.s32.totalorder %v1083, 0
    %vm1085 = vcmp.eq.s32.totalorder %v1083, 127
    %v1086 = vrot.slane %v25, 7
    %v1087 = vrot.slane %v26, 7
    %v1088 = vrot.slane %v27, 7
    %v1089 = vrot.slane %v28, 7
    %v1090 = vrot.slane %v29, 7
    %v1091 = vrot.slane %v30, 7
    %v1092 = vrot.slane %v31, 7
    %v1093 = vrot.slane %v32, 7
    %v1094 = vrot.slane %v33, 7
    %v1095 = vrot.slane %v34, 7
    %v1096 = vrot.slane %v35, 7
    %v1097 = vrot.slane %v36, 7
    %v1098 = vrot.slane %v37, 7
    %v1099 = vrot.slane %v38, 7
    %v1100 = vrot.slane %v39, 7
    %v1101 = vrot.slane %v40, 7
    %v1102 = vrot.slane %v41, 7
    %v1103 = vrot.slane %v42, 7
    %v1104 = vrot.slane %v43, 7
    %v1105 = vrot.slane %v44, 7
    %v1106 = vrot.slane %v45, 7
    %v1107 = vrot.slane %v46, 7
    %v1108 = vrot.slane %v47, 7
    %v1109 = vrot.slane %v48, 7
    %v1110 = vrot.slane %v49, 7
    %v1111 = vrot.slane %v50, 7
    %v1112 = vrot.slane %v51, 7
    %v1113 = vrot.slane %v52, 7
    %v1114 = vrot.slane %v53, 7
    %v1115 = vrot.slane %v54, 7
    %v1116 = vrot.slane %v55, 7
    %v1117 = vrot.slane %v56, 7
    %v1118 = vrot.slane %v57, 7
    %v1119 = vrot.slane %v58, 7
    %v1120 = vrot.slane %v59, 7
    %v1121 = vrot.slane %v60, 7
    %v1122 = vrot.slane %v61, 7
    %v1123 = vrot.slane %v62, 7
    %v1124 = vrot.slane %v63, 7
    %v1125 = vrot.slane %v64, 7
    %v1126 = vrot.slane %v65, 7
    %v1127 = vrot.slane %v66, 7
    %v1128 = vrot.slane %v67, 7
    %v1129 = vrot.slane %v68, 7
    %v1130 = vrot.slane %v69, 7
    %v1131 = vrot.slane %v70, 7
    %v1132 = vrot.slane %v71, 7
    %v1133 = vrot.slane %v72, 7
    %v1134 = vrot.slane %v73, 7
    %v1135 = vrot.slane %v74, 7
    %v1136 = vrot.slane %v75, 7
    %v1137 = vrot.slane %v76, 7
    %v1138 = vrot.slane %v77, 7
    %v1139 = vrot.slane %v78, 7
    %v1140 = vrot.slane %v79, 7
    %v1141 = vrot.slane %v80, 7
    %v1142 = vrot.slane %v81, 7
    %v1143 = vrot.slane %v82, 7
    %v1144 = vrot.slane %v83, 7
    %v1145 = vrot.slane %v84, 7
    %v1146 = vrot.slane %v85, 7
    %v1147 = vrot.slane %v86, 7
    %v1148 = vrot.slane %v87, 7
    %v1149 = vrot.slane %v88, 7
    %v1150 = vrot.slane %v89, 7
    %v1151 = vrot.slane %v90, 7
    %v1152 = vrot.slane %v91, 7
    %v1153 = vrot.slane %v92, 7
    %v1154 = vrot.slane %v93, 7
    %v1155 = vrot.slane %v94, 7
    %v1156 = vrot.slane %v95, 7
    %v1157 = vrot.slane %v96, 7
    %v1158 = vrot.slane %v97, 7
    %v1159 = vrot.slane %v98, 7
    %v1160 = vrot.slane %v99, 7
    %v1161 = vrot.slane %v100, 7
    %v1162 = vrot.slane %v101, 7
    %v1163 = vrot.slane %v102, 7
    %v1164 = vrot.slane %v103, 7
    %v1165 = vrot.slane %v104, 7
    %v1166 = vrot.slane %v105, 7
    %v1167 = vrot.slane %v106, 7
    %v1168 = vrot.slane %v107, 7
    %v1169 = vrot.slane %v108, 7
    %v1170 = vrot.slane %v109, 7
    %v1171 = vrot.slane %v110, 7
    %v1172 = vrot.slane %v111, 7
    %v1173 = vrot.slane %v112, 7
    %v1174 = vrot.slane %v113, 7
    %v1175 = vrot.slane %v114, 7
    %v1176 = vrot.slane %v115, 7
    %v1177 = vrot.slane %v116, 7
    %v1178 = vrot.slane %v117, 7
    %v1179 = vrot.slane %v118, 7
    %v1180 = vrot.slane %v119, 7
    %v1181 = vrot.slane %v120, 7
    %vm1182 = vcmp.lt.s32.totalorder %v122, 1
    %v1183 = vsel %vm1182, %v1180, %v1181
    %v1184 = vsel %vm1182, %v1179, %v1180
    %v1185 = vsel %vm1182, %v1178, %v1179
    %v1186 = vsel %vm1182, %v1177, %v1178
    %v1187 = vsel %vm1182, %v1176, %v1177
    %v1188 = vsel %vm1182, %v1175, %v1176
    %v1189 = vsel %vm1182, %v1174, %v1175
    %v1190 = vsel %vm1182, %v1173, %v1174
    %v1191 = vsel %vm1182, %v1172, %v1173
    %v1192 = vsel %vm1182, %v1171, %v1172
    %v1193 = vsel %vm1182, %v1170, %v1171
    %v1194 = vsel %vm1182, %v1169, %v1170
    %v1195 = vsel %vm1182, %v1168, %v1169
    %v1196 = vsel %vm1182, %v1167, %v1168
    %v1197 = vsel %vm1182, %v1166, %v1167
    %v1198 = vsel %vm1182, %v1165, %v1166
    %v1199 = vsel %vm1182, %v1164, %v1165
    %v1200 = vsel %vm1182, %v1163, %v1164
    %v1201 = vsel %vm1182, %v1162, %v1163
    %v1202 = vsel %vm1182, %v1161, %v1162
    %v1203 = vsel %vm1182, %v1160, %v1161
    %v1204 = vsel %vm1182, %v1159, %v1160
    %v1205 = vsel %vm1182, %v1158, %v1159
    %v1206 = vsel %vm1182, %v1157, %v1158
    %v1207 = vsel %vm1182, %v1156, %v1157
    %v1208 = vsel %vm1182, %v1155, %v1156
    %v1209 = vsel %vm1182, %v1154, %v1155
    %v1210 = vsel %vm1182, %v1153, %v1154
    %v1211 = vsel %vm1182, %v1152, %v1153
    %v1212 = vsel %vm1182, %v1151, %v1152
    %v1213 = vsel %vm1182, %v1150, %v1151
    %v1214 = vsel %vm1182, %v1149, %v1150
    %v1215 = vsel %vm1182, %v1148, %v1149
    %v1216 = vsel %vm1182, %v1147, %v1148
    %v1217 = vsel %vm1182, %v1146, %v1147
    %v1218 = vsel %vm1182, %v1145, %v1146
    %v1219 = vsel %vm1182, %v1144, %v1145
    %v1220 = vsel %vm1182, %v1143, %v1144
    %v1221 = vsel %vm1182, %v1142, %v1143
    %v1222 = vsel %vm1182, %v1141, %v1142
    %v1223 = vsel %vm1182, %v1140, %v1141
    %v1224 = vsel %vm1182, %v1139, %v1140
    %v1225 = vsel %vm1182, %v1138, %v1139
    %v1226 = vsel %vm1182, %v1137, %v1138
    %v1227 = vsel %vm1182, %v1136, %v1137
    %v1228 = vsel %vm1182, %v1135, %v1136
    %v1229 = vsel %vm1182, %v1134, %v1135
    %v1230 = vsel %vm1182, %v1133, %v1134
    %v1231 = vsel %vm1182, %v1132, %v1133
    %v1232 = vsel %vm1182, %v1131, %v1132
    %v1233 = vsel %vm1182, %v1130, %v1131
    %v1234 = vsel %vm1182, %v1129, %v1130
    %v1235 = vsel %vm1182, %v1128, %v1129
    %v1236 = vsel %vm1182, %v1127, %v1128
    %v1237 = vsel %vm1182, %v1126, %v1127
    %v1238 = vsel %vm1182, %v1125, %v1126
    %v1239 = vsel %vm1182, %v1124, %v1125
    %v1240 = vsel %vm1182, %v1123, %v1124
    %v1241 = vsel %vm1182, %v1122, %v1123
    %v1242 = vsel %vm1182, %v1121, %v1122
    %v1243 = vsel %vm1182, %v1120, %v1121
    %v1244 = vsel %vm1182, %v1119, %v1120
    %v1245 = vsel %vm1182, %v1118, %v1119
    %v1246 = vsel %vm1182, %v1117, %v1118
    %v1247 = vsel %vm1182, %v1116, %v1117
    %v1248 = vsel %vm1182, %v1115, %v1116
    %v1249 = vsel %vm1182, %v1114, %v1115
    %v1250 = vsel %vm1182, %v1113, %v1114
    %v1251 = vsel %vm1182, %v1112, %v1113
    %v1252 = vsel %vm1182, %v1111, %v1112
    %v1253 = vsel %vm1182, %v1110, %v1111
    %v1254 = vsel %vm1182, %v1109, %v1110
    %v1255 = vsel %vm1182, %v1108, %v1109
    %v1256 = vsel %vm1182, %v1107, %v1108
    %v1257 = vsel %vm1182, %v1106, %v1107
    %v1258 = vsel %vm1182, %v1105, %v1106
    %v1259 = vsel %vm1182, %v1104, %v1105
    %v1260 = vsel %vm1182, %v1103, %v1104
    %v1261 = vsel %vm1182, %v1102, %v1103
    %v1262 = vsel %vm1182, %v1101, %v1102
    %v1263 = vsel %vm1182, %v1100, %v1101
    %v1264 = vsel %vm1182, %v1099, %v1100
    %v1265 = vsel %vm1182, %v1098, %v1099
    %v1266 = vsel %vm1182, %v1097, %v1098
    %v1267 = vsel %vm1182, %v1096, %v1097
    %v1268 = vsel %vm1182, %v1095, %v1096
    %v1269 = vsel %vm1182, %v1094, %v1095
    %v1270 = vsel %vm1182, %v1093, %v1094
    %v1271 = vsel %vm1182, %v1092, %v1093
    %v1272 = vsel %vm1182, %v1091, %v1092
    %v1273 = vsel %vm1182, %v1090, %v1091
    %v1274 = vsel %vm1182, %v1089, %v1090
    %v1275 = vsel %vm1182, %v1088, %v1089
    %v1276 = vsel %vm1182, %v1087, %v1088
    %v1277 = vsel %vm1182, %v1086, %v1087
    %v1278 = vsel %vm1182, %v1181, %v1086
    %v1279 = vsel %vm890, 1, 0
    %v1280 = vsel %vm891, 1, 0
    %v1281 = vsel %vm892, 1, 0
    %v1282 = vsel %vm893, 1, 0
    %v1283 = vsel %vm894, 1, 0
    %v1284 = vsel %vm895, 1, 0
    %v1285 = vsel %vm896, 1, 0
    %v1286 = vsel %vm897, 1, 0
    %v1287 = vsel %vm898, 1, 0
    %v1288 = vsel %vm899, 1, 0
    %v1289 = vsel %vm900, 1, 0
    %v1290 = vsel %vm901, 1, 0
    %v1291 = vsel %vm902, 1, 0
    %v1292 = vsel %vm903, 1, 0
    %v1293 = vsel %vm904, 1, 0
    %v1294 = vsel %vm905, 1, 0
    %v1295 = vsel %vm906, 1, 0
    %v1296 = vsel %vm907, 1, 0
    %v1297 = vsel %vm908, 1, 0
    %v1298 = vsel %vm909, 1, 0
    %v1299 = vsel %vm910, 1, 0
    %v1300 = vsel %vm911, 1, 0
    %v1301 = vsel %vm912, 1, 0
    %v1302 = vsel %vm913, 1, 0
    %v1303 = vsel %vm914, 1, 0
    %v1304 = vsel %vm915, 1, 0
    %v1305 = vsel %vm916, 1, 0
    %v1306 = vsel %vm917, 1, 0
    %v1307 = vsel %vm918, 1, 0
    %v1308 = vsel %vm919, 1, 0
    %v1309 = vsel %vm920, 1, 0
    %v1310 = vsel %vm921, 1, 0
    %v1311 = vsel %vm922, 1, 0
    %v1312 = vsel %vm923, 1, 0
    %v1313 = vsel %vm924, 1, 0
    %v1314 = vsel %vm925, 1, 0
    %v1315 = vsel %vm926, 1, 0
    %v1316 = vsel %vm927, 1, 0
    %v1317 = vsel %vm928, 1, 0
    %v1318 = vsel %vm929, 1, 0
    %v1319 = vsel %vm930, 1, 0
    %v1320 = vsel %vm931, 1, 0
    %v1321 = vsel %vm932, 1, 0
    %v1322 = vsel %vm933, 1, 0
    %v1323 = vsel %vm934, 1, 0
    %v1324 = vsel %vm935, 1, 0
    %v1325 = vsel %vm936, 1, 0
    %v1326 = vsel %vm937, 1, 0
    %v1327 = vsel %vm938, 1, 0
    %v1328 = vsel %vm939, 1, 0
    %v1329 = vsel %vm940, 1, 0
    %v1330 = vsel %vm941, 1, 0
    %v1331 = vsel %vm942, 1, 0
    %v1332 = vsel %vm943, 1, 0
    %v1333 = vsel %vm944, 1, 0
    %v1334 = vsel %vm945, 1, 0
    %v1335 = vsel %vm946, 1, 0
    %v1336 = vsel %vm947, 1, 0
    %v1337 = vsel %vm948, 1, 0
    %v1338 = vsel %vm949, 1, 0
    %v1339 = vsel %vm950, 1, 0
    %v1340 = vsel %vm951, 1, 0
    %v1341 = vsel %vm952, 1, 0
    %v1342 = vsel %vm953, 1, 0
    %v1343 = vsel %vm954, 1, 0
    %v1344 = vsel %vm955, 1, 0
    %v1345 = vsel %vm956, 1, 0
    %v1346 = vsel %vm957, 1, 0
    %v1347 = vsel %vm958, 1, 0
    %v1348 = vsel %vm959, 1, 0
    %v1349 = vsel %vm960, 1, 0
    %v1350 = vsel %vm961, 1, 0
    %v1351 = vsel %vm962, 1, 0
    %v1352 = vsel %vm963, 1, 0
    %v1353 = vsel %vm964, 1, 0
    %v1354 = vsel %vm965, 1, 0
    %v1355 = vsel %vm966, 1, 0
    %v1356 = vsel %vm967, 1, 0
    %v1357 = vsel %vm968, 1, 0
    %v1358 = vsel %vm969, 1, 0
    %v1359 = vsel %vm970, 1, 0
    %v1360 = vsel %vm971, 1, 0
    %v1361 = vsel %vm972, 1, 0
    %v1362 = vsel %vm973, 1, 0
    %v1363 = vsel %vm974, 1, 0
    %v1364 = vsel %vm975, 1, 0
    %v1365 = vsel %vm976, 1, 0
    %v1366 = vsel %vm977, 1, 0
    %v1367 = vsel %vm978, 1, 0
    %v1368 = vsel %vm979, 1, 0
    %v1369 = vsel %vm980, 1, 0
    %v1370 = vsel %vm981, 1, 0
    %v1371 = vsel %vm982, 1, 0
    %v1372 = vsel %vm983, 1, 0
    %v1373 = vsel %vm984, 1, 0
    %v1374 = vsel %vm985, 1, 0
    %vm1375 = vcmp.eq.s32.totalorder %v1279, 1
    %vm1376 = vcmp.eq.s32.totalorder %v1280, 1
    %vm1377 = vcmp.eq.s32.totalorder %v1281, 1
    %vm1378 = vcmp.eq.s32.totalorder %v1282, 1
    %vm1379 = vcmp.eq.s32.totalorder %v1283, 1
    %vm1380 = vcmp.eq.s32.totalorder %v1284, 1
    %vm1381 = vcmp.eq.s32.totalorder %v1285, 1
    %vm1382 = vcmp.eq.s32.totalorder %v1286, 1
    %vm1383 = vcmp.eq.s32.totalorder %v1287, 1
    %vm1384 = vcmp.eq.s32.totalorder %v1288, 1
    %vm1385 = vcmp.eq.s32.totalorder %v1289, 1
    %vm1386 = vcmp.eq.s32.totalorder %v1290, 1
    %vm1387 = vcmp.eq.s32.totalorder %v1291, 1
    %vm1388 = vcmp.eq.s32.totalorder %v1292, 1
    %vm1389 = vcmp.eq.s32.totalorder %v1293, 1
    %vm1390 = vcmp.eq.s32.totalorder %v1294, 1
    %vm1391 = vcmp.eq.s32.totalorder %v1295, 1
    %vm1392 = vcmp.eq.s32.totalorder %v1296, 1
    %vm1393 = vcmp.eq.s32.totalorder %v1297, 1
    %vm1394 = vcmp.eq.s32.totalorder %v1298, 1
    %vm1395 = vcmp.eq.s32.totalorder %v1299, 1
    %vm1396 = vcmp.eq.s32.totalorder %v1300, 1
    %vm1397 = vcmp.eq.s32.totalorder %v1301, 1
    %vm1398 = vcmp.eq.s32.totalorder %v1302, 1
    %vm1399 = vcmp.eq.s32.totalorder %v1303, 1
    %vm1400 = vcmp.eq.s32.totalorder %v1304, 1
    %vm1401 = vcmp.eq.s32.totalorder %v1305, 1
    %vm1402 = vcmp.eq.s32.totalorder %v1306, 1
    %vm1403 = vcmp.eq.s32.totalorder %v1307, 1
    %vm1404 = vcmp.eq.s32.totalorder %v1308, 1
    %vm1405 = vcmp.eq.s32.totalorder %v1309, 1
    %vm1406 = vcmp.eq.s32.totalorder %v1310, 1
    %vm1407 = vcmp.eq.s32.totalorder %v1311, 1
    %vm1408 = vcmp.eq.s32.totalorder %v1312, 1
    %vm1409 = vcmp.eq.s32.totalorder %v1313, 1
    %vm1410 = vcmp.eq.s32.totalorder %v1314, 1
    %vm1411 = vcmp.eq.s32.totalorder %v1315, 1
    %vm1412 = vcmp.eq.s32.totalorder %v1316, 1
    %vm1413 = vcmp.eq.s32.totalorder %v1317, 1
    %vm1414 = vcmp.eq.s32.totalorder %v1318, 1
    %vm1415 = vcmp.eq.s32.totalorder %v1319, 1
    %vm1416 = vcmp.eq.s32.totalorder %v1320, 1
    %vm1417 = vcmp.eq.s32.totalorder %v1321, 1
    %vm1418 = vcmp.eq.s32.totalorder %v1322, 1
    %vm1419 = vcmp.eq.s32.totalorder %v1323, 1
    %vm1420 = vcmp.eq.s32.totalorder %v1324, 1
    %vm1421 = vcmp.eq.s32.totalorder %v1325, 1
    %vm1422 = vcmp.eq.s32.totalorder %v1326, 1
    %vm1423 = vcmp.eq.s32.totalorder %v1327, 1
    %vm1424 = vcmp.eq.s32.totalorder %v1328, 1
    %vm1425 = vcmp.eq.s32.totalorder %v1329, 1
    %vm1426 = vcmp.eq.s32.totalorder %v1330, 1
    %vm1427 = vcmp.eq.s32.totalorder %v1331, 1
    %vm1428 = vcmp.eq.s32.totalorder %v1332, 1
    %vm1429 = vcmp.eq.s32.totalorder %v1333, 1
    %vm1430 = vcmp.eq.s32.totalorder %v1334, 1
    %vm1431 = vcmp.eq.s32.totalorder %v1335, 1
    %vm1432 = vcmp.eq.s32.totalorder %v1336, 1
    %vm1433 = vcmp.eq.s32.totalorder %v1337, 1
    %vm1434 = vcmp.eq.s32.totalorder %v1338, 1
    %vm1435 = vcmp.eq.s32.totalorder %v1339, 1
    %vm1436 = vcmp.eq.s32.totalorder %v1340, 1
    %vm1437 = vcmp.eq.s32.totalorder %v1341, 1
    %vm1438 = vcmp.eq.s32.totalorder %v1342, 1
    %vm1439 = vcmp.eq.s32.totalorder %v1343, 1
    %vm1440 = vcmp.eq.s32.totalorder %v1344, 1
    %vm1441 = vcmp.eq.s32.totalorder %v1345, 1
    %vm1442 = vcmp.eq.s32.totalorder %v1346, 1
    %vm1443 = vcmp.eq.s32.totalorder %v1347, 1
    %vm1444 = vcmp.eq.s32.totalorder %v1348, 1
    %vm1445 = vcmp.eq.s32.totalorder %v1349, 1
    %vm1446 = vcmp.eq.s32.totalorder %v1350, 1
    %vm1447 = vcmp.eq.s32.totalorder %v1351, 1
    %vm1448 = vcmp.eq.s32.totalorder %v1352, 1
    %vm1449 = vcmp.eq.s32.totalorder %v1353, 1
    %vm1450 = vcmp.eq.s32.totalorder %v1354, 1
    %vm1451 = vcmp.eq.s32.totalorder %v1355, 1
    %vm1452 = vcmp.eq.s32.totalorder %v1356, 1
    %vm1453 = vcmp.eq.s32.totalorder %v1357, 1
    %vm1454 = vcmp.eq.s32.totalorder %v1358, 1
    %vm1455 = vcmp.eq.s32.totalorder %v1359, 1
    %vm1456 = vcmp.eq.s32.totalorder %v1360, 1
    %vm1457 = vcmp.eq.s32.totalorder %v1361, 1
    %vm1458 = vcmp.eq.s32.totalorder %v1362, 1
    %vm1459 = vcmp.eq.s32.totalorder %v1363, 1
    %vm1460 = vcmp.eq.s32.totalorder %v1364, 1
    %vm1461 = vcmp.eq.s32.totalorder %v1365, 1
    %vm1462 = vcmp.eq.s32.totalorder %v1366, 1
    %vm1463 = vcmp.eq.s32.totalorder %v1367, 1
    %vm1464 = vcmp.eq.s32.totalorder %v1368, 1
    %vm1465 = vcmp.eq.s32.totalorder %v1369, 1
    %vm1466 = vcmp.eq.s32.totalorder %v1370, 1
    %vm1467 = vcmp.eq.s32.totalorder %v1371, 1
    %vm1468 = vcmp.eq.s32.totalorder %v1372, 1
    %vm1469 = vcmp.eq.s32.totalorder %v1373, 1
    %vm1470 = vcmp.eq.s32.totalorder %v1374, 1
    %v1471 = vsel %vm1375, 0.0, %v1278
    %v1472 = vsel %vm1376, 0.0, %v1277
    %v1473 = vsel %vm1377, 0.0, %v1276
    %v1474 = vsel %vm1378, 0.0, %v1275
    %v1475 = vsel %vm1379, 0.0, %v1274
    %v1476 = vsel %vm1380, 0.0, %v1273
    %v1477 = vsel %vm1381, 0.0, %v1272
    %v1478 = vsel %vm1382, 0.0, %v1271
    %v1479 = vsel %vm1383, 0.0, %v1270
    %v1480 = vsel %vm1384, 0.0, %v1269
    %v1481 = vsel %vm1385, 0.0, %v1268
    %v1482 = vsel %vm1386, 0.0, %v1267
    %v1483 = vsel %vm1387, 0.0, %v1266
    %v1484 = vsel %vm1388, 0.0, %v1265
    %v1485 = vsel %vm1389, 0.0, %v1264
    %v1486 = vsel %vm1390, 0.0, %v1263
    %v1487 = vsel %vm1391, 0.0, %v1262
    %v1488 = vsel %vm1392, 0.0, %v1261
    %v1489 = vsel %vm1393, 0.0, %v1260
    %v1490 = vsel %vm1394, 0.0, %v1259
    %v1491 = vsel %vm1395, 0.0, %v1258
    %v1492 = vsel %vm1396, 0.0, %v1257
    %v1493 = vsel %vm1397, 0.0, %v1256
    %v1494 = vsel %vm1398, 0.0, %v1255
    %v1495 = vsel %vm1399, 0.0, %v1254
    %v1496 = vsel %vm1400, 0.0, %v1253
    %v1497 = vsel %vm1401, 0.0, %v1252
    %v1498 = vsel %vm1402, 0.0, %v1251
    %v1499 = vsel %vm1403, 0.0, %v1250
    %v1500 = vsel %vm1404, 0.0, %v1249
    %v1501 = vsel %vm1405, 0.0, %v1248
    %v1502 = vsel %vm1406, 0.0, %v1247
    %v1503 = vsel %vm1407, 0.0, %v1246
    %v1504 = vsel %vm1408, 0.0, %v1245
    %v1505 = vsel %vm1409, 0.0, %v1244
    %v1506 = vsel %vm1410, 0.0, %v1243
    %v1507 = vsel %vm1411, 0.0, %v1242
    %v1508 = vsel %vm1412, 0.0, %v1241
    %v1509 = vsel %vm1413, 0.0, %v1240
    %v1510 = vsel %vm1414, 0.0, %v1239
    %v1511 = vsel %vm1415, 0.0, %v1238
    %v1512 = vsel %vm1416, 0.0, %v1237
    %v1513 = vsel %vm1417, 0.0, %v1236
    %v1514 = vsel %vm1418, 0.0, %v1235
    %v1515 = vsel %vm1419, 0.0, %v1234
    %v1516 = vsel %vm1420, 0.0, %v1233
    %v1517 = vsel %vm1421, 0.0, %v1232
    %v1518 = vsel %vm1422, 0.0, %v1231
    %v1519 = vsel %vm1423, 0.0, %v1230
    %v1520 = vsel %vm1424, 0.0, %v1229
    %v1521 = vsel %vm1425, 0.0, %v1228
    %v1522 = vsel %vm1426, 0.0, %v1227
    %v1523 = vsel %vm1427, 0.0, %v1226
    %v1524 = vsel %vm1428, 0.0, %v1225
    %v1525 = vsel %vm1429, 0.0, %v1224
    %v1526 = vsel %vm1430, 0.0, %v1223
    %v1527 = vsel %vm1431, 0.0, %v1222
    %v1528 = vsel %vm1432, 0.0, %v1221
    %v1529 = vsel %vm1433, 0.0, %v1220
    %v1530 = vsel %vm1434, 0.0, %v1219
    %v1531 = vsel %vm1435, 0.0, %v1218
    %v1532 = vsel %vm1436, 0.0, %v1217
    %v1533 = vsel %vm1437, 0.0, %v1216
    %v1534 = vsel %vm1438, 0.0, %v1215
    %v1535 = vsel %vm1439, 0.0, %v1214
    %v1536 = vsel %vm1440, 0.0, %v1213
    %v1537 = vsel %vm1441, 0.0, %v1212
    %v1538 = vsel %vm1442, 0.0, %v1211
    %v1539 = vsel %vm1443, 0.0, %v1210
    %v1540 = vsel %vm1444, 0.0, %v1209
    %v1541 = vsel %vm1445, 0.0, %v1208
    %v1542 = vsel %vm1446, 0.0, %v1207
    %v1543 = vsel %vm1447, 0.0, %v1206
    %v1544 = vsel %vm1448, 0.0, %v1205
    %v1545 = vsel %vm1449, 0.0, %v1204
    %v1546 = vsel %vm1450, 0.0, %v1203
    %v1547 = vsel %vm1451, 0.0, %v1202
    %v1548 = vsel %vm1452, 0.0, %v1201
    %v1549 = vsel %vm1453, 0.0, %v1200
    %v1550 = vsel %vm1454, 0.0, %v1199
    %v1551 = vsel %vm1455, 0.0, %v1198
    %v1552 = vsel %vm1456, 0.0, %v1197
    %v1553 = vsel %vm1457, 0.0, %v1196
    %v1554 = vsel %vm1458, 0.0, %v1195
    %v1555 = vsel %vm1459, 0.0, %v1194
    %v1556 = vsel %vm1460, 0.0, %v1193
    %v1557 = vsel %vm1461, 0.0, %v1192
    %v1558 = vsel %vm1462, 0.0, %v1191
    %v1559 = vsel %vm1463, 0.0, %v1190
    %v1560 = vsel %vm1464, 0.0, %v1189
    %v1561 = vsel %vm1465, 0.0, %v1188
    %v1562 = vsel %vm1466, 0.0, %v1187
    %v1563 = vsel %vm1467, 0.0, %v1186
    %v1564 = vsel %vm1468, 0.0, %v1185
    %v1565 = vsel %vm1469, 0.0, %v1184
    %v1566 = vsel %vm1470, 0.0, %v1183
    %v1567 = vrot.slane %v25, 1
    %v1568 = vrot.slane %v26, 1
    %v1569 = vrot.slane %v27, 1
    %v1570 = vrot.slane %v28, 1
    %v1571 = vrot.slane %v29, 1
    %v1572 = vrot.slane %v30, 1
    %v1573 = vrot.slane %v31, 1
    %v1574 = vrot.slane %v32, 1
    %v1575 = vrot.slane %v33, 1
    %v1576 = vrot.slane %v34, 1
    %v1577 = vrot.slane %v35, 1
    %v1578 = vrot.slane %v36, 1
    %v1579 = vrot.slane %v37, 1
    %v1580 = vrot.slane %v38, 1
    %v1581 = vrot.slane %v39, 1
    %v1582 = vrot.slane %v40, 1
    %v1583 = vrot.slane %v41, 1
    %v1584 = vrot.slane %v42, 1
    %v1585 = vrot.slane %v43, 1
    %v1586 = vrot.slane %v44, 1
    %v1587 = vrot.slane %v45, 1
    %v1588 = vrot.slane %v46, 1
    %v1589 = vrot.slane %v47, 1
    %v1590 = vrot.slane %v48, 1
    %v1591 = vrot.slane %v49, 1
    %v1592 = vrot.slane %v50, 1
    %v1593 = vrot.slane %v51, 1
    %v1594 = vrot.slane %v52, 1
    %v1595 = vrot.slane %v53, 1
    %v1596 = vrot.slane %v54, 1
    %v1597 = vrot.slane %v55, 1
    %v1598 = vrot.slane %v56, 1
    %v1599 = vrot.slane %v57, 1
    %v1600 = vrot.slane %v58, 1
    %v1601 = vrot.slane %v59, 1
    %v1602 = vrot.slane %v60, 1
    %v1603 = vrot.slane %v61, 1
    %v1604 = vrot.slane %v62, 1
    %v1605 = vrot.slane %v63, 1
    %v1606 = vrot.slane %v64, 1
    %v1607 = vrot.slane %v65, 1
    %v1608 = vrot.slane %v66, 1
    %v1609 = vrot.slane %v67, 1
    %v1610 = vrot.slane %v68, 1
    %v1611 = vrot.slane %v69, 1
    %v1612 = vrot.slane %v70, 1
    %v1613 = vrot.slane %v71, 1
    %v1614 = vrot.slane %v72, 1
    %v1615 = vrot.slane %v73, 1
    %v1616 = vrot.slane %v74, 1
    %v1617 = vrot.slane %v75, 1
    %v1618 = vrot.slane %v76, 1
    %v1619 = vrot.slane %v77, 1
    %v1620 = vrot.slane %v78, 1
    %v1621 = vrot.slane %v79, 1
    %v1622 = vrot.slane %v80, 1
    %v1623 = vrot.slane %v81, 1
    %v1624 = vrot.slane %v82, 1
    %v1625 = vrot.slane %v83, 1
    %v1626 = vrot.slane %v84, 1
    %v1627 = vrot.slane %v85, 1
    %v1628 = vrot.slane %v86, 1
    %v1629 = vrot.slane %v87, 1
    %v1630 = vrot.slane %v88, 1
    %v1631 = vrot.slane %v89, 1
    %v1632 = vrot.slane %v90, 1
    %v1633 = vrot.slane %v91, 1
    %v1634 = vrot.slane %v92, 1
    %v1635 = vrot.slane %v93, 1
    %v1636 = vrot.slane %v94, 1
    %v1637 = vrot.slane %v95, 1
    %v1638 = vrot.slane %v96, 1
    %v1639 = vrot.slane %v97, 1
    %v1640 = vrot.slane %v98, 1
    %v1641 = vrot.slane %v99, 1
    %v1642 = vrot.slane %v100, 1
    %v1643 = vrot.slane %v101, 1
    %v1644 = vrot.slane %v102, 1
    %v1645 = vrot.slane %v103, 1
    %v1646 = vrot.slane %v104, 1
    %v1647 = vrot.slane %v105, 1
    %v1648 = vrot.slane %v106, 1
    %v1649 = vrot.slane %v107, 1
    %v1650 = vrot.slane %v108, 1
    %v1651 = vrot.slane %v109, 1
    %v1652 = vrot.slane %v110, 1
    %v1653 = vrot.slane %v111, 1
    %v1654 = vrot.slane %v112, 1
    %v1655 = vrot.slane %v113, 1
    %v1656 = vrot.slane %v114, 1
    %v1657 = vrot.slane %v115, 1
    %v1658 = vrot.slane %v116, 1
    %v1659 = vrot.slane %v117, 1
    %v1660 = vrot.slane %v118, 1
    %v1661 = vrot.slane %v119, 1
    %v1662 = vrot.slane %v120, 1
    %vm1663 = vcmp.lt.s32.totalorder %v122, 7
    %v1664 = vsel %vm1663, %v1661, %v1662
    %v1665 = vsel %vm1663, %v1660, %v1661
    %v1666 = vsel %vm1663, %v1659, %v1660
    %v1667 = vsel %vm1663, %v1658, %v1659
    %v1668 = vsel %vm1663, %v1657, %v1658
    %v1669 = vsel %vm1663, %v1656, %v1657
    %v1670 = vsel %vm1663, %v1655, %v1656
    %v1671 = vsel %vm1663, %v1654, %v1655
    %v1672 = vsel %vm1663, %v1653, %v1654
    %v1673 = vsel %vm1663, %v1652, %v1653
    %v1674 = vsel %vm1663, %v1651, %v1652
    %v1675 = vsel %vm1663, %v1650, %v1651
    %v1676 = vsel %vm1663, %v1649, %v1650
    %v1677 = vsel %vm1663, %v1648, %v1649
    %v1678 = vsel %vm1663, %v1647, %v1648
    %v1679 = vsel %vm1663, %v1646, %v1647
    %v1680 = vsel %vm1663, %v1645, %v1646
    %v1681 = vsel %vm1663, %v1644, %v1645
    %v1682 = vsel %vm1663, %v1643, %v1644
    %v1683 = vsel %vm1663, %v1642, %v1643
    %v1684 = vsel %vm1663, %v1641, %v1642
    %v1685 = vsel %vm1663, %v1640, %v1641
    %v1686 = vsel %vm1663, %v1639, %v1640
    %v1687 = vsel %vm1663, %v1638, %v1639
    %v1688 = vsel %vm1663, %v1637, %v1638
    %v1689 = vsel %vm1663, %v1636, %v1637
    %v1690 = vsel %vm1663, %v1635, %v1636
    %v1691 = vsel %vm1663, %v1634, %v1635
    %v1692 = vsel %vm1663, %v1633, %v1634
    %v1693 = vsel %vm1663, %v1632, %v1633
    %v1694 = vsel %vm1663, %v1631, %v1632
    %v1695 = vsel %vm1663, %v1630, %v1631
    %v1696 = vsel %vm1663, %v1629, %v1630
    %v1697 = vsel %vm1663, %v1628, %v1629
    %v1698 = vsel %vm1663, %v1627, %v1628
    %v1699 = vsel %vm1663, %v1626, %v1627
    %v1700 = vsel %vm1663, %v1625, %v1626
    %v1701 = vsel %vm1663, %v1624, %v1625
    %v1702 = vsel %vm1663, %v1623, %v1624
    %v1703 = vsel %vm1663, %v1622, %v1623
    %v1704 = vsel %vm1663, %v1621, %v1622
    %v1705 = vsel %vm1663, %v1620, %v1621
    %v1706 = vsel %vm1663, %v1619, %v1620
    %v1707 = vsel %vm1663, %v1618, %v1619
    %v1708 = vsel %vm1663, %v1617, %v1618
    %v1709 = vsel %vm1663, %v1616, %v1617
    %v1710 = vsel %vm1663, %v1615, %v1616
    %v1711 = vsel %vm1663, %v1614, %v1615
    %v1712 = vsel %vm1663, %v1613, %v1614
    %v1713 = vsel %vm1663, %v1612, %v1613
    %v1714 = vsel %vm1663, %v1611, %v1612
    %v1715 = vsel %vm1663, %v1610, %v1611
    %v1716 = vsel %vm1663, %v1609, %v1610
    %v1717 = vsel %vm1663, %v1608, %v1609
    %v1718 = vsel %vm1663, %v1607, %v1608
    %v1719 = vsel %vm1663, %v1606, %v1607
    %v1720 = vsel %vm1663, %v1605, %v1606
    %v1721 = vsel %vm1663, %v1604, %v1605
    %v1722 = vsel %vm1663, %v1603, %v1604
    %v1723 = vsel %vm1663, %v1602, %v1603
    %v1724 = vsel %vm1663, %v1601, %v1602
    %v1725 = vsel %vm1663, %v1600, %v1601
    %v1726 = vsel %vm1663, %v1599, %v1600
    %v1727 = vsel %vm1663, %v1598, %v1599
    %v1728 = vsel %vm1663, %v1597, %v1598
    %v1729 = vsel %vm1663, %v1596, %v1597
    %v1730 = vsel %vm1663, %v1595, %v1596
    %v1731 = vsel %vm1663, %v1594, %v1595
    %v1732 = vsel %vm1663, %v1593, %v1594
    %v1733 = vsel %vm1663, %v1592, %v1593
    %v1734 = vsel %vm1663, %v1591, %v1592
    %v1735 = vsel %vm1663, %v1590, %v1591
    %v1736 = vsel %vm1663, %v1589, %v1590
    %v1737 = vsel %vm1663, %v1588, %v1589
    %v1738 = vsel %vm1663, %v1587, %v1588
    %v1739 = vsel %vm1663, %v1586, %v1587
    %v1740 = vsel %vm1663, %v1585, %v1586
    %v1741 = vsel %vm1663, %v1584, %v1585
    %v1742 = vsel %vm1663, %v1583, %v1584
    %v1743 = vsel %vm1663, %v1582, %v1583
    %v1744 = vsel %vm1663, %v1581, %v1582
    %v1745 = vsel %vm1663, %v1580, %v1581
    %v1746 = vsel %vm1663, %v1579, %v1580
    %v1747 = vsel %vm1663, %v1578, %v1579
    %v1748 = vsel %vm1663, %v1577, %v1578
    %v1749 = vsel %vm1663, %v1576, %v1577
    %v1750 = vsel %vm1663, %v1575, %v1576
    %v1751 = vsel %vm1663, %v1574, %v1575
    %v1752 = vsel %vm1663, %v1573, %v1574
    %v1753 = vsel %vm1663, %v1572, %v1573
    %v1754 = vsel %vm1663, %v1571, %v1572
    %v1755 = vsel %vm1663, %v1570, %v1571
    %v1756 = vsel %vm1663, %v1569, %v1570
    %v1757 = vsel %vm1663, %v1568, %v1569
    %v1758 = vsel %vm1663, %v1567, %v1568
    %v1759 = vsel %vm1663, %v1662, %v1567
    %v1760 = vsel %vm986, 1, 0
    %v1761 = vsel %vm987, 1, 0
    %v1762 = vsel %vm988, 1, 0
    %v1763 = vsel %vm989, 1, 0
    %v1764 = vsel %vm990, 1, 0
    %v1765 = vsel %vm991, 1, 0
    %v1766 = vsel %vm992, 1, 0
    %v1767 = vsel %vm993, 1, 0
    %v1768 = vsel %vm994, 1, 0
    %v1769 = vsel %vm995, 1, 0
    %v1770 = vsel %vm996, 1, 0
    %v1771 = vsel %vm997, 1, 0
    %v1772 = vsel %vm998, 1, 0
    %v1773 = vsel %vm999, 1, 0
    %v1774 = vsel %vm1000, 1, 0
    %v1775 = vsel %vm1001, 1, 0
    %v1776 = vsel %vm1002, 1, 0
    %v1777 = vsel %vm1003, 1, 0
    %v1778 = vsel %vm1004, 1, 0
    %v1779 = vsel %vm1005, 1, 0
    %v1780 = vsel %vm1006, 1, 0
    %v1781 = vsel %vm1007, 1, 0
    %v1782 = vsel %vm1008, 1, 0
    %v1783 = vsel %vm1009, 1, 0
    %v1784 = vsel %vm1010, 1, 0
    %v1785 = vsel %vm1011, 1, 0
    %v1786 = vsel %vm1012, 1, 0
    %v1787 = vsel %vm1013, 1, 0
    %v1788 = vsel %vm1014, 1, 0
    %v1789 = vsel %vm1015, 1, 0
    %v1790 = vsel %vm1016, 1, 0
    %v1791 = vsel %vm1017, 1, 0
    %v1792 = vsel %vm1018, 1, 0
    %v1793 = vsel %vm1019, 1, 0
    %v1794 = vsel %vm1020, 1, 0
    %v1795 = vsel %vm1021, 1, 0
    %v1796 = vsel %vm1022, 1, 0
    %v1797 = vsel %vm1023, 1, 0
    %v1798 = vsel %vm1024, 1, 0
    %v1799 = vsel %vm1025, 1, 0
    %v1800 = vsel %vm1026, 1, 0
    %v1801 = vsel %vm1027, 1, 0
    %v1802 = vsel %vm1028, 1, 0
    %v1803 = vsel %vm1029, 1, 0
    %v1804 = vsel %vm1030, 1, 0
    %v1805 = vsel %vm1031, 1, 0
    %v1806 = vsel %vm1032, 1, 0
    %v1807 = vsel %vm1033, 1, 0
    %v1808 = vsel %vm1034, 1, 0
    %v1809 = vsel %vm1035, 1, 0
    %v1810 = vsel %vm1036, 1, 0
    %v1811 = vsel %vm1037, 1, 0
    %v1812 = vsel %vm1038, 1, 0
    %v1813 = vsel %vm1039, 1, 0
    %v1814 = vsel %vm1040, 1, 0
    %v1815 = vsel %vm1041, 1, 0
    %v1816 = vsel %vm1042, 1, 0
    %v1817 = vsel %vm1043, 1, 0
    %v1818 = vsel %vm1044, 1, 0
    %v1819 = vsel %vm1045, 1, 0
    %v1820 = vsel %vm1046, 1, 0
    %v1821 = vsel %vm1047, 1, 0
    %v1822 = vsel %vm1048, 1, 0
    %v1823 = vsel %vm1049, 1, 0
    %v1824 = vsel %vm1050, 1, 0
    %v1825 = vsel %vm1051, 1, 0
    %v1826 = vsel %vm1052, 1, 0
    %v1827 = vsel %vm1053, 1, 0
    %v1828 = vsel %vm1054, 1, 0
    %v1829 = vsel %vm1055, 1, 0
    %v1830 = vsel %vm1056, 1, 0
    %v1831 = vsel %vm1057, 1, 0
    %v1832 = vsel %vm1058, 1, 0
    %v1833 = vsel %vm1059, 1, 0
    %v1834 = vsel %vm1060, 1, 0
    %v1835 = vsel %vm1061, 1, 0
    %v1836 = vsel %vm1062, 1, 0
    %v1837 = vsel %vm1063, 1, 0
    %v1838 = vsel %vm1064, 1, 0
    %v1839 = vsel %vm1065, 1, 0
    %v1840 = vsel %vm1066, 1, 0
    %v1841 = vsel %vm1067, 1, 0
    %v1842 = vsel %vm1068, 1, 0
    %v1843 = vsel %vm1069, 1, 0
    %v1844 = vsel %vm1070, 1, 0
    %v1845 = vsel %vm1071, 1, 0
    %v1846 = vsel %vm1072, 1, 0
    %v1847 = vsel %vm1073, 1, 0
    %v1848 = vsel %vm1074, 1, 0
    %v1849 = vsel %vm1075, 1, 0
    %v1850 = vsel %vm1076, 1, 0
    %v1851 = vsel %vm1077, 1, 0
    %v1852 = vsel %vm1078, 1, 0
    %v1853 = vsel %vm1079, 1, 0
    %v1854 = vsel %vm1080, 1, 0
    %v1855 = vsel %vm1081, 1, 0
    %vm1856 = vcmp.eq.s32.totalorder %v1760, 1
    %vm1857 = vcmp.eq.s32.totalorder %v1761, 1
    %vm1858 = vcmp.eq.s32.totalorder %v1762, 1
    %vm1859 = vcmp.eq.s32.totalorder %v1763, 1
    %vm1860 = vcmp.eq.s32.totalorder %v1764, 1
    %vm1861 = vcmp.eq.s32.totalorder %v1765, 1
    %vm1862 = vcmp.eq.s32.totalorder %v1766, 1
    %vm1863 = vcmp.eq.s32.totalorder %v1767, 1
    %vm1864 = vcmp.eq.s32.totalorder %v1768, 1
    %vm1865 = vcmp.eq.s32.totalorder %v1769, 1
    %vm1866 = vcmp.eq.s32.totalorder %v1770, 1
    %vm1867 = vcmp.eq.s32.totalorder %v1771, 1
    %vm1868 = vcmp.eq.s32.totalorder %v1772, 1
    %vm1869 = vcmp.eq.s32.totalorder %v1773, 1
    %vm1870 = vcmp.eq.s32.totalorder %v1774, 1
    %vm1871 = vcmp.eq.s32.totalorder %v1775, 1
    %vm1872 = vcmp.eq.s32.totalorder %v1776, 1
    %vm1873 = vcmp.eq.s32.totalorder %v1777, 1
    %vm1874 = vcmp.eq.s32.totalorder %v1778, 1
    %vm1875 = vcmp.eq.s32.totalorder %v1779, 1
    %vm1876 = vcmp.eq.s32.totalorder %v1780, 1
    %vm1877 = vcmp.eq.s32.totalorder %v1781, 1
    %vm1878 = vcmp.eq.s32.totalorder %v1782, 1
    %vm1879 = vcmp.eq.s32.totalorder %v1783, 1
    %vm1880 = vcmp.eq.s32.totalorder %v1784, 1
    %vm1881 = vcmp.eq.s32.totalorder %v1785, 1
    %vm1882 = vcmp.eq.s32.totalorder %v1786, 1
    %vm1883 = vcmp.eq.s32.totalorder %v1787, 1
    %vm1884 = vcmp.eq.s32.totalorder %v1788, 1
    %vm1885 = vcmp.eq.s32.totalorder %v1789, 1
    %vm1886 = vcmp.eq.s32.totalorder %v1790, 1
    %vm1887 = vcmp.eq.s32.totalorder %v1791, 1
    %vm1888 = vcmp.eq.s32.totalorder %v1792, 1
    %vm1889 = vcmp.eq.s32.totalorder %v1793, 1
    %vm1890 = vcmp.eq.s32.totalorder %v1794, 1
    %vm1891 = vcmp.eq.s32.totalorder %v1795, 1
    %vm1892 = vcmp.eq.s32.totalorder %v1796, 1
    %vm1893 = vcmp.eq.s32.totalorder %v1797, 1
    %vm1894 = vcmp.eq.s32.totalorder %v1798, 1
    %vm1895 = vcmp.eq.s32.totalorder %v1799, 1
    %vm1896 = vcmp.eq.s32.totalorder %v1800, 1
    %vm1897 = vcmp.eq.s32.totalorder %v1801, 1
    %vm1898 = vcmp.eq.s32.totalorder %v1802, 1
    %vm1899 = vcmp.eq.s32.totalorder %v1803, 1
    %vm1900 = vcmp.eq.s32.totalorder %v1804, 1
    %vm1901 = vcmp.eq.s32.totalorder %v1805, 1
    %vm1902 = vcmp.eq.s32.totalorder %v1806, 1
    %vm1903 = vcmp.eq.s32.totalorder %v1807, 1
    %vm1904 = vcmp.eq.s32.totalorder %v1808, 1
    %vm1905 = vcmp.eq.s32.totalorder %v1809, 1
    %vm1906 = vcmp.eq.s32.totalorder %v1810, 1
    %vm1907 = vcmp.eq.s32.totalorder %v1811, 1
    %vm1908 = vcmp.eq.s32.totalorder %v1812, 1
    %vm1909 = vcmp.eq.s32.totalorder %v1813, 1
    %vm1910 = vcmp.eq.s32.totalorder %v1814, 1
    %vm1911 = vcmp.eq.s32.totalorder %v1815, 1
    %vm1912 = vcmp.eq.s32.totalorder %v1816, 1
    %vm1913 = vcmp.eq.s32.totalorder %v1817, 1
    %vm1914 = vcmp.eq.s32.totalorder %v1818, 1
    %vm1915 = vcmp.eq.s32.totalorder %v1819, 1
    %vm1916 = vcmp.eq.s32.totalorder %v1820, 1
    %vm1917 = vcmp.eq.s32.totalorder %v1821, 1
    %vm1918 = vcmp.eq.s32.totalorder %v1822, 1
    %vm1919 = vcmp.eq.s32.totalorder %v1823, 1
    %vm1920 = vcmp.eq.s32.totalorder %v1824, 1
    %vm1921 = vcmp.eq.s32.totalorder %v1825, 1
    %vm1922 = vcmp.eq.s32.totalorder %v1826, 1
    %vm1923 = vcmp.eq.s32.totalorder %v1827, 1
    %vm1924 = vcmp.eq.s32.totalorder %v1828, 1
    %vm1925 = vcmp.eq.s32.totalorder %v1829, 1
    %vm1926 = vcmp.eq.s32.totalorder %v1830, 1
    %vm1927 = vcmp.eq.s32.totalorder %v1831, 1
    %vm1928 = vcmp.eq.s32.totalorder %v1832, 1
    %vm1929 = vcmp.eq.s32.totalorder %v1833, 1
    %vm1930 = vcmp.eq.s32.totalorder %v1834, 1
    %vm1931 = vcmp.eq.s32.totalorder %v1835, 1
    %vm1932 = vcmp.eq.s32.totalorder %v1836, 1
    %vm1933 = vcmp.eq.s32.totalorder %v1837, 1
    %vm1934 = vcmp.eq.s32.totalorder %v1838, 1
    %vm1935 = vcmp.eq.s32.totalorder %v1839, 1
    %vm1936 = vcmp.eq.s32.totalorder %v1840, 1
    %vm1937 = vcmp.eq.s32.totalorder %v1841, 1
    %vm1938 = vcmp.eq.s32.totalorder %v1842, 1
    %vm1939 = vcmp.eq.s32.totalorder %v1843, 1
    %vm1940 = vcmp.eq.s32.totalorder %v1844, 1
    %vm1941 = vcmp.eq.s32.totalorder %v1845, 1
    %vm1942 = vcmp.eq.s32.totalorder %v1846, 1
    %vm1943 = vcmp.eq.s32.totalorder %v1847, 1
    %vm1944 = vcmp.eq.s32.totalorder %v1848, 1
    %vm1945 = vcmp.eq.s32.totalorder %v1849, 1
    %vm1946 = vcmp.eq.s32.totalorder %v1850, 1
    %vm1947 = vcmp.eq.s32.totalorder %v1851, 1
    %vm1948 = vcmp.eq.s32.totalorder %v1852, 1
    %vm1949 = vcmp.eq.s32.totalorder %v1853, 1
    %vm1950 = vcmp.eq.s32.totalorder %v1854, 1
    %vm1951 = vcmp.eq.s32.totalorder %v1855, 1
    %v1952 = vsel %vm1856, 0.0, %v1758
    %v1953 = vsel %vm1857, 0.0, %v1757
    %v1954 = vsel %vm1858, 0.0, %v1756
    %v1955 = vsel %vm1859, 0.0, %v1755
    %v1956 = vsel %vm1860, 0.0, %v1754
    %v1957 = vsel %vm1861, 0.0, %v1753
    %v1958 = vsel %vm1862, 0.0, %v1752
    %v1959 = vsel %vm1863, 0.0, %v1751
    %v1960 = vsel %vm1864, 0.0, %v1750
    %v1961 = vsel %vm1865, 0.0, %v1749
    %v1962 = vsel %vm1866, 0.0, %v1748
    %v1963 = vsel %vm1867, 0.0, %v1747
    %v1964 = vsel %vm1868, 0.0, %v1746
    %v1965 = vsel %vm1869, 0.0, %v1745
    %v1966 = vsel %vm1870, 0.0, %v1744
    %v1967 = vsel %vm1871, 0.0, %v1743
    %v1968 = vsel %vm1872, 0.0, %v1742
    %v1969 = vsel %vm1873, 0.0, %v1741
    %v1970 = vsel %vm1874, 0.0, %v1740
    %v1971 = vsel %vm1875, 0.0, %v1739
    %v1972 = vsel %vm1876, 0.0, %v1738
    %v1973 = vsel %vm1877, 0.0, %v1737
    %v1974 = vsel %vm1878, 0.0, %v1736
    %v1975 = vsel %vm1879, 0.0, %v1735
    %v1976 = vsel %vm1880, 0.0, %v1734
    %v1977 = vsel %vm1881, 0.0, %v1733
    %v1978 = vsel %vm1882, 0.0, %v1732
    %v1979 = vsel %vm1883, 0.0, %v1731
    %v1980 = vsel %vm1884, 0.0, %v1730
    %v1981 = vsel %vm1885, 0.0, %v1729
    %v1982 = vsel %vm1886, 0.0, %v1728
    %v1983 = vsel %vm1887, 0.0, %v1727
    %v1984 = vsel %vm1888, 0.0, %v1726
    %v1985 = vsel %vm1889, 0.0, %v1725
    %v1986 = vsel %vm1890, 0.0, %v1724
    %v1987 = vsel %vm1891, 0.0, %v1723
    %v1988 = vsel %vm1892, 0.0, %v1722
    %v1989 = vsel %vm1893, 0.0, %v1721
    %v1990 = vsel %vm1894, 0.0, %v1720
    %v1991 = vsel %vm1895, 0.0, %v1719
    %v1992 = vsel %vm1896, 0.0, %v1718
    %v1993 = vsel %vm1897, 0.0, %v1717
    %v1994 = vsel %vm1898, 0.0, %v1716
    %v1995 = vsel %vm1899, 0.0, %v1715
    %v1996 = vsel %vm1900, 0.0, %v1714
    %v1997 = vsel %vm1901, 0.0, %v1713
    %v1998 = vsel %vm1902, 0.0, %v1712
    %v1999 = vsel %vm1903, 0.0, %v1711
    %v2000 = vsel %vm1904, 0.0, %v1710
    %v2001 = vsel %vm1905, 0.0, %v1709
    %v2002 = vsel %vm1906, 0.0, %v1708
    %v2003 = vsel %vm1907, 0.0, %v1707
    %v2004 = vsel %vm1908, 0.0, %v1706
    %v2005 = vsel %vm1909, 0.0, %v1705
    %v2006 = vsel %vm1910, 0.0, %v1704
    %v2007 = vsel %vm1911, 0.0, %v1703
    %v2008 = vsel %vm1912, 0.0, %v1702
    %v2009 = vsel %vm1913, 0.0, %v1701
    %v2010 = vsel %vm1914, 0.0, %v1700
    %v2011 = vsel %vm1915, 0.0, %v1699
    %v2012 = vsel %vm1916, 0.0, %v1698
    %v2013 = vsel %vm1917, 0.0, %v1697
    %v2014 = vsel %vm1918, 0.0, %v1696
    %v2015 = vsel %vm1919, 0.0, %v1695
    %v2016 = vsel %vm1920, 0.0, %v1694
    %v2017 = vsel %vm1921, 0.0, %v1693
    %v2018 = vsel %vm1922, 0.0, %v1692
    %v2019 = vsel %vm1923, 0.0, %v1691
    %v2020 = vsel %vm1924, 0.0, %v1690
    %v2021 = vsel %vm1925, 0.0, %v1689
    %v2022 = vsel %vm1926, 0.0, %v1688
    %v2023 = vsel %vm1927, 0.0, %v1687
    %v2024 = vsel %vm1928, 0.0, %v1686
    %v2025 = vsel %vm1929, 0.0, %v1685
    %v2026 = vsel %vm1930, 0.0, %v1684
    %v2027 = vsel %vm1931, 0.0, %v1683
    %v2028 = vsel %vm1932, 0.0, %v1682
    %v2029 = vsel %vm1933, 0.0, %v1681
    %v2030 = vsel %vm1934, 0.0, %v1680
    %v2031 = vsel %vm1935, 0.0, %v1679
    %v2032 = vsel %vm1936, 0.0, %v1678
    %v2033 = vsel %vm1937, 0.0, %v1677
    %v2034 = vsel %vm1938, 0.0, %v1676
    %v2035 = vsel %vm1939, 0.0, %v1675
    %v2036 = vsel %vm1940, 0.0, %v1674
    %v2037 = vsel %vm1941, 0.0, %v1673
    %v2038 = vsel %vm1942, 0.0, %v1672
    %v2039 = vsel %vm1943, 0.0, %v1671
    %v2040 = vsel %vm1944, 0.0, %v1670
    %v2041 = vsel %vm1945, 0.0, %v1669
    %v2042 = vsel %vm1946, 0.0, %v1668
    %v2043 = vsel %vm1947, 0.0, %v1667
    %v2044 = vsel %vm1948, 0.0, %v1666
    %v2045 = vsel %vm1949, 0.0, %v1665
    %v2046 = vsel %vm1950, 0.0, %v1664
    %v2047 = vsel %vm1951, 0.0, %v1759
    %v2048 = vmul.f32 %v25, 2.0
    %v2049 = vmul.f32 %v26, 2.0
    %v2050 = vmul.f32 %v27, 2.0
    %v2051 = vmul.f32 %v28, 2.0
    %v2052 = vmul.f32 %v29, 2.0
    %v2053 = vmul.f32 %v30, 2.0
    %v2054 = vmul.f32 %v31, 2.0
    %v2055 = vmul.f32 %v32, 2.0
    %v2056 = vmul.f32 %v33, 2.0
    %v2057 = vmul.f32 %v34, 2.0
    %v2058 = vmul.f32 %v35, 2.0
    %v2059 = vmul.f32 %v36, 2.0
    %v2060 = vmul.f32 %v37, 2.0
    %v2061 = vmul.f32 %v38, 2.0
    %v2062 = vmul.f32 %v39, 2.0
    %v2063 = vmul.f32 %v40, 2.0
    %v2064 = vmul.f32 %v41, 2.0
    %v2065 = vmul.f32 %v42, 2.0
    %v2066 = vmul.f32 %v43, 2.0
    %v2067 = vmul.f32 %v44, 2.0
    %v2068 = vmul.f32 %v45, 2.0
    %v2069 = vmul.f32 %v46, 2.0
    %v2070 = vmul.f32 %v47, 2.0
    %v2071 = vmul.f32 %v48, 2.0
    %v2072 = vmul.f32 %v49, 2.0
    %v2073 = vmul.f32 %v50, 2.0
    %v2074 = vmul.f32 %v51, 2.0
    %v2075 = vmul.f32 %v52, 2.0
    %v2076 = vmul.f32 %v53, 2.0
    %v2077 = vmul.f32 %v54, 2.0
    %v2078 = vmul.f32 %v55, 2.0
    %v2079 = vmul.f32 %v56, 2.0
    %v2080 = vmul.f32 %v57, 2.0
    %v2081 = vmul.f32 %v58, 2.0
    %v2082 = vmul.f32 %v59, 2.0
    %v2083 = vmul.f32 %v60, 2.0
    %v2084 = vmul.f32 %v61, 2.0
    %v2085 = vmul.f32 %v62, 2.0
    %v2086 = vmul.f32 %v63, 2.0
    %v2087 = vmul.f32 %v64, 2.0
    %v2088 = vmul.f32 %v65, 2.0
    %v2089 = vmul.f32 %v66, 2.0
    %v2090 = vmul.f32 %v67, 2.0
    %v2091 = vmul.f32 %v68, 2.0
    %v2092 = vmul.f32 %v69, 2.0
    %v2093 = vmul.f32 %v70, 2.0
    %v2094 = vmul.f32 %v71, 2.0
    %v2095 = vmul.f32 %v72, 2.0
    %v2096 = vmul.f32 %v73, 2.0
    %v2097 = vmul.f32 %v74, 2.0
    %v2098 = vmul.f32 %v75, 2.0
    %v2099 = vmul.f32 %v76, 2.0
    %v2100 = vmul.f32 %v77, 2.0
    %v2101 = vmul.f32 %v78, 2.0
    %v2102 = vmul.f32 %v79, 2.0
    %v2103 = vmul.f32 %v80, 2.0
    %v2104 = vmul.f32 %v81, 2.0
    %v2105 = vmul.f32 %v82, 2.0
    %v2106 = vmul.f32 %v83, 2.0
    %v2107 = vmul.f32 %v84, 2.0
    %v2108 = vmul.f32 %v85, 2.0
    %v2109 = vmul.f32 %v86, 2.0
    %v2110 = vmul.f32 %v87, 2.0
    %v2111 = vmul.f32 %v88, 2.0
    %v2112 = vmul.f32 %v89, 2.0
    %v2113 = vmul.f32 %v90, 2.0
    %v2114 = vmul.f32 %v91, 2.0
    %v2115 = vmul.f32 %v92, 2.0
    %v2116 = vmul.f32 %v93, 2.0
    %v2117 = vmul.f32 %v94, 2.0
    %v2118 = vmul.f32 %v95, 2.0
    %v2119 = vmul.f32 %v96, 2.0
    %v2120 = vmul.f32 %v97, 2.0
    %v2121 = vmul.f32 %v98, 2.0
    %v2122 = vmul.f32 %v99, 2.0
    %v2123 = vmul.f32 %v100, 2.0
    %v2124 = vmul.f32 %v101, 2.0
    %v2125 = vmul.f32 %v102, 2.0
    %v2126 = vmul.f32 %v103, 2.0
    %v2127 = vmul.f32 %v104, 2.0
    %v2128 = vmul.f32 %v105, 2.0
    %v2129 = vmul.f32 %v106, 2.0
    %v2130 = vmul.f32 %v107, 2.0
    %v2131 = vmul.f32 %v108, 2.0
    %v2132 = vmul.f32 %v109, 2.0
    %v2133 = vmul.f32 %v110, 2.0
    %v2134 = vmul.f32 %v111, 2.0
    %v2135 = vmul.f32 %v112, 2.0
    %v2136 = vmul.f32 %v113, 2.0
    %v2137 = vmul.f32 %v114, 2.0
    %v2138 = vmul.f32 %v115, 2.0
    %v2139 = vmul.f32 %v116, 2.0
    %v2140 = vmul.f32 %v117, 2.0
    %v2141 = vmul.f32 %v118, 2.0
    %v2142 = vmul.f32 %v119, 2.0
    %v2143 = vmul.f32 %v120, 2.0
    %v2144 = vadd.f32 %v1471, %v2048
    %v2145 = vadd.f32 %v1472, %v2049
    %v2146 = vadd.f32 %v1473, %v2050
    %v2147 = vadd.f32 %v1474, %v2051
    %v2148 = vadd.f32 %v1475, %v2052
    %v2149 = vadd.f32 %v1476, %v2053
    %v2150 = vadd.f32 %v1477, %v2054
    %v2151 = vadd.f32 %v1478, %v2055
    %v2152 = vadd.f32 %v1479, %v2056
    %v2153 = vadd.f32 %v1480, %v2057
    %v2154 = vadd.f32 %v1481, %v2058
    %v2155 = vadd.f32 %v1482, %v2059
    %v2156 = vadd.f32 %v1483, %v2060
    %v2157 = vadd.f32 %v1484, %v2061
    %v2158 = vadd.f32 %v1485, %v2062
    %v2159 = vadd.f32 %v1486, %v2063
    %v2160 = vadd.f32 %v1487, %v2064
    %v2161 = vadd.f32 %v1488, %v2065
    %v2162 = vadd.f32 %v1489, %v2066
    %v2163 = vadd.f32 %v1490, %v2067
    %v2164 = vadd.f32 %v1491, %v2068
    %v2165 = vadd.f32 %v1492, %v2069
    %v2166 = vadd.f32 %v1493, %v2070
    %v2167 = vadd.f32 %v1494, %v2071
    %v2168 = vadd.f32 %v1495, %v2072
    %v2169 = vadd.f32 %v1496, %v2073
    %v2170 = vadd.f32 %v1497, %v2074
    %v2171 = vadd.f32 %v1498, %v2075
    %v2172 = vadd.f32 %v1499, %v2076
    %v2173 = vadd.f32 %v1500, %v2077
    %v2174 = vadd.f32 %v1501, %v2078
    %v2175 = vadd.f32 %v1502, %v2079
    %v2176 = vadd.f32 %v1503, %v2080
    %v2177 = vadd.f32 %v1504, %v2081
    %v2178 = vadd.f32 %v1505, %v2082
    %v2179 = vadd.f32 %v1506, %v2083
    %v2180 = vadd.f32 %v1507, %v2084
    %v2181 = vadd.f32 %v1508, %v2085
    %v2182 = vadd.f32 %v1509, %v2086
    %v2183 = vadd.f32 %v1510, %v2087
    %v2184 = vadd.f32 %v1511, %v2088
    %v2185 = vadd.f32 %v1512, %v2089
    %v2186 = vadd.f32 %v1513, %v2090
    %v2187 = vadd.f32 %v1514, %v2091
    %v2188 = vadd.f32 %v1515, %v2092
    %v2189 = vadd.f32 %v1516, %v2093
    %v2190 = vadd.f32 %v1517, %v2094
    %v2191 = vadd.f32 %v1518, %v2095
    %v2192 = vadd.f32 %v1519, %v2096
    %v2193 = vadd.f32 %v1520, %v2097
    %v2194 = vadd.f32 %v1521, %v2098
    %v2195 = vadd.f32 %v1522, %v2099
    %v2196 = vadd.f32 %v1523, %v2100
    %v2197 = vadd.f32 %v1524, %v2101
    %v2198 = vadd.f32 %v1525, %v2102
    %v2199 = vadd.f32 %v1526, %v2103
    %v2200 = vadd.f32 %v1527, %v2104
    %v2201 = vadd.f32 %v1528, %v2105
    %v2202 = vadd.f32 %v1529, %v2106
    %v2203 = vadd.f32 %v1530, %v2107
    %v2204 = vadd.f32 %v1531, %v2108
    %v2205 = vadd.f32 %v1532, %v2109
    %v2206 = vadd.f32 %v1533, %v2110
    %v2207 = vadd.f32 %v1534, %v2111
    %v2208 = vadd.f32 %v1535, %v2112
    %v2209 = vadd.f32 %v1536, %v2113
    %v2210 = vadd.f32 %v1537, %v2114
    %v2211 = vadd.f32 %v1538, %v2115
    %v2212 = vadd.f32 %v1539, %v2116
    %v2213 = vadd.f32 %v1540, %v2117
    %v2214 = vadd.f32 %v1541, %v2118
    %v2215 = vadd.f32 %v1542, %v2119
    %v2216 = vadd.f32 %v1543, %v2120
    %v2217 = vadd.f32 %v1544, %v2121
    %v2218 = vadd.f32 %v1545, %v2122
    %v2219 = vadd.f32 %v1546, %v2123
    %v2220 = vadd.f32 %v1547, %v2124
    %v2221 = vadd.f32 %v1548, %v2125
    %v2222 = vadd.f32 %v1549, %v2126
    %v2223 = vadd.f32 %v1550, %v2127
    %v2224 = vadd.f32 %v1551, %v2128
    %v2225 = vadd.f32 %v1552, %v2129
    %v2226 = vadd.f32 %v1553, %v2130
    %v2227 = vadd.f32 %v1554, %v2131
    %v2228 = vadd.f32 %v1555, %v2132
    %v2229 = vadd.f32 %v1556, %v2133
    %v2230 = vadd.f32 %v1557, %v2134
    %v2231 = vadd.f32 %v1558, %v2135
    %v2232 = vadd.f32 %v1559, %v2136
    %v2233 = vadd.f32 %v1560, %v2137
    %v2234 = vadd.f32 %v1561, %v2138
    %v2235 = vadd.f32 %v1562, %v2139
    %v2236 = vadd.f32 %v1563, %v2140
    %v2237 = vadd.f32 %v1564, %v2141
    %v2238 = vadd.f32 %v1565, %v2142
    %v2239 = vadd.f32 %v1566, %v2143
    %v2240 = vadd.f32 %v2144, %v1952
    %v2241 = vadd.f32 %v2145, %v1953
    %v2242 = vadd.f32 %v2146, %v1954
    %v2243 = vadd.f32 %v2147, %v1955
    %v2244 = vadd.f32 %v2148, %v1956
    %v2245 = vadd.f32 %v2149, %v1957
    %v2246 = vadd.f32 %v2150, %v1958
    %v2247 = vadd.f32 %v2151, %v1959
    %v2248 = vadd.f32 %v2152, %v1960
    %v2249 = vadd.f32 %v2153, %v1961
    %v2250 = vadd.f32 %v2154, %v1962
    %v2251 = vadd.f32 %v2155, %v1963
    %v2252 = vadd.f32 %v2156, %v1964
    %v2253 = vadd.f32 %v2157, %v1965
    %v2254 = vadd.f32 %v2158, %v1966
    %v2255 = vadd.f32 %v2159, %v1967
    %v2256 = vadd.f32 %v2160, %v1968
    %v2257 = vadd.f32 %v2161, %v1969
    %v2258 = vadd.f32 %v2162, %v1970
    %v2259 = vadd.f32 %v2163, %v1971
    %v2260 = vadd.f32 %v2164, %v1972
    %v2261 = vadd.f32 %v2165, %v1973
    %v2262 = vadd.f32 %v2166, %v1974
    %v2263 = vadd.f32 %v2167, %v1975
    %v2264 = vadd.f32 %v2168, %v1976
    %v2265 = vadd.f32 %v2169, %v1977
    %v2266 = vadd.f32 %v2170, %v1978
    %v2267 = vadd.f32 %v2171, %v1979
    %v2268 = vadd.f32 %v2172, %v1980
    %v2269 = vadd.f32 %v2173, %v1981
    %v2270 = vadd.f32 %v2174, %v1982
    %v2271 = vadd.f32 %v2175, %v1983
    %v2272 = vadd.f32 %v2176, %v1984
    %v2273 = vadd.f32 %v2177, %v1985
    %v2274 = vadd.f32 %v2178, %v1986
    %v2275 = vadd.f32 %v2179, %v1987
    %v2276 = vadd.f32 %v2180, %v1988
    %v2277 = vadd.f32 %v2181, %v1989
    %v2278 = vadd.f32 %v2182, %v1990
    %v2279 = vadd.f32 %v2183, %v1991
    %v2280 = vadd.f32 %v2184, %v1992
    %v2281 = vadd.f32 %v2185, %v1993
    %v2282 = vadd.f32 %v2186, %v1994
    %v2283 = vadd.f32 %v2187, %v1995
    %v2284 = vadd.f32 %v2188, %v1996
    %v2285 = vadd.f32 %v2189, %v1997
    %v2286 = vadd.f32 %v2190, %v1998
    %v2287 = vadd.f32 %v2191, %v1999
    %v2288 = vadd.f32 %v2192, %v2000
    %v2289 = vadd.f32 %v2193, %v2001
    %v2290 = vadd.f32 %v2194, %v2002
    %v2291 = vadd.f32 %v2195, %v2003
    %v2292 = vadd.f32 %v2196, %v2004
    %v2293 = vadd.f32 %v2197, %v2005
    %v2294 = vadd.f32 %v2198, %v2006
    %v2295 = vadd.f32 %v2199, %v2007
    %v2296 = vadd.f32 %v2200, %v2008
    %v2297 = vadd.f32 %v2201, %v2009
    %v2298 = vadd.f32 %v2202, %v2010
    %v2299 = vadd.f32 %v2203, %v2011
    %v2300 = vadd.f32 %v2204, %v2012
    %v2301 = vadd.f32 %v2205, %v2013
    %v2302 = vadd.f32 %v2206, %v2014
    %v2303 = vadd.f32 %v2207, %v2015
    %v2304 = vadd.f32 %v2208, %v2016
    %v2305 = vadd.f32 %v2209, %v2017
    %v2306 = vadd.f32 %v2210, %v2018
    %v2307 = vadd.f32 %v2211, %v2019
    %v2308 = vadd.f32 %v2212, %v2020
    %v2309 = vadd.f32 %v2213, %v2021
    %v2310 = vadd.f32 %v2214, %v2022
    %v2311 = vadd.f32 %v2215, %v2023
    %v2312 = vadd.f32 %v2216, %v2024
    %v2313 = vadd.f32 %v2217, %v2025
    %v2314 = vadd.f32 %v2218, %v2026
    %v2315 = vadd.f32 %v2219, %v2027
    %v2316 = vadd.f32 %v2220, %v2028
    %v2317 = vadd.f32 %v2221, %v2029
    %v2318 = vadd.f32 %v2222, %v2030
    %v2319 = vadd.f32 %v2223, %v2031
    %v2320 = vadd.f32 %v2224, %v2032
    %v2321 = vadd.f32 %v2225, %v2033
    %v2322 = vadd.f32 %v2226, %v2034
    %v2323 = vadd.f32 %v2227, %v2035
    %v2324 = vadd.f32 %v2228, %v2036
    %v2325 = vadd.f32 %v2229, %v2037
    %v2326 = vadd.f32 %v2230, %v2038
    %v2327 = vadd.f32 %v2231, %v2039
    %v2328 = vadd.f32 %v2232, %v2040
    %v2329 = vadd.f32 %v2233, %v2041
    %v2330 = vadd.f32 %v2234, %v2042
    %v2331 = vadd.f32 %v2235, %v2043
    %v2332 = vadd.f32 %v2236, %v2044
    %v2333 = vadd.f32 %v2237, %v2045
    %v2334 = vadd.f32 %v2238, %v2046
    %v2335 = vadd.f32 %v2239, %v2047
    %v2336 = vsub.f32 %v1471, %v1952
    %v2337 = vsub.f32 %v1472, %v1953
    %v2338 = vsub.f32 %v1473, %v1954
    %v2339 = vsub.f32 %v1474, %v1955
    %v2340 = vsub.f32 %v1475, %v1956
    %v2341 = vsub.f32 %v1476, %v1957
    %v2342 = vsub.f32 %v1477, %v1958
    %v2343 = vsub.f32 %v1478, %v1959
    %v2344 = vsub.f32 %v1479, %v1960
    %v2345 = vsub.f32 %v1480, %v1961
    %v2346 = vsub.f32 %v1481, %v1962
    %v2347 = vsub.f32 %v1482, %v1963
    %v2348 = vsub.f32 %v1483, %v1964
    %v2349 = vsub.f32 %v1484, %v1965
    %v2350 = vsub.f32 %v1485, %v1966
    %v2351 = vsub.f32 %v1486, %v1967
    %v2352 = vsub.f32 %v1487, %v1968
    %v2353 = vsub.f32 %v1488, %v1969
    %v2354 = vsub.f32 %v1489, %v1970
    %v2355 = vsub.f32 %v1490, %v1971
    %v2356 = vsub.f32 %v1491, %v1972
    %v2357 = vsub.f32 %v1492, %v1973
    %v2358 = vsub.f32 %v1493, %v1974
    %v2359 = vsub.f32 %v1494, %v1975
    %v2360 = vsub.f32 %v1495, %v1976
    %v2361 = vsub.f32 %v1496, %v1977
    %v2362 = vsub.f32 %v1497, %v1978
    %v2363 = vsub.f32 %v1498, %v1979
    %v2364 = vsub.f32 %v1499, %v1980
    %v2365 = vsub.f32 %v1500, %v1981
    %v2366 = vsub.f32 %v1501, %v1982
    %v2367 = vsub.f32 %v1502, %v1983
    %v2368 = vsub.f32 %v1503, %v1984
    %v2369 = vsub.f32 %v1504, %v1985
    %v2370 = vsub.f32 %v1505, %v1986
    %v2371 = vsub.f32 %v1506, %v1987
    %v2372 = vsub.f32 %v1507, %v1988
    %v2373 = vsub.f32 %v1508, %v1989
    %v2374 = vsub.f32 %v1509, %v1990
    %v2375 = vsub.f32 %v1510, %v1991
    %v2376 = vsub.f32 %v1511, %v1992
    %v2377 = vsub.f32 %v1512, %v1993
    %v2378 = vsub.f32 %v1513, %v1994
    %v2379 = vsub.f32 %v1514, %v1995
    %v2380 = vsub.f32 %v1515, %v1996
    %v2381 = vsub.f32 %v1516, %v1997
    %v2382 = vsub.f32 %v1517, %v1998
    %v2383 = vsub.f32 %v1518, %v1999
    %v2384 = vsub.f32 %v1519, %v2000
    %v2385 = vsub.f32 %v1520, %v2001
    %v2386 = vsub.f32 %v1521, %v2002
    %v2387 = vsub.f32 %v1522, %v2003
    %v2388 = vsub.f32 %v1523, %v2004
    %v2389 = vsub.f32 %v1524, %v2005
    %v2390 = vsub.f32 %v1525, %v2006
    %v2391 = vsub.f32 %v1526, %v2007
    %v2392 = vsub.f32 %v1527, %v2008
    %v2393 = vsub.f32 %v1528, %v2009
    %v2394 = vsub.f32 %v1529, %v2010
    %v2395 = vsub.f32 %v1530, %v2011
    %v2396 = vsub.f32 %v1531, %v2012
    %v2397 = vsub.f32 %v1532, %v2013
    %v2398 = vsub.f32 %v1533, %v2014
    %v2399 = vsub.f32 %v1534, %v2015
    %v2400 = vsub.f32 %v1535, %v2016
    %v2401 = vsub.f32 %v1536, %v2017
    %v2402 = vsub.f32 %v1537, %v2018
    %v2403 = vsub.f32 %v1538, %v2019
    %v2404 = vsub.f32 %v1539, %v2020
    %v2405 = vsub.f32 %v1540, %v2021
    %v2406 = vsub.f32 %v1541, %v2022
    %v2407 = vsub.f32 %v1542, %v2023
    %v2408 = vsub.f32 %v1543, %v2024
    %v2409 = vsub.f32 %v1544, %v2025
    %v2410 = vsub.f32 %v1545, %v2026
    %v2411 = vsub.f32 %v1546, %v2027
    %v2412 = vsub.f32 %v1547, %v2028
    %v2413 = vsub.f32 %v1548, %v2029
    %v2414 = vsub.f32 %v1549, %v2030
    %v2415 = vsub.f32 %v1550, %v2031
    %v2416 = vsub.f32 %v1551, %v2032
    %v2417 = vsub.f32 %v1552, %v2033
    %v2418 = vsub.f32 %v1553, %v2034
    %v2419 = vsub.f32 %v1554, %v2035
    %v2420 = vsub.f32 %v1555, %v2036
    %v2421 = vsub.f32 %v1556, %v2037
    %v2422 = vsub.f32 %v1557, %v2038
    %v2423 = vsub.f32 %v1558, %v2039
    %v2424 = vsub.f32 %v1559, %v2040
    %v2425 = vsub.f32 %v1560, %v2041
    %v2426 = vsub.f32 %v1561, %v2042
    %v2427 = vsub.f32 %v1562, %v2043
    %v2428 = vsub.f32 %v1563, %v2044
    %v2429 = vsub.f32 %v1564, %v2045
    %v2430 = vsub.f32 %v1565, %v2046
    %v2431 = vsub.f32 %v1566, %v2047
    %2432 = vrot.lane.b32.xlu0 %v2240, 1
    %v2433 = vpop.permute.xlu0 %2432
    %2434 = vrot.lane.b32.xlu0 %v2241, 1
    %v2435 = vpop.permute.xlu0 %2434
    %2436 = vrot.lane.b32.xlu0 %v2242, 1
    %v2437 = vpop.permute.xlu0 %2436
    %2438 = vrot.lane.b32.xlu0 %v2243, 1
    %v2439 = vpop.permute.xlu0 %2438
    %2440 = vrot.lane.b32.xlu0 %v2244, 1
    %v2441 = vpop.permute.xlu0 %2440
    %2442 = vrot.lane.b32.xlu0 %v2245, 1
    %v2443 = vpop.permute.xlu0 %2442
    %2444 = vrot.lane.b32.xlu0 %v2246, 1
    %v2445 = vpop.permute.xlu0 %2444
    %2446 = vrot.lane.b32.xlu0 %v2247, 1
    %v2447 = vpop.permute.xlu0 %2446
    %2448 = vrot.lane.b32.xlu0 %v2248, 1
    %v2449 = vpop.permute.xlu0 %2448
    %2450 = vrot.lane.b32.xlu0 %v2249, 1
    %v2451 = vpop.permute.xlu0 %2450
    %2452 = vrot.lane.b32.xlu0 %v2250, 1
    %v2453 = vpop.permute.xlu0 %2452
    %2454 = vrot.lane.b32.xlu0 %v2251, 1
    %v2455 = vpop.permute.xlu0 %2454
    %2456 = vrot.lane.b32.xlu0 %v2252, 1
    %v2457 = vpop.permute.xlu0 %2456
    %2458 = vrot.lane.b32.xlu0 %v2253, 1
    %v2459 = vpop.permute.xlu0 %2458
    %2460 = vrot.lane.b32.xlu0 %v2254, 1
    %v2461 = vpop.permute.xlu0 %2460
    %2462 = vrot.lane.b32.xlu0 %v2255, 1
    %v2463 = vpop.permute.xlu0 %2462
    %2464 = vrot.lane.b32.xlu0 %v2256, 1
    %v2465 = vpop.permute.xlu0 %2464
    %2466 = vrot.lane.b32.xlu0 %v2257, 1
    %v2467 = vpop.permute.xlu0 %2466
    %2468 = vrot.lane.b32.xlu0 %v2258, 1
    %v2469 = vpop.permute.xlu0 %2468
    %2470 = vrot.lane.b32.xlu0 %v2259, 1
    %v2471 = vpop.permute.xlu0 %2470
    %2472 = vrot.lane.b32.xlu0 %v2260, 1
    %v2473 = vpop.permute.xlu0 %2472
    %2474 = vrot.lane.b32.xlu0 %v2261, 1
    %v2475 = vpop.permute.xlu0 %2474
    %2476 = vrot.lane.b32.xlu0 %v2262, 1
    %v2477 = vpop.permute.xlu0 %2476
    %2478 = vrot.lane.b32.xlu0 %v2263, 1
    %v2479 = vpop.permute.xlu0 %2478
    %2480 = vrot.lane.b32.xlu0 %v2264, 1
    %v2481 = vpop.permute.xlu0 %2480
    %2482 = vrot.lane.b32.xlu0 %v2265, 1
    %v2483 = vpop.permute.xlu0 %2482
    %2484 = vrot.lane.b32.xlu0 %v2266, 1
    %v2485 = vpop.permute.xlu0 %2484
    %2486 = vrot.lane.b32.xlu0 %v2267, 1
    %v2487 = vpop.permute.xlu0 %2486
    %2488 = vrot.lane.b32.xlu0 %v2268, 1
    %v2489 = vpop.permute.xlu0 %2488
    %2490 = vrot.lane.b32.xlu0 %v2269, 1
    %v2491 = vpop.permute.xlu0 %2490
    %2492 = vrot.lane.b32.xlu0 %v2270, 1
    %v2493 = vpop.permute.xlu0 %2492
    %2494 = vrot.lane.b32.xlu0 %v2271, 1
    %v2495 = vpop.permute.xlu0 %2494
    %2496 = vrot.lane.b32.xlu0 %v2272, 1
    %v2497 = vpop.permute.xlu0 %2496
    %2498 = vrot.lane.b32.xlu0 %v2273, 1
    %v2499 = vpop.permute.xlu0 %2498
    %2500 = vrot.lane.b32.xlu0 %v2274, 1
    %v2501 = vpop.permute.xlu0 %2500
    %2502 = vrot.lane.b32.xlu0 %v2275, 1
    %v2503 = vpop.permute.xlu0 %2502
    %2504 = vrot.lane.b32.xlu0 %v2276, 1
    %v2505 = vpop.permute.xlu0 %2504
    %2506 = vrot.lane.b32.xlu0 %v2277, 1
    %v2507 = vpop.permute.xlu0 %2506
    %2508 = vrot.lane.b32.xlu0 %v2278, 1
    %v2509 = vpop.permute.xlu0 %2508
    %2510 = vrot.lane.b32.xlu0 %v2279, 1
    %v2511 = vpop.permute.xlu0 %2510
    %2512 = vrot.lane.b32.xlu0 %v2280, 1
    %v2513 = vpop.permute.xlu0 %2512
    %2514 = vrot.lane.b32.xlu0 %v2281, 1
    %v2515 = vpop.permute.xlu0 %2514
    %2516 = vrot.lane.b32.xlu0 %v2282, 1
    %v2517 = vpop.permute.xlu0 %2516
    %2518 = vrot.lane.b32.xlu0 %v2283, 1
    %v2519 = vpop.permute.xlu0 %2518
    %2520 = vrot.lane.b32.xlu0 %v2284, 1
    %v2521 = vpop.permute.xlu0 %2520
    %2522 = vrot.lane.b32.xlu0 %v2285, 1
    %v2523 = vpop.permute.xlu0 %2522
    %2524 = vrot.lane.b32.xlu0 %v2286, 1
    %v2525 = vpop.permute.xlu0 %2524
    %2526 = vrot.lane.b32.xlu0 %v2287, 1
    %v2527 = vpop.permute.xlu0 %2526
    %2528 = vrot.lane.b32.xlu0 %v2288, 1
    %v2529 = vpop.permute.xlu0 %2528
    %2530 = vrot.lane.b32.xlu0 %v2289, 1
    %v2531 = vpop.permute.xlu0 %2530
    %2532 = vrot.lane.b32.xlu0 %v2290, 1
    %v2533 = vpop.permute.xlu0 %2532
    %2534 = vrot.lane.b32.xlu0 %v2291, 1
    %v2535 = vpop.permute.xlu0 %2534
    %2536 = vrot.lane.b32.xlu0 %v2292, 1
    %v2537 = vpop.permute.xlu0 %2536
    %2538 = vrot.lane.b32.xlu0 %v2293, 1
    %v2539 = vpop.permute.xlu0 %2538
    %2540 = vrot.lane.b32.xlu0 %v2294, 1
    %v2541 = vpop.permute.xlu0 %2540
    %2542 = vrot.lane.b32.xlu0 %v2295, 1
    %v2543 = vpop.permute.xlu0 %2542
    %2544 = vrot.lane.b32.xlu0 %v2296, 1
    %v2545 = vpop.permute.xlu0 %2544
    %2546 = vrot.lane.b32.xlu0 %v2297, 1
    %v2547 = vpop.permute.xlu0 %2546
    %2548 = vrot.lane.b32.xlu0 %v2298, 1
    %v2549 = vpop.permute.xlu0 %2548
    %2550 = vrot.lane.b32.xlu0 %v2299, 1
    %v2551 = vpop.permute.xlu0 %2550
    %2552 = vrot.lane.b32.xlu0 %v2300, 1
    %v2553 = vpop.permute.xlu0 %2552
    %2554 = vrot.lane.b32.xlu0 %v2301, 1
    %v2555 = vpop.permute.xlu0 %2554
    %2556 = vrot.lane.b32.xlu0 %v2302, 1
    %v2557 = vpop.permute.xlu0 %2556
    %2558 = vrot.lane.b32.xlu0 %v2303, 1
    %v2559 = vpop.permute.xlu0 %2558
    %2560 = vrot.lane.b32.xlu0 %v2304, 1
    %v2561 = vpop.permute.xlu0 %2560
    %2562 = vrot.lane.b32.xlu0 %v2305, 1
    %v2563 = vpop.permute.xlu0 %2562
    %2564 = vrot.lane.b32.xlu0 %v2306, 1
    %v2565 = vpop.permute.xlu0 %2564
    %2566 = vrot.lane.b32.xlu0 %v2307, 1
    %v2567 = vpop.permute.xlu0 %2566
    %2568 = vrot.lane.b32.xlu0 %v2308, 1
    %v2569 = vpop.permute.xlu0 %2568
    %2570 = vrot.lane.b32.xlu0 %v2309, 1
    %v2571 = vpop.permute.xlu0 %2570
    %2572 = vrot.lane.b32.xlu0 %v2310, 1
    %v2573 = vpop.permute.xlu0 %2572
    %2574 = vrot.lane.b32.xlu0 %v2311, 1
    %v2575 = vpop.permute.xlu0 %2574
    %2576 = vrot.lane.b32.xlu0 %v2312, 1
    %v2577 = vpop.permute.xlu0 %2576
    %2578 = vrot.lane.b32.xlu0 %v2313, 1
    %v2579 = vpop.permute.xlu0 %2578
    %2580 = vrot.lane.b32.xlu0 %v2314, 1
    %v2581 = vpop.permute.xlu0 %2580
    %2582 = vrot.lane.b32.xlu0 %v2315, 1
    %v2583 = vpop.permute.xlu0 %2582
    %2584 = vrot.lane.b32.xlu0 %v2316, 1
    %v2585 = vpop.permute.xlu0 %2584
    %2586 = vrot.lane.b32.xlu0 %v2317, 1
    %v2587 = vpop.permute.xlu0 %2586
    %2588 = vrot.lane.b32.xlu0 %v2318, 1
    %v2589 = vpop.permute.xlu0 %2588
    %2590 = vrot.lane.b32.xlu0 %v2319, 1
    %v2591 = vpop.permute.xlu0 %2590
    %2592 = vrot.lane.b32.xlu0 %v2320, 1
    %v2593 = vpop.permute.xlu0 %2592
    %2594 = vrot.lane.b32.xlu0 %v2321, 1
    %v2595 = vpop.permute.xlu0 %2594
    %2596 = vrot.lane.b32.xlu0 %v2322, 1
    %v2597 = vpop.permute.xlu0 %2596
    %2598 = vrot.lane.b32.xlu0 %v2323, 1
    %v2599 = vpop.permute.xlu0 %2598
    %2600 = vrot.lane.b32.xlu0 %v2324, 1
    %v2601 = vpop.permute.xlu0 %2600
    %2602 = vrot.lane.b32.xlu0 %v2325, 1
    %v2603 = vpop.permute.xlu0 %2602
    %2604 = vrot.lane.b32.xlu0 %v2326, 1
    %v2605 = vpop.permute.xlu0 %2604
    %2606 = vrot.lane.b32.xlu0 %v2327, 1
    %v2607 = vpop.permute.xlu0 %2606
    %2608 = vrot.lane.b32.xlu0 %v2328, 1
    %v2609 = vpop.permute.xlu0 %2608
    %2610 = vrot.lane.b32.xlu0 %v2329, 1
    %v2611 = vpop.permute.xlu0 %2610
    %2612 = vrot.lane.b32.xlu0 %v2330, 1
    %v2613 = vpop.permute.xlu0 %2612
    %2614 = vrot.lane.b32.xlu0 %v2331, 1
    %v2615 = vpop.permute.xlu0 %2614
    %2616 = vrot.lane.b32.xlu0 %v2332, 1
    %v2617 = vpop.permute.xlu0 %2616
    %2618 = vrot.lane.b32.xlu0 %v2333, 1
    %v2619 = vpop.permute.xlu0 %2618
    %2620 = vrot.lane.b32.xlu0 %v2334, 1
    %v2621 = vpop.permute.xlu0 %2620
    %2622 = vrot.lane.b32.xlu0 %v2335, 1
    %v2623 = vpop.permute.xlu0 %2622
    %v2624 = vsel %vm1084, 1, 0
    %vm2625 = vcmp.eq.s32.totalorder %v2624, 1
    %v2626 = vsel %vm2625, 0.0, %v2433
    %v2627 = vsel %vm2625, 0.0, %v2435
    %v2628 = vsel %vm2625, 0.0, %v2437
    %v2629 = vsel %vm2625, 0.0, %v2439
    %v2630 = vsel %vm2625, 0.0, %v2441
    %v2631 = vsel %vm2625, 0.0, %v2443
    %v2632 = vsel %vm2625, 0.0, %v2445
    %v2633 = vsel %vm2625, 0.0, %v2447
    %v2634 = vsel %vm2625, 0.0, %v2449
    %v2635 = vsel %vm2625, 0.0, %v2451
    %v2636 = vsel %vm2625, 0.0, %v2453
    %v2637 = vsel %vm2625, 0.0, %v2455
    %v2638 = vsel %vm2625, 0.0, %v2457
    %v2639 = vsel %vm2625, 0.0, %v2459
    %v2640 = vsel %vm2625, 0.0, %v2461
    %v2641 = vsel %vm2625, 0.0, %v2463
    %v2642 = vsel %vm2625, 0.0, %v2465
    %v2643 = vsel %vm2625, 0.0, %v2467
    %v2644 = vsel %vm2625, 0.0, %v2469
    %v2645 = vsel %vm2625, 0.0, %v2471
    %v2646 = vsel %vm2625, 0.0, %v2473
    %v2647 = vsel %vm2625, 0.0, %v2475
    %v2648 = vsel %vm2625, 0.0, %v2477
    %v2649 = vsel %vm2625, 0.0, %v2479
    %v2650 = vsel %vm2625, 0.0, %v2481
    %v2651 = vsel %vm2625, 0.0, %v2483
    %v2652 = vsel %vm2625, 0.0, %v2485
    %v2653 = vsel %vm2625, 0.0, %v2487
    %v2654 = vsel %vm2625, 0.0, %v2489
    %v2655 = vsel %vm2625, 0.0, %v2491
    %v2656 = vsel %vm2625, 0.0, %v2493
    %v2657 = vsel %vm2625, 0.0, %v2495
    %v2658 = vsel %vm2625, 0.0, %v2497
    %v2659 = vsel %vm2625, 0.0, %v2499
    %v2660 = vsel %vm2625, 0.0, %v2501
    %v2661 = vsel %vm2625, 0.0, %v2503
    %v2662 = vsel %vm2625, 0.0, %v2505
    %v2663 = vsel %vm2625, 0.0, %v2507
    %v2664 = vsel %vm2625, 0.0, %v2509
    %v2665 = vsel %vm2625, 0.0, %v2511
    %v2666 = vsel %vm2625, 0.0, %v2513
    %v2667 = vsel %vm2625, 0.0, %v2515
    %v2668 = vsel %vm2625, 0.0, %v2517
    %v2669 = vsel %vm2625, 0.0, %v2519
    %v2670 = vsel %vm2625, 0.0, %v2521
    %v2671 = vsel %vm2625, 0.0, %v2523
    %v2672 = vsel %vm2625, 0.0, %v2525
    %v2673 = vsel %vm2625, 0.0, %v2527
    %v2674 = vsel %vm2625, 0.0, %v2529
    %v2675 = vsel %vm2625, 0.0, %v2531
    %v2676 = vsel %vm2625, 0.0, %v2533
    %v2677 = vsel %vm2625, 0.0, %v2535
    %v2678 = vsel %vm2625, 0.0, %v2537
    %v2679 = vsel %vm2625, 0.0, %v2539
    %v2680 = vsel %vm2625, 0.0, %v2541
    %v2681 = vsel %vm2625, 0.0, %v2543
    %v2682 = vsel %vm2625, 0.0, %v2545
    %v2683 = vsel %vm2625, 0.0, %v2547
    %v2684 = vsel %vm2625, 0.0, %v2549
    %v2685 = vsel %vm2625, 0.0, %v2551
    %v2686 = vsel %vm2625, 0.0, %v2553
    %v2687 = vsel %vm2625, 0.0, %v2555
    %v2688 = vsel %vm2625, 0.0, %v2557
    %v2689 = vsel %vm2625, 0.0, %v2559
    %v2690 = vsel %vm2625, 0.0, %v2561
    %v2691 = vsel %vm2625, 0.0, %v2563
    %v2692 = vsel %vm2625, 0.0, %v2565
    %v2693 = vsel %vm2625, 0.0, %v2567
    %v2694 = vsel %vm2625, 0.0, %v2569
    %v2695 = vsel %vm2625, 0.0, %v2571
    %v2696 = vsel %vm2625, 0.0, %v2573
    %v2697 = vsel %vm2625, 0.0, %v2575
    %v2698 = vsel %vm2625, 0.0, %v2577
    %v2699 = vsel %vm2625, 0.0, %v2579
    %v2700 = vsel %vm2625, 0.0, %v2581
    %v2701 = vsel %vm2625, 0.0, %v2583
    %v2702 = vsel %vm2625, 0.0, %v2585
    %v2703 = vsel %vm2625, 0.0, %v2587
    %v2704 = vsel %vm2625, 0.0, %v2589
    %v2705 = vsel %vm2625, 0.0, %v2591
    %v2706 = vsel %vm2625, 0.0, %v2593
    %v2707 = vsel %vm2625, 0.0, %v2595
    %v2708 = vsel %vm2625, 0.0, %v2597
    %v2709 = vsel %vm2625, 0.0, %v2599
    %v2710 = vsel %vm2625, 0.0, %v2601
    %v2711 = vsel %vm2625, 0.0, %v2603
    %v2712 = vsel %vm2625, 0.0, %v2605
    %v2713 = vsel %vm2625, 0.0, %v2607
    %v2714 = vsel %vm2625, 0.0, %v2609
    %v2715 = vsel %vm2625, 0.0, %v2611
    %v2716 = vsel %vm2625, 0.0, %v2613
    %v2717 = vsel %vm2625, 0.0, %v2615
    %v2718 = vsel %vm2625, 0.0, %v2617
    %v2719 = vsel %vm2625, 0.0, %v2619
    %v2720 = vsel %vm2625, 0.0, %v2621
    %v2721 = vsel %vm2625, 0.0, %v2623
    %2722 = vrot.lane.b32.xlu0 %v2240, 127
    %v2723 = vpop.permute.xlu0 %2722
    %2724 = vrot.lane.b32.xlu0 %v2241, 127
    %v2725 = vpop.permute.xlu0 %2724
    %2726 = vrot.lane.b32.xlu0 %v2242, 127
    %v2727 = vpop.permute.xlu0 %2726
    %2728 = vrot.lane.b32.xlu0 %v2243, 127
    %v2729 = vpop.permute.xlu0 %2728
    %2730 = vrot.lane.b32.xlu0 %v2244, 127
    %v2731 = vpop.permute.xlu0 %2730
    %2732 = vrot.lane.b32.xlu0 %v2245, 127
    %v2733 = vpop.permute.xlu0 %2732
    %2734 = vrot.lane.b32.xlu0 %v2246, 127
    %v2735 = vpop.permute.xlu0 %2734
    %2736 = vrot.lane.b32.xlu0 %v2247, 127
    %v2737 = vpop.permute.xlu0 %2736
    %2738 = vrot.lane.b32.xlu0 %v2248, 127
    %v2739 = vpop.permute.xlu0 %2738
    %2740 = vrot.lane.b32.xlu0 %v2249, 127
    %v2741 = vpop.permute.xlu0 %2740
    %2742 = vrot.lane.b32.xlu0 %v2250, 127
    %v2743 = vpop.permute.xlu0 %2742
    %2744 = vrot.lane.b32.xlu0 %v2251, 127
    %v2745 = vpop.permute.xlu0 %2744
    %2746 = vrot.lane.b32.xlu0 %v2252, 127
    %v2747 = vpop.permute.xlu0 %2746
    %2748 = vrot.lane.b32.xlu0 %v2253, 127
    %v2749 = vpop.permute.xlu0 %2748
    %2750 = vrot.lane.b32.xlu0 %v2254, 127
    %v2751 = vpop.permute.xlu0 %2750
    %2752 = vrot.lane.b32.xlu0 %v2255, 127
    %v2753 = vpop.permute.xlu0 %2752
    %2754 = vrot.lane.b32.xlu0 %v2256, 127
    %v2755 = vpop.permute.xlu0 %2754
    %2756 = vrot.lane.b32.xlu0 %v2257, 127
    %v2757 = vpop.permute.xlu0 %2756
    %2758 = vrot.lane.b32.xlu0 %v2258, 127
    %v2759 = vpop.permute.xlu0 %2758
    %2760 = vrot.lane.b32.xlu0 %v2259, 127
    %v2761 = vpop.permute.xlu0 %2760
    %2762 = vrot.lane.b32.xlu0 %v2260, 127
    %v2763 = vpop.permute.xlu0 %2762
    %2764 = vrot.lane.b32.xlu0 %v2261, 127
    %v2765 = vpop.permute.xlu0 %2764
    %2766 = vrot.lane.b32.xlu0 %v2262, 127
    %v2767 = vpop.permute.xlu0 %2766
    %2768 = vrot.lane.b32.xlu0 %v2263, 127
    %v2769 = vpop.permute.xlu0 %2768
    %2770 = vrot.lane.b32.xlu0 %v2264, 127
    %v2771 = vpop.permute.xlu0 %2770
    %2772 = vrot.lane.b32.xlu0 %v2265, 127
    %v2773 = vpop.permute.xlu0 %2772
    %2774 = vrot.lane.b32.xlu0 %v2266, 127
    %v2775 = vpop.permute.xlu0 %2774
    %2776 = vrot.lane.b32.xlu0 %v2267, 127
    %v2777 = vpop.permute.xlu0 %2776
    %2778 = vrot.lane.b32.xlu0 %v2268, 127
    %v2779 = vpop.permute.xlu0 %2778
    %2780 = vrot.lane.b32.xlu0 %v2269, 127
    %v2781 = vpop.permute.xlu0 %2780
    %2782 = vrot.lane.b32.xlu0 %v2270, 127
    %v2783 = vpop.permute.xlu0 %2782
    %2784 = vrot.lane.b32.xlu0 %v2271, 127
    %v2785 = vpop.permute.xlu0 %2784
    %2786 = vrot.lane.b32.xlu0 %v2272, 127
    %v2787 = vpop.permute.xlu0 %2786
    %2788 = vrot.lane.b32.xlu0 %v2273, 127
    %v2789 = vpop.permute.xlu0 %2788
    %2790 = vrot.lane.b32.xlu0 %v2274, 127
    %v2791 = vpop.permute.xlu0 %2790
    %2792 = vrot.lane.b32.xlu0 %v2275, 127
    %v2793 = vpop.permute.xlu0 %2792
    %2794 = vrot.lane.b32.xlu0 %v2276, 127
    %v2795 = vpop.permute.xlu0 %2794
    %2796 = vrot.lane.b32.xlu0 %v2277, 127
    %v2797 = vpop.permute.xlu0 %2796
    %2798 = vrot.lane.b32.xlu0 %v2278, 127
    %v2799 = vpop.permute.xlu0 %2798
    %2800 = vrot.lane.b32.xlu0 %v2279, 127
    %v2801 = vpop.permute.xlu0 %2800
    %2802 = vrot.lane.b32.xlu0 %v2280, 127
    %v2803 = vpop.permute.xlu0 %2802
    %2804 = vrot.lane.b32.xlu0 %v2281, 127
    %v2805 = vpop.permute.xlu0 %2804
    %2806 = vrot.lane.b32.xlu0 %v2282, 127
    %v2807 = vpop.permute.xlu0 %2806
    %2808 = vrot.lane.b32.xlu0 %v2283, 127
    %v2809 = vpop.permute.xlu0 %2808
    %2810 = vrot.lane.b32.xlu0 %v2284, 127
    %v2811 = vpop.permute.xlu0 %2810
    %2812 = vrot.lane.b32.xlu0 %v2285, 127
    %v2813 = vpop.permute.xlu0 %2812
    %2814 = vrot.lane.b32.xlu0 %v2286, 127
    %v2815 = vpop.permute.xlu0 %2814
    %2816 = vrot.lane.b32.xlu0 %v2287, 127
    %v2817 = vpop.permute.xlu0 %2816
    %2818 = vrot.lane.b32.xlu0 %v2288, 127
    %v2819 = vpop.permute.xlu0 %2818
    %2820 = vrot.lane.b32.xlu0 %v2289, 127
    %v2821 = vpop.permute.xlu0 %2820
    %2822 = vrot.lane.b32.xlu0 %v2290, 127
    %v2823 = vpop.permute.xlu0 %2822
    %2824 = vrot.lane.b32.xlu0 %v2291, 127
    %v2825 = vpop.permute.xlu0 %2824
    %2826 = vrot.lane.b32.xlu0 %v2292, 127
    %v2827 = vpop.permute.xlu0 %2826
    %2828 = vrot.lane.b32.xlu0 %v2293, 127
    %v2829 = vpop.permute.xlu0 %2828
    %2830 = vrot.lane.b32.xlu0 %v2294, 127
    %v2831 = vpop.permute.xlu0 %2830
    %2832 = vrot.lane.b32.xlu0 %v2295, 127
    %v2833 = vpop.permute.xlu0 %2832
    %2834 = vrot.lane.b32.xlu0 %v2296, 127
    %v2835 = vpop.permute.xlu0 %2834
    %2836 = vrot.lane.b32.xlu0 %v2297, 127
    %v2837 = vpop.permute.xlu0 %2836
    %2838 = vrot.lane.b32.xlu0 %v2298, 127
    %v2839 = vpop.permute.xlu0 %2838
    %2840 = vrot.lane.b32.xlu0 %v2299, 127
    %v2841 = vpop.permute.xlu0 %2840
    %2842 = vrot.lane.b32.xlu0 %v2300, 127
    %v2843 = vpop.permute.xlu0 %2842
    %2844 = vrot.lane.b32.xlu0 %v2301, 127
    %v2845 = vpop.permute.xlu0 %2844
    %2846 = vrot.lane.b32.xlu0 %v2302, 127
    %v2847 = vpop.permute.xlu0 %2846
    %2848 = vrot.lane.b32.xlu0 %v2303, 127
    %v2849 = vpop.permute.xlu0 %2848
    %2850 = vrot.lane.b32.xlu0 %v2304, 127
    %v2851 = vpop.permute.xlu0 %2850
    %2852 = vrot.lane.b32.xlu0 %v2305, 127
    %v2853 = vpop.permute.xlu0 %2852
    %2854 = vrot.lane.b32.xlu0 %v2306, 127
    %v2855 = vpop.permute.xlu0 %2854
    %2856 = vrot.lane.b32.xlu0 %v2307, 127
    %v2857 = vpop.permute.xlu0 %2856
    %2858 = vrot.lane.b32.xlu0 %v2308, 127
    %v2859 = vpop.permute.xlu0 %2858
    %2860 = vrot.lane.b32.xlu0 %v2309, 127
    %v2861 = vpop.permute.xlu0 %2860
    %2862 = vrot.lane.b32.xlu0 %v2310, 127
    %v2863 = vpop.permute.xlu0 %2862
    %2864 = vrot.lane.b32.xlu0 %v2311, 127
    %v2865 = vpop.permute.xlu0 %2864
    %2866 = vrot.lane.b32.xlu0 %v2312, 127
    %v2867 = vpop.permute.xlu0 %2866
    %2868 = vrot.lane.b32.xlu0 %v2313, 127
    %v2869 = vpop.permute.xlu0 %2868
    %2870 = vrot.lane.b32.xlu0 %v2314, 127
    %v2871 = vpop.permute.xlu0 %2870
    %2872 = vrot.lane.b32.xlu0 %v2315, 127
    %v2873 = vpop.permute.xlu0 %2872
    %2874 = vrot.lane.b32.xlu0 %v2316, 127
    %v2875 = vpop.permute.xlu0 %2874
    %2876 = vrot.lane.b32.xlu0 %v2317, 127
    %v2877 = vpop.permute.xlu0 %2876
    %2878 = vrot.lane.b32.xlu0 %v2318, 127
    %v2879 = vpop.permute.xlu0 %2878
    %2880 = vrot.lane.b32.xlu0 %v2319, 127
    %v2881 = vpop.permute.xlu0 %2880
    %2882 = vrot.lane.b32.xlu0 %v2320, 127
    %v2883 = vpop.permute.xlu0 %2882
    %2884 = vrot.lane.b32.xlu0 %v2321, 127
    %v2885 = vpop.permute.xlu0 %2884
    %2886 = vrot.lane.b32.xlu0 %v2322, 127
    %v2887 = vpop.permute.xlu0 %2886
    %2888 = vrot.lane.b32.xlu0 %v2323, 127
    %v2889 = vpop.permute.xlu0 %2888
    %2890 = vrot.lane.b32.xlu0 %v2324, 127
    %v2891 = vpop.permute.xlu0 %2890
    %2892 = vrot.lane.b32.xlu0 %v2325, 127
    %v2893 = vpop.permute.xlu0 %2892
    %2894 = vrot.lane.b32.xlu0 %v2326, 127
    %v2895 = vpop.permute.xlu0 %2894
    %2896 = vrot.lane.b32.xlu0 %v2327, 127
    %v2897 = vpop.permute.xlu0 %2896
    %2898 = vrot.lane.b32.xlu0 %v2328, 127
    %v2899 = vpop.permute.xlu0 %2898
    %2900 = vrot.lane.b32.xlu0 %v2329, 127
    %v2901 = vpop.permute.xlu0 %2900
    %2902 = vrot.lane.b32.xlu0 %v2330, 127
    %v2903 = vpop.permute.xlu0 %2902
    %2904 = vrot.lane.b32.xlu0 %v2331, 127
    %v2905 = vpop.permute.xlu0 %2904
    %2906 = vrot.lane.b32.xlu0 %v2332, 127
    %v2907 = vpop.permute.xlu0 %2906
    %2908 = vrot.lane.b32.xlu0 %v2333, 127
    %v2909 = vpop.permute.xlu0 %2908
    %2910 = vrot.lane.b32.xlu0 %v2334, 127
    %v2911 = vpop.permute.xlu0 %2910
    %2912 = vrot.lane.b32.xlu0 %v2335, 127
    %v2913 = vpop.permute.xlu0 %2912
    %v2914 = vsel %vm1085, 1, 0
    %vm2915 = vcmp.eq.s32.totalorder %v2914, 1
    %v2916 = vsel %vm2915, 0.0, %v2723
    %v2917 = vsel %vm2915, 0.0, %v2725
    %v2918 = vsel %vm2915, 0.0, %v2727
    %v2919 = vsel %vm2915, 0.0, %v2729
    %v2920 = vsel %vm2915, 0.0, %v2731
    %v2921 = vsel %vm2915, 0.0, %v2733
    %v2922 = vsel %vm2915, 0.0, %v2735
    %v2923 = vsel %vm2915, 0.0, %v2737
    %v2924 = vsel %vm2915, 0.0, %v2739
    %v2925 = vsel %vm2915, 0.0, %v2741
    %v2926 = vsel %vm2915, 0.0, %v2743
    %v2927 = vsel %vm2915, 0.0, %v2745
    %v2928 = vsel %vm2915, 0.0, %v2747
    %v2929 = vsel %vm2915, 0.0, %v2749
    %v2930 = vsel %vm2915, 0.0, %v2751
    %v2931 = vsel %vm2915, 0.0, %v2753
    %v2932 = vsel %vm2915, 0.0, %v2755
    %v2933 = vsel %vm2915, 0.0, %v2757
    %v2934 = vsel %vm2915, 0.0, %v2759
    %v2935 = vsel %vm2915, 0.0, %v2761
    %v2936 = vsel %vm2915, 0.0, %v2763
    %v2937 = vsel %vm2915, 0.0, %v2765
    %v2938 = vsel %vm2915, 0.0, %v2767
    %v2939 = vsel %vm2915, 0.0, %v2769
    %v2940 = vsel %vm2915, 0.0, %v2771
    %v2941 = vsel %vm2915, 0.0, %v2773
    %v2942 = vsel %vm2915, 0.0, %v2775
    %v2943 = vsel %vm2915, 0.0, %v2777
    %v2944 = vsel %vm2915, 0.0, %v2779
    %v2945 = vsel %vm2915, 0.0, %v2781
    %v2946 = vsel %vm2915, 0.0, %v2783
    %v2947 = vsel %vm2915, 0.0, %v2785
    %v2948 = vsel %vm2915, 0.0, %v2787
    %v2949 = vsel %vm2915, 0.0, %v2789
    %v2950 = vsel %vm2915, 0.0, %v2791
    %v2951 = vsel %vm2915, 0.0, %v2793
    %v2952 = vsel %vm2915, 0.0, %v2795
    %v2953 = vsel %vm2915, 0.0, %v2797
    %v2954 = vsel %vm2915, 0.0, %v2799
    %v2955 = vsel %vm2915, 0.0, %v2801
    %v2956 = vsel %vm2915, 0.0, %v2803
    %v2957 = vsel %vm2915, 0.0, %v2805
    %v2958 = vsel %vm2915, 0.0, %v2807
    %v2959 = vsel %vm2915, 0.0, %v2809
    %v2960 = vsel %vm2915, 0.0, %v2811
    %v2961 = vsel %vm2915, 0.0, %v2813
    %v2962 = vsel %vm2915, 0.0, %v2815
    %v2963 = vsel %vm2915, 0.0, %v2817
    %v2964 = vsel %vm2915, 0.0, %v2819
    %v2965 = vsel %vm2915, 0.0, %v2821
    %v2966 = vsel %vm2915, 0.0, %v2823
    %v2967 = vsel %vm2915, 0.0, %v2825
    %v2968 = vsel %vm2915, 0.0, %v2827
    %v2969 = vsel %vm2915, 0.0, %v2829
    %v2970 = vsel %vm2915, 0.0, %v2831
    %v2971 = vsel %vm2915, 0.0, %v2833
    %v2972 = vsel %vm2915, 0.0, %v2835
    %v2973 = vsel %vm2915, 0.0, %v2837
    %v2974 = vsel %vm2915, 0.0, %v2839
    %v2975 = vsel %vm2915, 0.0, %v2841
    %v2976 = vsel %vm2915, 0.0, %v2843
    %v2977 = vsel %vm2915, 0.0, %v2845
    %v2978 = vsel %vm2915, 0.0, %v2847
    %v2979 = vsel %vm2915, 0.0, %v2849
    %v2980 = vsel %vm2915, 0.0, %v2851
    %v2981 = vsel %vm2915, 0.0, %v2853
    %v2982 = vsel %vm2915, 0.0, %v2855
    %v2983 = vsel %vm2915, 0.0, %v2857
    %v2984 = vsel %vm2915, 0.0, %v2859
    %v2985 = vsel %vm2915, 0.0, %v2861
    %v2986 = vsel %vm2915, 0.0, %v2863
    %v2987 = vsel %vm2915, 0.0, %v2865
    %v2988 = vsel %vm2915, 0.0, %v2867
    %v2989 = vsel %vm2915, 0.0, %v2869
    %v2990 = vsel %vm2915, 0.0, %v2871
    %v2991 = vsel %vm2915, 0.0, %v2873
    %v2992 = vsel %vm2915, 0.0, %v2875
    %v2993 = vsel %vm2915, 0.0, %v2877
    %v2994 = vsel %vm2915, 0.0, %v2879
    %v2995 = vsel %vm2915, 0.0, %v2881
    %v2996 = vsel %vm2915, 0.0, %v2883
    %v2997 = vsel %vm2915, 0.0, %v2885
    %v2998 = vsel %vm2915, 0.0, %v2887
    %v2999 = vsel %vm2915, 0.0, %v2889
    %v3000 = vsel %vm2915, 0.0, %v2891
    %v3001 = vsel %vm2915, 0.0, %v2893
    %v3002 = vsel %vm2915, 0.0, %v2895
    %v3003 = vsel %vm2915, 0.0, %v2897
    %v3004 = vsel %vm2915, 0.0, %v2899
    %v3005 = vsel %vm2915, 0.0, %v2901
    %v3006 = vsel %vm2915, 0.0, %v2903
    %v3007 = vsel %vm2915, 0.0, %v2905
    %v3008 = vsel %vm2915, 0.0, %v2907
    %v3009 = vsel %vm2915, 0.0, %v2909
    %v3010 = vsel %vm2915, 0.0, %v2911
    %v3011 = vsel %vm2915, 0.0, %v2913
    %v3012 = vsub.f32 %v2626, %v2916
    %v3013 = vsub.f32 %v2627, %v2917
    %v3014 = vsub.f32 %v2628, %v2918
    %v3015 = vsub.f32 %v2629, %v2919
    %v3016 = vsub.f32 %v2630, %v2920
    %v3017 = vsub.f32 %v2631, %v2921
    %v3018 = vsub.f32 %v2632, %v2922
    %v3019 = vsub.f32 %v2633, %v2923
    %v3020 = vsub.f32 %v2634, %v2924
    %v3021 = vsub.f32 %v2635, %v2925
    %v3022 = vsub.f32 %v2636, %v2926
    %v3023 = vsub.f32 %v2637, %v2927
    %v3024 = vsub.f32 %v2638, %v2928
    %v3025 = vsub.f32 %v2639, %v2929
    %v3026 = vsub.f32 %v2640, %v2930
    %v3027 = vsub.f32 %v2641, %v2931
    %v3028 = vsub.f32 %v2642, %v2932
    %v3029 = vsub.f32 %v2643, %v2933
    %v3030 = vsub.f32 %v2644, %v2934
    %v3031 = vsub.f32 %v2645, %v2935
    %v3032 = vsub.f32 %v2646, %v2936
    %v3033 = vsub.f32 %v2647, %v2937
    %v3034 = vsub.f32 %v2648, %v2938
    %v3035 = vsub.f32 %v2649, %v2939
    %v3036 = vsub.f32 %v2650, %v2940
    %v3037 = vsub.f32 %v2651, %v2941
    %v3038 = vsub.f32 %v2652, %v2942
    %v3039 = vsub.f32 %v2653, %v2943
    %v3040 = vsub.f32 %v2654, %v2944
    %v3041 = vsub.f32 %v2655, %v2945
    %v3042 = vsub.f32 %v2656, %v2946
    %v3043 = vsub.f32 %v2657, %v2947
    %v3044 = vsub.f32 %v2658, %v2948
    %v3045 = vsub.f32 %v2659, %v2949
    %v3046 = vsub.f32 %v2660, %v2950
    %v3047 = vsub.f32 %v2661, %v2951
    %v3048 = vsub.f32 %v2662, %v2952
    %v3049 = vsub.f32 %v2663, %v2953
    %v3050 = vsub.f32 %v2664, %v2954
    %v3051 = vsub.f32 %v2665, %v2955
    %v3052 = vsub.f32 %v2666, %v2956
    %v3053 = vsub.f32 %v2667, %v2957
    %v3054 = vsub.f32 %v2668, %v2958
    %v3055 = vsub.f32 %v2669, %v2959
    %v3056 = vsub.f32 %v2670, %v2960
    %v3057 = vsub.f32 %v2671, %v2961
    %v3058 = vsub.f32 %v2672, %v2962
    %v3059 = vsub.f32 %v2673, %v2963
    %v3060 = vsub.f32 %v2674, %v2964
    %v3061 = vsub.f32 %v2675, %v2965
    %v3062 = vsub.f32 %v2676, %v2966
    %v3063 = vsub.f32 %v2677, %v2967
    %v3064 = vsub.f32 %v2678, %v2968
    %v3065 = vsub.f32 %v2679, %v2969
    %v3066 = vsub.f32 %v2680, %v2970
    %v3067 = vsub.f32 %v2681, %v2971
    %v3068 = vsub.f32 %v2682, %v2972
    %v3069 = vsub.f32 %v2683, %v2973
    %v3070 = vsub.f32 %v2684, %v2974
    %v3071 = vsub.f32 %v2685, %v2975
    %v3072 = vsub.f32 %v2686, %v2976
    %v3073 = vsub.f32 %v2687, %v2977
    %v3074 = vsub.f32 %v2688, %v2978
    %v3075 = vsub.f32 %v2689, %v2979
    %v3076 = vsub.f32 %v2690, %v2980
    %v3077 = vsub.f32 %v2691, %v2981
    %v3078 = vsub.f32 %v2692, %v2982
    %v3079 = vsub.f32 %v2693, %v2983
    %v3080 = vsub.f32 %v2694, %v2984
    %v3081 = vsub.f32 %v2695, %v2985
    %v3082 = vsub.f32 %v2696, %v2986
    %v3083 = vsub.f32 %v2697, %v2987
    %v3084 = vsub.f32 %v2698, %v2988
    %v3085 = vsub.f32 %v2699, %v2989
    %v3086 = vsub.f32 %v2700, %v2990
    %v3087 = vsub.f32 %v2701, %v2991
    %v3088 = vsub.f32 %v2702, %v2992
    %v3089 = vsub.f32 %v2703, %v2993
    %v3090 = vsub.f32 %v2704, %v2994
    %v3091 = vsub.f32 %v2705, %v2995
    %v3092 = vsub.f32 %v2706, %v2996
    %v3093 = vsub.f32 %v2707, %v2997
    %v3094 = vsub.f32 %v2708, %v2998
    %v3095 = vsub.f32 %v2709, %v2999
    %v3096 = vsub.f32 %v2710, %v3000
    %v3097 = vsub.f32 %v2711, %v3001
    %v3098 = vsub.f32 %v2712, %v3002
    %v3099 = vsub.f32 %v2713, %v3003
    %v3100 = vsub.f32 %v2714, %v3004
    %v3101 = vsub.f32 %v2715, %v3005
    %v3102 = vsub.f32 %v2716, %v3006
    %v3103 = vsub.f32 %v2717, %v3007
    %v3104 = vsub.f32 %v2718, %v3008
    %v3105 = vsub.f32 %v2719, %v3009
    %v3106 = vsub.f32 %v2720, %v3010
    %v3107 = vsub.f32 %v2721, %v3011
    %3108 = vrot.lane.b32.xlu0 %v2336, 1
    %v3109 = vpop.permute.xlu0 %3108
    %3110 = vrot.lane.b32.xlu0 %v2337, 1
    %v3111 = vpop.permute.xlu0 %3110
    %3112 = vrot.lane.b32.xlu0 %v2338, 1
    %v3113 = vpop.permute.xlu0 %3112
    %3114 = vrot.lane.b32.xlu0 %v2339, 1
    %v3115 = vpop.permute.xlu0 %3114
    %3116 = vrot.lane.b32.xlu0 %v2340, 1
    %v3117 = vpop.permute.xlu0 %3116
    %3118 = vrot.lane.b32.xlu0 %v2341, 1
    %v3119 = vpop.permute.xlu0 %3118
    %3120 = vrot.lane.b32.xlu0 %v2342, 1
    %v3121 = vpop.permute.xlu0 %3120
    %3122 = vrot.lane.b32.xlu0 %v2343, 1
    %v3123 = vpop.permute.xlu0 %3122
    %3124 = vrot.lane.b32.xlu0 %v2344, 1
    %v3125 = vpop.permute.xlu0 %3124
    %3126 = vrot.lane.b32.xlu0 %v2345, 1
    %v3127 = vpop.permute.xlu0 %3126
    %3128 = vrot.lane.b32.xlu0 %v2346, 1
    %v3129 = vpop.permute.xlu0 %3128
    %3130 = vrot.lane.b32.xlu0 %v2347, 1
    %v3131 = vpop.permute.xlu0 %3130
    %3132 = vrot.lane.b32.xlu0 %v2348, 1
    %v3133 = vpop.permute.xlu0 %3132
    %3134 = vrot.lane.b32.xlu0 %v2349, 1
    %v3135 = vpop.permute.xlu0 %3134
    %3136 = vrot.lane.b32.xlu0 %v2350, 1
    %v3137 = vpop.permute.xlu0 %3136
    %3138 = vrot.lane.b32.xlu0 %v2351, 1
    %v3139 = vpop.permute.xlu0 %3138
    %3140 = vrot.lane.b32.xlu0 %v2352, 1
    %v3141 = vpop.permute.xlu0 %3140
    %3142 = vrot.lane.b32.xlu0 %v2353, 1
    %v3143 = vpop.permute.xlu0 %3142
    %3144 = vrot.lane.b32.xlu0 %v2354, 1
    %v3145 = vpop.permute.xlu0 %3144
    %3146 = vrot.lane.b32.xlu0 %v2355, 1
    %v3147 = vpop.permute.xlu0 %3146
    %3148 = vrot.lane.b32.xlu0 %v2356, 1
    %v3149 = vpop.permute.xlu0 %3148
    %3150 = vrot.lane.b32.xlu0 %v2357, 1
    %v3151 = vpop.permute.xlu0 %3150
    %3152 = vrot.lane.b32.xlu0 %v2358, 1
    %v3153 = vpop.permute.xlu0 %3152
    %3154 = vrot.lane.b32.xlu0 %v2359, 1
    %v3155 = vpop.permute.xlu0 %3154
    %3156 = vrot.lane.b32.xlu0 %v2360, 1
    %v3157 = vpop.permute.xlu0 %3156
    %3158 = vrot.lane.b32.xlu0 %v2361, 1
    %v3159 = vpop.permute.xlu0 %3158
    %3160 = vrot.lane.b32.xlu0 %v2362, 1
    %v3161 = vpop.permute.xlu0 %3160
    %3162 = vrot.lane.b32.xlu0 %v2363, 1
    %v3163 = vpop.permute.xlu0 %3162
    %3164 = vrot.lane.b32.xlu0 %v2364, 1
    %v3165 = vpop.permute.xlu0 %3164
    %3166 = vrot.lane.b32.xlu0 %v2365, 1
    %v3167 = vpop.permute.xlu0 %3166
    %3168 = vrot.lane.b32.xlu0 %v2366, 1
    %v3169 = vpop.permute.xlu0 %3168
    %3170 = vrot.lane.b32.xlu0 %v2367, 1
    %v3171 = vpop.permute.xlu0 %3170
    %3172 = vrot.lane.b32.xlu0 %v2368, 1
    %v3173 = vpop.permute.xlu0 %3172
    %3174 = vrot.lane.b32.xlu0 %v2369, 1
    %v3175 = vpop.permute.xlu0 %3174
    %3176 = vrot.lane.b32.xlu0 %v2370, 1
    %v3177 = vpop.permute.xlu0 %3176
    %3178 = vrot.lane.b32.xlu0 %v2371, 1
    %v3179 = vpop.permute.xlu0 %3178
    %3180 = vrot.lane.b32.xlu0 %v2372, 1
    %v3181 = vpop.permute.xlu0 %3180
    %3182 = vrot.lane.b32.xlu0 %v2373, 1
    %v3183 = vpop.permute.xlu0 %3182
    %3184 = vrot.lane.b32.xlu0 %v2374, 1
    %v3185 = vpop.permute.xlu0 %3184
    %3186 = vrot.lane.b32.xlu0 %v2375, 1
    %v3187 = vpop.permute.xlu0 %3186
    %3188 = vrot.lane.b32.xlu0 %v2376, 1
    %v3189 = vpop.permute.xlu0 %3188
    %3190 = vrot.lane.b32.xlu0 %v2377, 1
    %v3191 = vpop.permute.xlu0 %3190
    %3192 = vrot.lane.b32.xlu0 %v2378, 1
    %v3193 = vpop.permute.xlu0 %3192
    %3194 = vrot.lane.b32.xlu0 %v2379, 1
    %v3195 = vpop.permute.xlu0 %3194
    %3196 = vrot.lane.b32.xlu0 %v2380, 1
    %v3197 = vpop.permute.xlu0 %3196
    %3198 = vrot.lane.b32.xlu0 %v2381, 1
    %v3199 = vpop.permute.xlu0 %3198
    %3200 = vrot.lane.b32.xlu0 %v2382, 1
    %v3201 = vpop.permute.xlu0 %3200
    %3202 = vrot.lane.b32.xlu0 %v2383, 1
    %v3203 = vpop.permute.xlu0 %3202
    %3204 = vrot.lane.b32.xlu0 %v2384, 1
    %v3205 = vpop.permute.xlu0 %3204
    %3206 = vrot.lane.b32.xlu0 %v2385, 1
    %v3207 = vpop.permute.xlu0 %3206
    %3208 = vrot.lane.b32.xlu0 %v2386, 1
    %v3209 = vpop.permute.xlu0 %3208
    %3210 = vrot.lane.b32.xlu0 %v2387, 1
    %v3211 = vpop.permute.xlu0 %3210
    %3212 = vrot.lane.b32.xlu0 %v2388, 1
    %v3213 = vpop.permute.xlu0 %3212
    %3214 = vrot.lane.b32.xlu0 %v2389, 1
    %v3215 = vpop.permute.xlu0 %3214
    %3216 = vrot.lane.b32.xlu0 %v2390, 1
    %v3217 = vpop.permute.xlu0 %3216
    %3218 = vrot.lane.b32.xlu0 %v2391, 1
    %v3219 = vpop.permute.xlu0 %3218
    %3220 = vrot.lane.b32.xlu0 %v2392, 1
    %v3221 = vpop.permute.xlu0 %3220
    %3222 = vrot.lane.b32.xlu0 %v2393, 1
    %v3223 = vpop.permute.xlu0 %3222
    %3224 = vrot.lane.b32.xlu0 %v2394, 1
    %v3225 = vpop.permute.xlu0 %3224
    %3226 = vrot.lane.b32.xlu0 %v2395, 1
    %v3227 = vpop.permute.xlu0 %3226
    %3228 = vrot.lane.b32.xlu0 %v2396, 1
    %v3229 = vpop.permute.xlu0 %3228
    %3230 = vrot.lane.b32.xlu0 %v2397, 1
    %v3231 = vpop.permute.xlu0 %3230
    %3232 = vrot.lane.b32.xlu0 %v2398, 1
    %v3233 = vpop.permute.xlu0 %3232
    %3234 = vrot.lane.b32.xlu0 %v2399, 1
    %v3235 = vpop.permute.xlu0 %3234
    %3236 = vrot.lane.b32.xlu0 %v2400, 1
    %v3237 = vpop.permute.xlu0 %3236
    %3238 = vrot.lane.b32.xlu0 %v2401, 1
    %v3239 = vpop.permute.xlu0 %3238
    %3240 = vrot.lane.b32.xlu0 %v2402, 1
    %v3241 = vpop.permute.xlu0 %3240
    %3242 = vrot.lane.b32.xlu0 %v2403, 1
    %v3243 = vpop.permute.xlu0 %3242
    %3244 = vrot.lane.b32.xlu0 %v2404, 1
    %v3245 = vpop.permute.xlu0 %3244
    %3246 = vrot.lane.b32.xlu0 %v2405, 1
    %v3247 = vpop.permute.xlu0 %3246
    %3248 = vrot.lane.b32.xlu0 %v2406, 1
    %v3249 = vpop.permute.xlu0 %3248
    %3250 = vrot.lane.b32.xlu0 %v2407, 1
    %v3251 = vpop.permute.xlu0 %3250
    %3252 = vrot.lane.b32.xlu0 %v2408, 1
    %v3253 = vpop.permute.xlu0 %3252
    %3254 = vrot.lane.b32.xlu0 %v2409, 1
    %v3255 = vpop.permute.xlu0 %3254
    %3256 = vrot.lane.b32.xlu0 %v2410, 1
    %v3257 = vpop.permute.xlu0 %3256
    %3258 = vrot.lane.b32.xlu0 %v2411, 1
    %v3259 = vpop.permute.xlu0 %3258
    %3260 = vrot.lane.b32.xlu0 %v2412, 1
    %v3261 = vpop.permute.xlu0 %3260
    %3262 = vrot.lane.b32.xlu0 %v2413, 1
    %v3263 = vpop.permute.xlu0 %3262
    %3264 = vrot.lane.b32.xlu0 %v2414, 1
    %v3265 = vpop.permute.xlu0 %3264
    %3266 = vrot.lane.b32.xlu0 %v2415, 1
    %v3267 = vpop.permute.xlu0 %3266
    %3268 = vrot.lane.b32.xlu0 %v2416, 1
    %v3269 = vpop.permute.xlu0 %3268
    %3270 = vrot.lane.b32.xlu0 %v2417, 1
    %v3271 = vpop.permute.xlu0 %3270
    %3272 = vrot.lane.b32.xlu0 %v2418, 1
    %v3273 = vpop.permute.xlu0 %3272
    %3274 = vrot.lane.b32.xlu0 %v2419, 1
    %v3275 = vpop.permute.xlu0 %3274
    %3276 = vrot.lane.b32.xlu0 %v2420, 1
    %v3277 = vpop.permute.xlu0 %3276
    %3278 = vrot.lane.b32.xlu0 %v2421, 1
    %v3279 = vpop.permute.xlu0 %3278
    %3280 = vrot.lane.b32.xlu0 %v2422, 1
    %v3281 = vpop.permute.xlu0 %3280
    %3282 = vrot.lane.b32.xlu0 %v2423, 1
    %v3283 = vpop.permute.xlu0 %3282
    %3284 = vrot.lane.b32.xlu0 %v2424, 1
    %v3285 = vpop.permute.xlu0 %3284
    %3286 = vrot.lane.b32.xlu0 %v2425, 1
    %v3287 = vpop.permute.xlu0 %3286
    %3288 = vrot.lane.b32.xlu0 %v2426, 1
    %v3289 = vpop.permute.xlu0 %3288
    %3290 = vrot.lane.b32.xlu0 %v2427, 1
    %v3291 = vpop.permute.xlu0 %3290
    %3292 = vrot.lane.b32.xlu0 %v2428, 1
    %v3293 = vpop.permute.xlu0 %3292
    %3294 = vrot.lane.b32.xlu0 %v2429, 1
    %v3295 = vpop.permute.xlu0 %3294
    %3296 = vrot.lane.b32.xlu0 %v2430, 1
    %v3297 = vpop.permute.xlu0 %3296
    %3298 = vrot.lane.b32.xlu0 %v2431, 1
    %v3299 = vpop.permute.xlu0 %3298
    %v3300 = vsel %vm2625, 0.0, %v3109
    %v3301 = vsel %vm2625, 0.0, %v3111
    %v3302 = vsel %vm2625, 0.0, %v3113
    %v3303 = vsel %vm2625, 0.0, %v3115
    %v3304 = vsel %vm2625, 0.0, %v3117
    %v3305 = vsel %vm2625, 0.0, %v3119
    %v3306 = vsel %vm2625, 0.0, %v3121
    %v3307 = vsel %vm2625, 0.0, %v3123
    %v3308 = vsel %vm2625, 0.0, %v3125
    %v3309 = vsel %vm2625, 0.0, %v3127
    %v3310 = vsel %vm2625, 0.0, %v3129
    %v3311 = vsel %vm2625, 0.0, %v3131
    %v3312 = vsel %vm2625, 0.0, %v3133
    %v3313 = vsel %vm2625, 0.0, %v3135
    %v3314 = vsel %vm2625, 0.0, %v3137
    %v3315 = vsel %vm2625, 0.0, %v3139
    %v3316 = vsel %vm2625, 0.0, %v3141
    %v3317 = vsel %vm2625, 0.0, %v3143
    %v3318 = vsel %vm2625, 0.0, %v3145
    %v3319 = vsel %vm2625, 0.0, %v3147
    %v3320 = vsel %vm2625, 0.0, %v3149
    %v3321 = vsel %vm2625, 0.0, %v3151
    %v3322 = vsel %vm2625, 0.0, %v3153
    %v3323 = vsel %vm2625, 0.0, %v3155
    %v3324 = vsel %vm2625, 0.0, %v3157
    %v3325 = vsel %vm2625, 0.0, %v3159
    %v3326 = vsel %vm2625, 0.0, %v3161
    %v3327 = vsel %vm2625, 0.0, %v3163
    %v3328 = vsel %vm2625, 0.0, %v3165
    %v3329 = vsel %vm2625, 0.0, %v3167
    %v3330 = vsel %vm2625, 0.0, %v3169
    %v3331 = vsel %vm2625, 0.0, %v3171
    %v3332 = vsel %vm2625, 0.0, %v3173
    %v3333 = vsel %vm2625, 0.0, %v3175
    %v3334 = vsel %vm2625, 0.0, %v3177
    %v3335 = vsel %vm2625, 0.0, %v3179
    %v3336 = vsel %vm2625, 0.0, %v3181
    %v3337 = vsel %vm2625, 0.0, %v3183
    %v3338 = vsel %vm2625, 0.0, %v3185
    %v3339 = vsel %vm2625, 0.0, %v3187
    %v3340 = vsel %vm2625, 0.0, %v3189
    %v3341 = vsel %vm2625, 0.0, %v3191
    %v3342 = vsel %vm2625, 0.0, %v3193
    %v3343 = vsel %vm2625, 0.0, %v3195
    %v3344 = vsel %vm2625, 0.0, %v3197
    %v3345 = vsel %vm2625, 0.0, %v3199
    %v3346 = vsel %vm2625, 0.0, %v3201
    %v3347 = vsel %vm2625, 0.0, %v3203
    %v3348 = vsel %vm2625, 0.0, %v3205
    %v3349 = vsel %vm2625, 0.0, %v3207
    %v3350 = vsel %vm2625, 0.0, %v3209
    %v3351 = vsel %vm2625, 0.0, %v3211
    %v3352 = vsel %vm2625, 0.0, %v3213
    %v3353 = vsel %vm2625, 0.0, %v3215
    %v3354 = vsel %vm2625, 0.0, %v3217
    %v3355 = vsel %vm2625, 0.0, %v3219
    %v3356 = vsel %vm2625, 0.0, %v3221
    %v3357 = vsel %vm2625, 0.0, %v3223
    %v3358 = vsel %vm2625, 0.0, %v3225
    %v3359 = vsel %vm2625, 0.0, %v3227
    %v3360 = vsel %vm2625, 0.0, %v3229
    %v3361 = vsel %vm2625, 0.0, %v3231
    %v3362 = vsel %vm2625, 0.0, %v3233
    %v3363 = vsel %vm2625, 0.0, %v3235
    %v3364 = vsel %vm2625, 0.0, %v3237
    %v3365 = vsel %vm2625, 0.0, %v3239
    %v3366 = vsel %vm2625, 0.0, %v3241
    %v3367 = vsel %vm2625, 0.0, %v3243
    %v3368 = vsel %vm2625, 0.0, %v3245
    %v3369 = vsel %vm2625, 0.0, %v3247
    %v3370 = vsel %vm2625, 0.0, %v3249
    %v3371 = vsel %vm2625, 0.0, %v3251
    %v3372 = vsel %vm2625, 0.0, %v3253
    %v3373 = vsel %vm2625, 0.0, %v3255
    %v3374 = vsel %vm2625, 0.0, %v3257
    %v3375 = vsel %vm2625, 0.0, %v3259
    %v3376 = vsel %vm2625, 0.0, %v3261
    %v3377 = vsel %vm2625, 0.0, %v3263
    %v3378 = vsel %vm2625, 0.0, %v3265
    %v3379 = vsel %vm2625, 0.0, %v3267
    %v3380 = vsel %vm2625, 0.0, %v3269
    %v3381 = vsel %vm2625, 0.0, %v3271
    %v3382 = vsel %vm2625, 0.0, %v3273
    %v3383 = vsel %vm2625, 0.0, %v3275
    %v3384 = vsel %vm2625, 0.0, %v3277
    %v3385 = vsel %vm2625, 0.0, %v3279
    %v3386 = vsel %vm2625, 0.0, %v3281
    %v3387 = vsel %vm2625, 0.0, %v3283
    %v3388 = vsel %vm2625, 0.0, %v3285
    %v3389 = vsel %vm2625, 0.0, %v3287
    %v3390 = vsel %vm2625, 0.0, %v3289
    %v3391 = vsel %vm2625, 0.0, %v3291
    %v3392 = vsel %vm2625, 0.0, %v3293
    %v3393 = vsel %vm2625, 0.0, %v3295
    %v3394 = vsel %vm2625, 0.0, %v3297
    %v3395 = vsel %vm2625, 0.0, %v3299
    %v3396 = vmul.f32 %v2336, 2.0
    %v3397 = vmul.f32 %v2337, 2.0
    %v3398 = vmul.f32 %v2338, 2.0
    %v3399 = vmul.f32 %v2339, 2.0
    %v3400 = vmul.f32 %v2340, 2.0
    %v3401 = vmul.f32 %v2341, 2.0
    %v3402 = vmul.f32 %v2342, 2.0
    %v3403 = vmul.f32 %v2343, 2.0
    %v3404 = vmul.f32 %v2344, 2.0
    %v3405 = vmul.f32 %v2345, 2.0
    %v3406 = vmul.f32 %v2346, 2.0
    %v3407 = vmul.f32 %v2347, 2.0
    %v3408 = vmul.f32 %v2348, 2.0
    %v3409 = vmul.f32 %v2349, 2.0
    %v3410 = vmul.f32 %v2350, 2.0
    %v3411 = vmul.f32 %v2351, 2.0
    %v3412 = vmul.f32 %v2352, 2.0
    %v3413 = vmul.f32 %v2353, 2.0
    %v3414 = vmul.f32 %v2354, 2.0
    %v3415 = vmul.f32 %v2355, 2.0
    %v3416 = vmul.f32 %v2356, 2.0
    %v3417 = vmul.f32 %v2357, 2.0
    %v3418 = vmul.f32 %v2358, 2.0
    %v3419 = vmul.f32 %v2359, 2.0
    %v3420 = vmul.f32 %v2360, 2.0
    %v3421 = vmul.f32 %v2361, 2.0
    %v3422 = vmul.f32 %v2362, 2.0
    %v3423 = vmul.f32 %v2363, 2.0
    %v3424 = vmul.f32 %v2364, 2.0
    %v3425 = vmul.f32 %v2365, 2.0
    %v3426 = vmul.f32 %v2366, 2.0
    %v3427 = vmul.f32 %v2367, 2.0
    %v3428 = vmul.f32 %v2368, 2.0
    %v3429 = vmul.f32 %v2369, 2.0
    %v3430 = vmul.f32 %v2370, 2.0
    %v3431 = vmul.f32 %v2371, 2.0
    %v3432 = vmul.f32 %v2372, 2.0
    %v3433 = vmul.f32 %v2373, 2.0
    %v3434 = vmul.f32 %v2374, 2.0
    %v3435 = vmul.f32 %v2375, 2.0
    %v3436 = vmul.f32 %v2376, 2.0
    %v3437 = vmul.f32 %v2377, 2.0
    %v3438 = vmul.f32 %v2378, 2.0
    %v3439 = vmul.f32 %v2379, 2.0
    %v3440 = vmul.f32 %v2380, 2.0
    %v3441 = vmul.f32 %v2381, 2.0
    %v3442 = vmul.f32 %v2382, 2.0
    %v3443 = vmul.f32 %v2383, 2.0
    %v3444 = vmul.f32 %v2384, 2.0
    %v3445 = vmul.f32 %v2385, 2.0
    %v3446 = vmul.f32 %v2386, 2.0
    %v3447 = vmul.f32 %v2387, 2.0
    %v3448 = vmul.f32 %v2388, 2.0
    %v3449 = vmul.f32 %v2389, 2.0
    %v3450 = vmul.f32 %v2390, 2.0
    %v3451 = vmul.f32 %v2391, 2.0
    %v3452 = vmul.f32 %v2392, 2.0
    %v3453 = vmul.f32 %v2393, 2.0
    %v3454 = vmul.f32 %v2394, 2.0
    %v3455 = vmul.f32 %v2395, 2.0
    %v3456 = vmul.f32 %v2396, 2.0
    %v3457 = vmul.f32 %v2397, 2.0
    %v3458 = vmul.f32 %v2398, 2.0
    %v3459 = vmul.f32 %v2399, 2.0
    %v3460 = vmul.f32 %v2400, 2.0
    %v3461 = vmul.f32 %v2401, 2.0
    %v3462 = vmul.f32 %v2402, 2.0
    %v3463 = vmul.f32 %v2403, 2.0
    %v3464 = vmul.f32 %v2404, 2.0
    %v3465 = vmul.f32 %v2405, 2.0
    %v3466 = vmul.f32 %v2406, 2.0
    %v3467 = vmul.f32 %v2407, 2.0
    %v3468 = vmul.f32 %v2408, 2.0
    %v3469 = vmul.f32 %v2409, 2.0
    %v3470 = vmul.f32 %v2410, 2.0
    %v3471 = vmul.f32 %v2411, 2.0
    %v3472 = vmul.f32 %v2412, 2.0
    %v3473 = vmul.f32 %v2413, 2.0
    %v3474 = vmul.f32 %v2414, 2.0
    %v3475 = vmul.f32 %v2415, 2.0
    %v3476 = vmul.f32 %v2416, 2.0
    %v3477 = vmul.f32 %v2417, 2.0
    %v3478 = vmul.f32 %v2418, 2.0
    %v3479 = vmul.f32 %v2419, 2.0
    %v3480 = vmul.f32 %v2420, 2.0
    %v3481 = vmul.f32 %v2421, 2.0
    %v3482 = vmul.f32 %v2422, 2.0
    %v3483 = vmul.f32 %v2423, 2.0
    %v3484 = vmul.f32 %v2424, 2.0
    %v3485 = vmul.f32 %v2425, 2.0
    %v3486 = vmul.f32 %v2426, 2.0
    %v3487 = vmul.f32 %v2427, 2.0
    %v3488 = vmul.f32 %v2428, 2.0
    %v3489 = vmul.f32 %v2429, 2.0
    %v3490 = vmul.f32 %v2430, 2.0
    %v3491 = vmul.f32 %v2431, 2.0
    %v3492 = vadd.f32 %v3300, %v3396
    %v3493 = vadd.f32 %v3301, %v3397
    %v3494 = vadd.f32 %v3302, %v3398
    %v3495 = vadd.f32 %v3303, %v3399
    %v3496 = vadd.f32 %v3304, %v3400
    %v3497 = vadd.f32 %v3305, %v3401
    %v3498 = vadd.f32 %v3306, %v3402
    %v3499 = vadd.f32 %v3307, %v3403
    %v3500 = vadd.f32 %v3308, %v3404
    %v3501 = vadd.f32 %v3309, %v3405
    %v3502 = vadd.f32 %v3310, %v3406
    %v3503 = vadd.f32 %v3311, %v3407
    %v3504 = vadd.f32 %v3312, %v3408
    %v3505 = vadd.f32 %v3313, %v3409
    %v3506 = vadd.f32 %v3314, %v3410
    %v3507 = vadd.f32 %v3315, %v3411
    %v3508 = vadd.f32 %v3316, %v3412
    %v3509 = vadd.f32 %v3317, %v3413
    %v3510 = vadd.f32 %v3318, %v3414
    %v3511 = vadd.f32 %v3319, %v3415
    %v3512 = vadd.f32 %v3320, %v3416
    %v3513 = vadd.f32 %v3321, %v3417
    %v3514 = vadd.f32 %v3322, %v3418
    %v3515 = vadd.f32 %v3323, %v3419
    %v3516 = vadd.f32 %v3324, %v3420
    %v3517 = vadd.f32 %v3325, %v3421
    %v3518 = vadd.f32 %v3326, %v3422
    %v3519 = vadd.f32 %v3327, %v3423
    %v3520 = vadd.f32 %v3328, %v3424
    %v3521 = vadd.f32 %v3329, %v3425
    %v3522 = vadd.f32 %v3330, %v3426
    %v3523 = vadd.f32 %v3331, %v3427
    %v3524 = vadd.f32 %v3332, %v3428
    %v3525 = vadd.f32 %v3333, %v3429
    %v3526 = vadd.f32 %v3334, %v3430
    %v3527 = vadd.f32 %v3335, %v3431
    %v3528 = vadd.f32 %v3336, %v3432
    %v3529 = vadd.f32 %v3337, %v3433
    %v3530 = vadd.f32 %v3338, %v3434
    %v3531 = vadd.f32 %v3339, %v3435
    %v3532 = vadd.f32 %v3340, %v3436
    %v3533 = vadd.f32 %v3341, %v3437
    %v3534 = vadd.f32 %v3342, %v3438
    %v3535 = vadd.f32 %v3343, %v3439
    %v3536 = vadd.f32 %v3344, %v3440
    %v3537 = vadd.f32 %v3345, %v3441
    %v3538 = vadd.f32 %v3346, %v3442
    %v3539 = vadd.f32 %v3347, %v3443
    %v3540 = vadd.f32 %v3348, %v3444
    %v3541 = vadd.f32 %v3349, %v3445
    %v3542 = vadd.f32 %v3350, %v3446
    %v3543 = vadd.f32 %v3351, %v3447
    %v3544 = vadd.f32 %v3352, %v3448
    %v3545 = vadd.f32 %v3353, %v3449
    %v3546 = vadd.f32 %v3354, %v3450
    %v3547 = vadd.f32 %v3355, %v3451
    %v3548 = vadd.f32 %v3356, %v3452
    %v3549 = vadd.f32 %v3357, %v3453
    %v3550 = vadd.f32 %v3358, %v3454
    %v3551 = vadd.f32 %v3359, %v3455
    %v3552 = vadd.f32 %v3360, %v3456
    %v3553 = vadd.f32 %v3361, %v3457
    %v3554 = vadd.f32 %v3362, %v3458
    %v3555 = vadd.f32 %v3363, %v3459
    %v3556 = vadd.f32 %v3364, %v3460
    %v3557 = vadd.f32 %v3365, %v3461
    %v3558 = vadd.f32 %v3366, %v3462
    %v3559 = vadd.f32 %v3367, %v3463
    %v3560 = vadd.f32 %v3368, %v3464
    %v3561 = vadd.f32 %v3369, %v3465
    %v3562 = vadd.f32 %v3370, %v3466
    %v3563 = vadd.f32 %v3371, %v3467
    %v3564 = vadd.f32 %v3372, %v3468
    %v3565 = vadd.f32 %v3373, %v3469
    %v3566 = vadd.f32 %v3374, %v3470
    %v3567 = vadd.f32 %v3375, %v3471
    %v3568 = vadd.f32 %v3376, %v3472
    %v3569 = vadd.f32 %v3377, %v3473
    %v3570 = vadd.f32 %v3378, %v3474
    %v3571 = vadd.f32 %v3379, %v3475
    %v3572 = vadd.f32 %v3380, %v3476
    %v3573 = vadd.f32 %v3381, %v3477
    %v3574 = vadd.f32 %v3382, %v3478
    %v3575 = vadd.f32 %v3383, %v3479
    %v3576 = vadd.f32 %v3384, %v3480
    %v3577 = vadd.f32 %v3385, %v3481
    %v3578 = vadd.f32 %v3386, %v3482
    %v3579 = vadd.f32 %v3387, %v3483
    %v3580 = vadd.f32 %v3388, %v3484
    %v3581 = vadd.f32 %v3389, %v3485
    %v3582 = vadd.f32 %v3390, %v3486
    %v3583 = vadd.f32 %v3391, %v3487
    %v3584 = vadd.f32 %v3392, %v3488
    %v3585 = vadd.f32 %v3393, %v3489
    %v3586 = vadd.f32 %v3394, %v3490
    %v3587 = vadd.f32 %v3395, %v3491
    %3588 = vrot.lane.b32.xlu0 %v2336, 127
    %v3589 = vpop.permute.xlu0 %3588
    %3590 = vrot.lane.b32.xlu0 %v2337, 127
    %v3591 = vpop.permute.xlu0 %3590
    %3592 = vrot.lane.b32.xlu0 %v2338, 127
    %v3593 = vpop.permute.xlu0 %3592
    %3594 = vrot.lane.b32.xlu0 %v2339, 127
    %v3595 = vpop.permute.xlu0 %3594
    %3596 = vrot.lane.b32.xlu0 %v2340, 127
    %v3597 = vpop.permute.xlu0 %3596
    %3598 = vrot.lane.b32.xlu0 %v2341, 127
    %v3599 = vpop.permute.xlu0 %3598
    %3600 = vrot.lane.b32.xlu0 %v2342, 127
    %v3601 = vpop.permute.xlu0 %3600
    %3602 = vrot.lane.b32.xlu0 %v2343, 127
    %v3603 = vpop.permute.xlu0 %3602
    %3604 = vrot.lane.b32.xlu0 %v2344, 127
    %v3605 = vpop.permute.xlu0 %3604
    %3606 = vrot.lane.b32.xlu0 %v2345, 127
    %v3607 = vpop.permute.xlu0 %3606
    %3608 = vrot.lane.b32.xlu0 %v2346, 127
    %v3609 = vpop.permute.xlu0 %3608
    %3610 = vrot.lane.b32.xlu0 %v2347, 127
    %v3611 = vpop.permute.xlu0 %3610
    %3612 = vrot.lane.b32.xlu0 %v2348, 127
    %v3613 = vpop.permute.xlu0 %3612
    %3614 = vrot.lane.b32.xlu0 %v2349, 127
    %v3615 = vpop.permute.xlu0 %3614
    %3616 = vrot.lane.b32.xlu0 %v2350, 127
    %v3617 = vpop.permute.xlu0 %3616
    %3618 = vrot.lane.b32.xlu0 %v2351, 127
    %v3619 = vpop.permute.xlu0 %3618
    %3620 = vrot.lane.b32.xlu0 %v2352, 127
    %v3621 = vpop.permute.xlu0 %3620
    %3622 = vrot.lane.b32.xlu0 %v2353, 127
    %v3623 = vpop.permute.xlu0 %3622
    %3624 = vrot.lane.b32.xlu0 %v2354, 127
    %v3625 = vpop.permute.xlu0 %3624
    %3626 = vrot.lane.b32.xlu0 %v2355, 127
    %v3627 = vpop.permute.xlu0 %3626
    %3628 = vrot.lane.b32.xlu0 %v2356, 127
    %v3629 = vpop.permute.xlu0 %3628
    %3630 = vrot.lane.b32.xlu0 %v2357, 127
    %v3631 = vpop.permute.xlu0 %3630
    %3632 = vrot.lane.b32.xlu0 %v2358, 127
    %v3633 = vpop.permute.xlu0 %3632
    %3634 = vrot.lane.b32.xlu0 %v2359, 127
    %v3635 = vpop.permute.xlu0 %3634
    %3636 = vrot.lane.b32.xlu0 %v2360, 127
    %v3637 = vpop.permute.xlu0 %3636
    %3638 = vrot.lane.b32.xlu0 %v2361, 127
    %v3639 = vpop.permute.xlu0 %3638
    %3640 = vrot.lane.b32.xlu0 %v2362, 127
    %v3641 = vpop.permute.xlu0 %3640
    %3642 = vrot.lane.b32.xlu0 %v2363, 127
    %v3643 = vpop.permute.xlu0 %3642
    %3644 = vrot.lane.b32.xlu0 %v2364, 127
    %v3645 = vpop.permute.xlu0 %3644
    %3646 = vrot.lane.b32.xlu0 %v2365, 127
    %v3647 = vpop.permute.xlu0 %3646
    %3648 = vrot.lane.b32.xlu0 %v2366, 127
    %v3649 = vpop.permute.xlu0 %3648
    %3650 = vrot.lane.b32.xlu0 %v2367, 127
    %v3651 = vpop.permute.xlu0 %3650
    %3652 = vrot.lane.b32.xlu0 %v2368, 127
    %v3653 = vpop.permute.xlu0 %3652
    %3654 = vrot.lane.b32.xlu0 %v2369, 127
    %v3655 = vpop.permute.xlu0 %3654
    %3656 = vrot.lane.b32.xlu0 %v2370, 127
    %v3657 = vpop.permute.xlu0 %3656
    %3658 = vrot.lane.b32.xlu0 %v2371, 127
    %v3659 = vpop.permute.xlu0 %3658
    %3660 = vrot.lane.b32.xlu0 %v2372, 127
    %v3661 = vpop.permute.xlu0 %3660
    %3662 = vrot.lane.b32.xlu0 %v2373, 127
    %v3663 = vpop.permute.xlu0 %3662
    %3664 = vrot.lane.b32.xlu0 %v2374, 127
    %v3665 = vpop.permute.xlu0 %3664
    %3666 = vrot.lane.b32.xlu0 %v2375, 127
    %v3667 = vpop.permute.xlu0 %3666
    %3668 = vrot.lane.b32.xlu0 %v2376, 127
    %v3669 = vpop.permute.xlu0 %3668
    %3670 = vrot.lane.b32.xlu0 %v2377, 127
    %v3671 = vpop.permute.xlu0 %3670
    %3672 = vrot.lane.b32.xlu0 %v2378, 127
    %v3673 = vpop.permute.xlu0 %3672
    %3674 = vrot.lane.b32.xlu0 %v2379, 127
    %v3675 = vpop.permute.xlu0 %3674
    %3676 = vrot.lane.b32.xlu0 %v2380, 127
    %v3677 = vpop.permute.xlu0 %3676
    %3678 = vrot.lane.b32.xlu0 %v2381, 127
    %v3679 = vpop.permute.xlu0 %3678
    %3680 = vrot.lane.b32.xlu0 %v2382, 127
    %v3681 = vpop.permute.xlu0 %3680
    %3682 = vrot.lane.b32.xlu0 %v2383, 127
    %v3683 = vpop.permute.xlu0 %3682
    %3684 = vrot.lane.b32.xlu0 %v2384, 127
    %v3685 = vpop.permute.xlu0 %3684
    %3686 = vrot.lane.b32.xlu0 %v2385, 127
    %v3687 = vpop.permute.xlu0 %3686
    %3688 = vrot.lane.b32.xlu0 %v2386, 127
    %v3689 = vpop.permute.xlu0 %3688
    %3690 = vrot.lane.b32.xlu0 %v2387, 127
    %v3691 = vpop.permute.xlu0 %3690
    %3692 = vrot.lane.b32.xlu0 %v2388, 127
    %v3693 = vpop.permute.xlu0 %3692
    %3694 = vrot.lane.b32.xlu0 %v2389, 127
    %v3695 = vpop.permute.xlu0 %3694
    %3696 = vrot.lane.b32.xlu0 %v2390, 127
    %v3697 = vpop.permute.xlu0 %3696
    %3698 = vrot.lane.b32.xlu0 %v2391, 127
    %v3699 = vpop.permute.xlu0 %3698
    %3700 = vrot.lane.b32.xlu0 %v2392, 127
    %v3701 = vpop.permute.xlu0 %3700
    %3702 = vrot.lane.b32.xlu0 %v2393, 127
    %v3703 = vpop.permute.xlu0 %3702
    %3704 = vrot.lane.b32.xlu0 %v2394, 127
    %v3705 = vpop.permute.xlu0 %3704
    %3706 = vrot.lane.b32.xlu0 %v2395, 127
    %v3707 = vpop.permute.xlu0 %3706
    %3708 = vrot.lane.b32.xlu0 %v2396, 127
    %v3709 = vpop.permute.xlu0 %3708
    %3710 = vrot.lane.b32.xlu0 %v2397, 127
    %v3711 = vpop.permute.xlu0 %3710
    %3712 = vrot.lane.b32.xlu0 %v2398, 127
    %v3713 = vpop.permute.xlu0 %3712
    %3714 = vrot.lane.b32.xlu0 %v2399, 127
    %v3715 = vpop.permute.xlu0 %3714
    %3716 = vrot.lane.b32.xlu0 %v2400, 127
    %v3717 = vpop.permute.xlu0 %3716
    %3718 = vrot.lane.b32.xlu0 %v2401, 127
    %v3719 = vpop.permute.xlu0 %3718
    %3720 = vrot.lane.b32.xlu0 %v2402, 127
    %v3721 = vpop.permute.xlu0 %3720
    %3722 = vrot.lane.b32.xlu0 %v2403, 127
    %v3723 = vpop.permute.xlu0 %3722
    %3724 = vrot.lane.b32.xlu0 %v2404, 127
    %v3725 = vpop.permute.xlu0 %3724
    %3726 = vrot.lane.b32.xlu0 %v2405, 127
    %v3727 = vpop.permute.xlu0 %3726
    %3728 = vrot.lane.b32.xlu0 %v2406, 127
    %v3729 = vpop.permute.xlu0 %3728
    %3730 = vrot.lane.b32.xlu0 %v2407, 127
    %v3731 = vpop.permute.xlu0 %3730
    %3732 = vrot.lane.b32.xlu0 %v2408, 127
    %v3733 = vpop.permute.xlu0 %3732
    %3734 = vrot.lane.b32.xlu0 %v2409, 127
    %v3735 = vpop.permute.xlu0 %3734
    %3736 = vrot.lane.b32.xlu0 %v2410, 127
    %v3737 = vpop.permute.xlu0 %3736
    %3738 = vrot.lane.b32.xlu0 %v2411, 127
    %v3739 = vpop.permute.xlu0 %3738
    %3740 = vrot.lane.b32.xlu0 %v2412, 127
    %v3741 = vpop.permute.xlu0 %3740
    %3742 = vrot.lane.b32.xlu0 %v2413, 127
    %v3743 = vpop.permute.xlu0 %3742
    %3744 = vrot.lane.b32.xlu0 %v2414, 127
    %v3745 = vpop.permute.xlu0 %3744
    %3746 = vrot.lane.b32.xlu0 %v2415, 127
    %v3747 = vpop.permute.xlu0 %3746
    %3748 = vrot.lane.b32.xlu0 %v2416, 127
    %v3749 = vpop.permute.xlu0 %3748
    %3750 = vrot.lane.b32.xlu0 %v2417, 127
    %v3751 = vpop.permute.xlu0 %3750
    %3752 = vrot.lane.b32.xlu0 %v2418, 127
    %v3753 = vpop.permute.xlu0 %3752
    %3754 = vrot.lane.b32.xlu0 %v2419, 127
    %v3755 = vpop.permute.xlu0 %3754
    %3756 = vrot.lane.b32.xlu0 %v2420, 127
    %v3757 = vpop.permute.xlu0 %3756
    %3758 = vrot.lane.b32.xlu0 %v2421, 127
    %v3759 = vpop.permute.xlu0 %3758
    %3760 = vrot.lane.b32.xlu0 %v2422, 127
    %v3761 = vpop.permute.xlu0 %3760
    %3762 = vrot.lane.b32.xlu0 %v2423, 127
    %v3763 = vpop.permute.xlu0 %3762
    %3764 = vrot.lane.b32.xlu0 %v2424, 127
    %v3765 = vpop.permute.xlu0 %3764
    %3766 = vrot.lane.b32.xlu0 %v2425, 127
    %v3767 = vpop.permute.xlu0 %3766
    %3768 = vrot.lane.b32.xlu0 %v2426, 127
    %v3769 = vpop.permute.xlu0 %3768
    %3770 = vrot.lane.b32.xlu0 %v2427, 127
    %v3771 = vpop.permute.xlu0 %3770
    %3772 = vrot.lane.b32.xlu0 %v2428, 127
    %v3773 = vpop.permute.xlu0 %3772
    %3774 = vrot.lane.b32.xlu0 %v2429, 127
    %v3775 = vpop.permute.xlu0 %3774
    %3776 = vrot.lane.b32.xlu0 %v2430, 127
    %v3777 = vpop.permute.xlu0 %3776
    %3778 = vrot.lane.b32.xlu0 %v2431, 127
    %v3779 = vpop.permute.xlu0 %3778
    %v3780 = vsel %vm2915, 0.0, %v3589
    %v3781 = vsel %vm2915, 0.0, %v3591
    %v3782 = vsel %vm2915, 0.0, %v3593
    %v3783 = vsel %vm2915, 0.0, %v3595
    %v3784 = vsel %vm2915, 0.0, %v3597
    %v3785 = vsel %vm2915, 0.0, %v3599
    %v3786 = vsel %vm2915, 0.0, %v3601
    %v3787 = vsel %vm2915, 0.0, %v3603
    %v3788 = vsel %vm2915, 0.0, %v3605
    %v3789 = vsel %vm2915, 0.0, %v3607
    %v3790 = vsel %vm2915, 0.0, %v3609
    %v3791 = vsel %vm2915, 0.0, %v3611
    %v3792 = vsel %vm2915, 0.0, %v3613
    %v3793 = vsel %vm2915, 0.0, %v3615
    %v3794 = vsel %vm2915, 0.0, %v3617
    %v3795 = vsel %vm2915, 0.0, %v3619
    %v3796 = vsel %vm2915, 0.0, %v3621
    %v3797 = vsel %vm2915, 0.0, %v3623
    %v3798 = vsel %vm2915, 0.0, %v3625
    %v3799 = vsel %vm2915, 0.0, %v3627
    %v3800 = vsel %vm2915, 0.0, %v3629
    %v3801 = vsel %vm2915, 0.0, %v3631
    %v3802 = vsel %vm2915, 0.0, %v3633
    %v3803 = vsel %vm2915, 0.0, %v3635
    %v3804 = vsel %vm2915, 0.0, %v3637
    %v3805 = vsel %vm2915, 0.0, %v3639
    %v3806 = vsel %vm2915, 0.0, %v3641
    %v3807 = vsel %vm2915, 0.0, %v3643
    %v3808 = vsel %vm2915, 0.0, %v3645
    %v3809 = vsel %vm2915, 0.0, %v3647
    %v3810 = vsel %vm2915, 0.0, %v3649
    %v3811 = vsel %vm2915, 0.0, %v3651
    %v3812 = vsel %vm2915, 0.0, %v3653
    %v3813 = vsel %vm2915, 0.0, %v3655
    %v3814 = vsel %vm2915, 0.0, %v3657
    %v3815 = vsel %vm2915, 0.0, %v3659
    %v3816 = vsel %vm2915, 0.0, %v3661
    %v3817 = vsel %vm2915, 0.0, %v3663
    %v3818 = vsel %vm2915, 0.0, %v3665
    %v3819 = vsel %vm2915, 0.0, %v3667
    %v3820 = vsel %vm2915, 0.0, %v3669
    %v3821 = vsel %vm2915, 0.0, %v3671
    %v3822 = vsel %vm2915, 0.0, %v3673
    %v3823 = vsel %vm2915, 0.0, %v3675
    %v3824 = vsel %vm2915, 0.0, %v3677
    %v3825 = vsel %vm2915, 0.0, %v3679
    %v3826 = vsel %vm2915, 0.0, %v3681
    %v3827 = vsel %vm2915, 0.0, %v3683
    %v3828 = vsel %vm2915, 0.0, %v3685
    %v3829 = vsel %vm2915, 0.0, %v3687
    %v3830 = vsel %vm2915, 0.0, %v3689
    %v3831 = vsel %vm2915, 0.0, %v3691
    %v3832 = vsel %vm2915, 0.0, %v3693
    %v3833 = vsel %vm2915, 0.0, %v3695
    %v3834 = vsel %vm2915, 0.0, %v3697
    %v3835 = vsel %vm2915, 0.0, %v3699
    %v3836 = vsel %vm2915, 0.0, %v3701
    %v3837 = vsel %vm2915, 0.0, %v3703
    %v3838 = vsel %vm2915, 0.0, %v3705
    %v3839 = vsel %vm2915, 0.0, %v3707
    %v3840 = vsel %vm2915, 0.0, %v3709
    %v3841 = vsel %vm2915, 0.0, %v3711
    %v3842 = vsel %vm2915, 0.0, %v3713
    %v3843 = vsel %vm2915, 0.0, %v3715
    %v3844 = vsel %vm2915, 0.0, %v3717
    %v3845 = vsel %vm2915, 0.0, %v3719
    %v3846 = vsel %vm2915, 0.0, %v3721
    %v3847 = vsel %vm2915, 0.0, %v3723
    %v3848 = vsel %vm2915, 0.0, %v3725
    %v3849 = vsel %vm2915, 0.0, %v3727
    %v3850 = vsel %vm2915, 0.0, %v3729
    %v3851 = vsel %vm2915, 0.0, %v3731
    %v3852 = vsel %vm2915, 0.0, %v3733
    %v3853 = vsel %vm2915, 0.0, %v3735
    %v3854 = vsel %vm2915, 0.0, %v3737
    %v3855 = vsel %vm2915, 0.0, %v3739
    %v3856 = vsel %vm2915, 0.0, %v3741
    %v3857 = vsel %vm2915, 0.0, %v3743
    %v3858 = vsel %vm2915, 0.0, %v3745
    %v3859 = vsel %vm2915, 0.0, %v3747
    %v3860 = vsel %vm2915, 0.0, %v3749
    %v3861 = vsel %vm2915, 0.0, %v3751
    %v3862 = vsel %vm2915, 0.0, %v3753
    %v3863 = vsel %vm2915, 0.0, %v3755
    %v3864 = vsel %vm2915, 0.0, %v3757
    %v3865 = vsel %vm2915, 0.0, %v3759
    %v3866 = vsel %vm2915, 0.0, %v3761
    %v3867 = vsel %vm2915, 0.0, %v3763
    %v3868 = vsel %vm2915, 0.0, %v3765
    %v3869 = vsel %vm2915, 0.0, %v3767
    %v3870 = vsel %vm2915, 0.0, %v3769
    %v3871 = vsel %vm2915, 0.0, %v3771
    %v3872 = vsel %vm2915, 0.0, %v3773
    %v3873 = vsel %vm2915, 0.0, %v3775
    %v3874 = vsel %vm2915, 0.0, %v3777
    %v3875 = vsel %vm2915, 0.0, %v3779
    %v3876 = vadd.f32 %v3492, %v3780
    %v3877 = vadd.f32 %v3493, %v3781
    %v3878 = vadd.f32 %v3494, %v3782
    %v3879 = vadd.f32 %v3495, %v3783
    %v3880 = vadd.f32 %v3496, %v3784
    %v3881 = vadd.f32 %v3497, %v3785
    %v3882 = vadd.f32 %v3498, %v3786
    %v3883 = vadd.f32 %v3499, %v3787
    %v3884 = vadd.f32 %v3500, %v3788
    %v3885 = vadd.f32 %v3501, %v3789
    %v3886 = vadd.f32 %v3502, %v3790
    %v3887 = vadd.f32 %v3503, %v3791
    %v3888 = vadd.f32 %v3504, %v3792
    %v3889 = vadd.f32 %v3505, %v3793
    %v3890 = vadd.f32 %v3506, %v3794
    %v3891 = vadd.f32 %v3507, %v3795
    %v3892 = vadd.f32 %v3508, %v3796
    %v3893 = vadd.f32 %v3509, %v3797
    %v3894 = vadd.f32 %v3510, %v3798
    %v3895 = vadd.f32 %v3511, %v3799
    %v3896 = vadd.f32 %v3512, %v3800
    %v3897 = vadd.f32 %v3513, %v3801
    %v3898 = vadd.f32 %v3514, %v3802
    %v3899 = vadd.f32 %v3515, %v3803
    %v3900 = vadd.f32 %v3516, %v3804
    %v3901 = vadd.f32 %v3517, %v3805
    %v3902 = vadd.f32 %v3518, %v3806
    %v3903 = vadd.f32 %v3519, %v3807
    %v3904 = vadd.f32 %v3520, %v3808
    %v3905 = vadd.f32 %v3521, %v3809
    %v3906 = vadd.f32 %v3522, %v3810
    %v3907 = vadd.f32 %v3523, %v3811
    %v3908 = vadd.f32 %v3524, %v3812
    %v3909 = vadd.f32 %v3525, %v3813
    %v3910 = vadd.f32 %v3526, %v3814
    %v3911 = vadd.f32 %v3527, %v3815
    %v3912 = vadd.f32 %v3528, %v3816
    %v3913 = vadd.f32 %v3529, %v3817
    %v3914 = vadd.f32 %v3530, %v3818
    %v3915 = vadd.f32 %v3531, %v3819
    %v3916 = vadd.f32 %v3532, %v3820
    %v3917 = vadd.f32 %v3533, %v3821
    %v3918 = vadd.f32 %v3534, %v3822
    %v3919 = vadd.f32 %v3535, %v3823
    %v3920 = vadd.f32 %v3536, %v3824
    %v3921 = vadd.f32 %v3537, %v3825
    %v3922 = vadd.f32 %v3538, %v3826
    %v3923 = vadd.f32 %v3539, %v3827
    %v3924 = vadd.f32 %v3540, %v3828
    %v3925 = vadd.f32 %v3541, %v3829
    %v3926 = vadd.f32 %v3542, %v3830
    %v3927 = vadd.f32 %v3543, %v3831
    %v3928 = vadd.f32 %v3544, %v3832
    %v3929 = vadd.f32 %v3545, %v3833
    %v3930 = vadd.f32 %v3546, %v3834
    %v3931 = vadd.f32 %v3547, %v3835
    %v3932 = vadd.f32 %v3548, %v3836
    %v3933 = vadd.f32 %v3549, %v3837
    %v3934 = vadd.f32 %v3550, %v3838
    %v3935 = vadd.f32 %v3551, %v3839
    %v3936 = vadd.f32 %v3552, %v3840
    %v3937 = vadd.f32 %v3553, %v3841
    %v3938 = vadd.f32 %v3554, %v3842
    %v3939 = vadd.f32 %v3555, %v3843
    %v3940 = vadd.f32 %v3556, %v3844
    %v3941 = vadd.f32 %v3557, %v3845
    %v3942 = vadd.f32 %v3558, %v3846
    %v3943 = vadd.f32 %v3559, %v3847
    %v3944 = vadd.f32 %v3560, %v3848
    %v3945 = vadd.f32 %v3561, %v3849
    %v3946 = vadd.f32 %v3562, %v3850
    %v3947 = vadd.f32 %v3563, %v3851
    %v3948 = vadd.f32 %v3564, %v3852
    %v3949 = vadd.f32 %v3565, %v3853
    %v3950 = vadd.f32 %v3566, %v3854
    %v3951 = vadd.f32 %v3567, %v3855
    %v3952 = vadd.f32 %v3568, %v3856
    %v3953 = vadd.f32 %v3569, %v3857
    %v3954 = vadd.f32 %v3570, %v3858
    %v3955 = vadd.f32 %v3571, %v3859
    %v3956 = vadd.f32 %v3572, %v3860
    %v3957 = vadd.f32 %v3573, %v3861
    %v3958 = vadd.f32 %v3574, %v3862
    %v3959 = vadd.f32 %v3575, %v3863
    %v3960 = vadd.f32 %v3576, %v3864
    %v3961 = vadd.f32 %v3577, %v3865
    %v3962 = vadd.f32 %v3578, %v3866
    %v3963 = vadd.f32 %v3579, %v3867
    %v3964 = vadd.f32 %v3580, %v3868
    %v3965 = vadd.f32 %v3581, %v3869
    %v3966 = vadd.f32 %v3582, %v3870
    %v3967 = vadd.f32 %v3583, %v3871
    %v3968 = vadd.f32 %v3584, %v3872
    %v3969 = vadd.f32 %v3585, %v3873
    %v3970 = vadd.f32 %v3586, %v3874
    %v3971 = vadd.f32 %v3587, %v3875
    %v3972 = vmul.f32 %v3012, %v3012
    %v3973 = vmul.f32 %v3013, %v3013
    %v3974 = vmul.f32 %v3014, %v3014
    %v3975 = vmul.f32 %v3015, %v3015
    %v3976 = vmul.f32 %v3016, %v3016
    %v3977 = vmul.f32 %v3017, %v3017
    %v3978 = vmul.f32 %v3018, %v3018
    %v3979 = vmul.f32 %v3019, %v3019
    %v3980 = vmul.f32 %v3020, %v3020
    %v3981 = vmul.f32 %v3021, %v3021
    %v3982 = vmul.f32 %v3022, %v3022
    %v3983 = vmul.f32 %v3023, %v3023
    %v3984 = vmul.f32 %v3024, %v3024
    %v3985 = vmul.f32 %v3025, %v3025
    %v3986 = vmul.f32 %v3026, %v3026
    %v3987 = vmul.f32 %v3027, %v3027
    %v3988 = vmul.f32 %v3028, %v3028
    %v3989 = vmul.f32 %v3029, %v3029
    %v3990 = vmul.f32 %v3030, %v3030
    %v3991 = vmul.f32 %v3031, %v3031
    %v3992 = vmul.f32 %v3032, %v3032
    %v3993 = vmul.f32 %v3033, %v3033
    %v3994 = vmul.f32 %v3034, %v3034
    %v3995 = vmul.f32 %v3035, %v3035
    %v3996 = vmul.f32 %v3036, %v3036
    %v3997 = vmul.f32 %v3037, %v3037
    %v3998 = vmul.f32 %v3038, %v3038
    %v3999 = vmul.f32 %v3039, %v3039
    %v4000 = vmul.f32 %v3040, %v3040
    %v4001 = vmul.f32 %v3041, %v3041
    %v4002 = vmul.f32 %v3042, %v3042
    %v4003 = vmul.f32 %v3043, %v3043
    %v4004 = vmul.f32 %v3044, %v3044
    %v4005 = vmul.f32 %v3045, %v3045
    %v4006 = vmul.f32 %v3046, %v3046
    %v4007 = vmul.f32 %v3047, %v3047
    %v4008 = vmul.f32 %v3048, %v3048
    %v4009 = vmul.f32 %v3049, %v3049
    %v4010 = vmul.f32 %v3050, %v3050
    %v4011 = vmul.f32 %v3051, %v3051
    %v4012 = vmul.f32 %v3052, %v3052
    %v4013 = vmul.f32 %v3053, %v3053
    %v4014 = vmul.f32 %v3054, %v3054
    %v4015 = vmul.f32 %v3055, %v3055
    %v4016 = vmul.f32 %v3056, %v3056
    %v4017 = vmul.f32 %v3057, %v3057
    %v4018 = vmul.f32 %v3058, %v3058
    %v4019 = vmul.f32 %v3059, %v3059
    %v4020 = vmul.f32 %v3060, %v3060
    %v4021 = vmul.f32 %v3061, %v3061
    %v4022 = vmul.f32 %v3062, %v3062
    %v4023 = vmul.f32 %v3063, %v3063
    %v4024 = vmul.f32 %v3064, %v3064
    %v4025 = vmul.f32 %v3065, %v3065
    %v4026 = vmul.f32 %v3066, %v3066
    %v4027 = vmul.f32 %v3067, %v3067
    %v4028 = vmul.f32 %v3068, %v3068
    %v4029 = vmul.f32 %v3069, %v3069
    %v4030 = vmul.f32 %v3070, %v3070
    %v4031 = vmul.f32 %v3071, %v3071
    %v4032 = vmul.f32 %v3072, %v3072
    %v4033 = vmul.f32 %v3073, %v3073
    %v4034 = vmul.f32 %v3074, %v3074
    %v4035 = vmul.f32 %v3075, %v3075
    %v4036 = vmul.f32 %v3076, %v3076
    %v4037 = vmul.f32 %v3077, %v3077
    %v4038 = vmul.f32 %v3078, %v3078
    %v4039 = vmul.f32 %v3079, %v3079
    %v4040 = vmul.f32 %v3080, %v3080
    %v4041 = vmul.f32 %v3081, %v3081
    %v4042 = vmul.f32 %v3082, %v3082
    %v4043 = vmul.f32 %v3083, %v3083
    %v4044 = vmul.f32 %v3084, %v3084
    %v4045 = vmul.f32 %v3085, %v3085
    %v4046 = vmul.f32 %v3086, %v3086
    %v4047 = vmul.f32 %v3087, %v3087
    %v4048 = vmul.f32 %v3088, %v3088
    %v4049 = vmul.f32 %v3089, %v3089
    %v4050 = vmul.f32 %v3090, %v3090
    %v4051 = vmul.f32 %v3091, %v3091
    %v4052 = vmul.f32 %v3092, %v3092
    %v4053 = vmul.f32 %v3093, %v3093
    %v4054 = vmul.f32 %v3094, %v3094
    %v4055 = vmul.f32 %v3095, %v3095
    %v4056 = vmul.f32 %v3096, %v3096
    %v4057 = vmul.f32 %v3097, %v3097
    %v4058 = vmul.f32 %v3098, %v3098
    %v4059 = vmul.f32 %v3099, %v3099
    %v4060 = vmul.f32 %v3100, %v3100
    %v4061 = vmul.f32 %v3101, %v3101
    %v4062 = vmul.f32 %v3102, %v3102
    %v4063 = vmul.f32 %v3103, %v3103
    %v4064 = vmul.f32 %v3104, %v3104
    %v4065 = vmul.f32 %v3105, %v3105
    %v4066 = vmul.f32 %v3106, %v3106
    %v4067 = vmul.f32 %v3107, %v3107
    %v4068 = vmul.f32 %v3876, %v3876
    %v4069 = vmul.f32 %v3877, %v3877
    %v4070 = vmul.f32 %v3878, %v3878
    %v4071 = vmul.f32 %v3879, %v3879
    %v4072 = vmul.f32 %v3880, %v3880
    %v4073 = vmul.f32 %v3881, %v3881
    %v4074 = vmul.f32 %v3882, %v3882
    %v4075 = vmul.f32 %v3883, %v3883
    %v4076 = vmul.f32 %v3884, %v3884
    %v4077 = vmul.f32 %v3885, %v3885
    %v4078 = vmul.f32 %v3886, %v3886
    %v4079 = vmul.f32 %v3887, %v3887
    %v4080 = vmul.f32 %v3888, %v3888
    %v4081 = vmul.f32 %v3889, %v3889
    %v4082 = vmul.f32 %v3890, %v3890
    %v4083 = vmul.f32 %v3891, %v3891
    %v4084 = vmul.f32 %v3892, %v3892
    %v4085 = vmul.f32 %v3893, %v3893
    %v4086 = vmul.f32 %v3894, %v3894
    %v4087 = vmul.f32 %v3895, %v3895
    %v4088 = vmul.f32 %v3896, %v3896
    %v4089 = vmul.f32 %v3897, %v3897
    %v4090 = vmul.f32 %v3898, %v3898
    %v4091 = vmul.f32 %v3899, %v3899
    %v4092 = vmul.f32 %v3900, %v3900
    %v4093 = vmul.f32 %v3901, %v3901
    %v4094 = vmul.f32 %v3902, %v3902
    %v4095 = vmul.f32 %v3903, %v3903
    %v4096 = vmul.f32 %v3904, %v3904
    %v4097 = vmul.f32 %v3905, %v3905
    %v4098 = vmul.f32 %v3906, %v3906
    %v4099 = vmul.f32 %v3907, %v3907
    %v4100 = vmul.f32 %v3908, %v3908
    %v4101 = vmul.f32 %v3909, %v3909
    %v4102 = vmul.f32 %v3910, %v3910
    %v4103 = vmul.f32 %v3911, %v3911
    %v4104 = vmul.f32 %v3912, %v3912
    %v4105 = vmul.f32 %v3913, %v3913
    %v4106 = vmul.f32 %v3914, %v3914
    %v4107 = vmul.f32 %v3915, %v3915
    %v4108 = vmul.f32 %v3916, %v3916
    %v4109 = vmul.f32 %v3917, %v3917
    %v4110 = vmul.f32 %v3918, %v3918
    %v4111 = vmul.f32 %v3919, %v3919
    %v4112 = vmul.f32 %v3920, %v3920
    %v4113 = vmul.f32 %v3921, %v3921
    %v4114 = vmul.f32 %v3922, %v3922
    %v4115 = vmul.f32 %v3923, %v3923
    %v4116 = vmul.f32 %v3924, %v3924
    %v4117 = vmul.f32 %v3925, %v3925
    %v4118 = vmul.f32 %v3926, %v3926
    %v4119 = vmul.f32 %v3927, %v3927
    %v4120 = vmul.f32 %v3928, %v3928
    %v4121 = vmul.f32 %v3929, %v3929
    %v4122 = vmul.f32 %v3930, %v3930
    %v4123 = vmul.f32 %v3931, %v3931
    %v4124 = vmul.f32 %v3932, %v3932
    %v4125 = vmul.f32 %v3933, %v3933
    %v4126 = vmul.f32 %v3934, %v3934
    %v4127 = vmul.f32 %v3935, %v3935
    %v4128 = vmul.f32 %v3936, %v3936
    %v4129 = vmul.f32 %v3937, %v3937
    %v4130 = vmul.f32 %v3938, %v3938
    %v4131 = vmul.f32 %v3939, %v3939
    %v4132 = vmul.f32 %v3940, %v3940
    %v4133 = vmul.f32 %v3941, %v3941
    %v4134 = vmul.f32 %v3942, %v3942
    %v4135 = vmul.f32 %v3943, %v3943
    %v4136 = vmul.f32 %v3944, %v3944
    %v4137 = vmul.f32 %v3945, %v3945
    %v4138 = vmul.f32 %v3946, %v3946
    %v4139 = vmul.f32 %v3947, %v3947
    %v4140 = vmul.f32 %v3948, %v3948
    %v4141 = vmul.f32 %v3949, %v3949
    %v4142 = vmul.f32 %v3950, %v3950
    %v4143 = vmul.f32 %v3951, %v3951
    %v4144 = vmul.f32 %v3952, %v3952
    %v4145 = vmul.f32 %v3953, %v3953
    %v4146 = vmul.f32 %v3954, %v3954
    %v4147 = vmul.f32 %v3955, %v3955
    %v4148 = vmul.f32 %v3956, %v3956
    %v4149 = vmul.f32 %v3957, %v3957
    %v4150 = vmul.f32 %v3958, %v3958
    %v4151 = vmul.f32 %v3959, %v3959
    %v4152 = vmul.f32 %v3960, %v3960
    %v4153 = vmul.f32 %v3961, %v3961
    %v4154 = vmul.f32 %v3962, %v3962
    %v4155 = vmul.f32 %v3963, %v3963
    %v4156 = vmul.f32 %v3964, %v3964
    %v4157 = vmul.f32 %v3965, %v3965
    %v4158 = vmul.f32 %v3966, %v3966
    %v4159 = vmul.f32 %v3967, %v3967
    %v4160 = vmul.f32 %v3968, %v3968
    %v4161 = vmul.f32 %v3969, %v3969
    %v4162 = vmul.f32 %v3970, %v3970
    %v4163 = vmul.f32 %v3971, %v3971
    %v4164 = vadd.f32 %v3972, %v4068
    %v4165 = vadd.f32 %v3973, %v4069
    %v4166 = vadd.f32 %v3974, %v4070
    %v4167 = vadd.f32 %v3975, %v4071
    %v4168 = vadd.f32 %v3976, %v4072
    %v4169 = vadd.f32 %v3977, %v4073
    %v4170 = vadd.f32 %v3978, %v4074
    %v4171 = vadd.f32 %v3979, %v4075
    %v4172 = vadd.f32 %v3980, %v4076
    %v4173 = vadd.f32 %v3981, %v4077
    %v4174 = vadd.f32 %v3982, %v4078
    %v4175 = vadd.f32 %v3983, %v4079
    %v4176 = vadd.f32 %v3984, %v4080
    %v4177 = vadd.f32 %v3985, %v4081
    %v4178 = vadd.f32 %v3986, %v4082
    %v4179 = vadd.f32 %v3987, %v4083
    %v4180 = vadd.f32 %v3988, %v4084
    %v4181 = vadd.f32 %v3989, %v4085
    %v4182 = vadd.f32 %v3990, %v4086
    %v4183 = vadd.f32 %v3991, %v4087
    %v4184 = vadd.f32 %v3992, %v4088
    %v4185 = vadd.f32 %v3993, %v4089
    %v4186 = vadd.f32 %v3994, %v4090
    %v4187 = vadd.f32 %v3995, %v4091
    %v4188 = vadd.f32 %v3996, %v4092
    %v4189 = vadd.f32 %v3997, %v4093
    %v4190 = vadd.f32 %v3998, %v4094
    %v4191 = vadd.f32 %v3999, %v4095
    %v4192 = vadd.f32 %v4000, %v4096
    %v4193 = vadd.f32 %v4001, %v4097
    %v4194 = vadd.f32 %v4002, %v4098
    %v4195 = vadd.f32 %v4003, %v4099
    %v4196 = vadd.f32 %v4004, %v4100
    %v4197 = vadd.f32 %v4005, %v4101
    %v4198 = vadd.f32 %v4006, %v4102
    %v4199 = vadd.f32 %v4007, %v4103
    %v4200 = vadd.f32 %v4008, %v4104
    %v4201 = vadd.f32 %v4009, %v4105
    %v4202 = vadd.f32 %v4010, %v4106
    %v4203 = vadd.f32 %v4011, %v4107
    %v4204 = vadd.f32 %v4012, %v4108
    %v4205 = vadd.f32 %v4013, %v4109
    %v4206 = vadd.f32 %v4014, %v4110
    %v4207 = vadd.f32 %v4015, %v4111
    %v4208 = vadd.f32 %v4016, %v4112
    %v4209 = vadd.f32 %v4017, %v4113
    %v4210 = vadd.f32 %v4018, %v4114
    %v4211 = vadd.f32 %v4019, %v4115
    %v4212 = vadd.f32 %v4020, %v4116
    %v4213 = vadd.f32 %v4021, %v4117
    %v4214 = vadd.f32 %v4022, %v4118
    %v4215 = vadd.f32 %v4023, %v4119
    %v4216 = vadd.f32 %v4024, %v4120
    %v4217 = vadd.f32 %v4025, %v4121
    %v4218 = vadd.f32 %v4026, %v4122
    %v4219 = vadd.f32 %v4027, %v4123
    %v4220 = vadd.f32 %v4028, %v4124
    %v4221 = vadd.f32 %v4029, %v4125
    %v4222 = vadd.f32 %v4030, %v4126
    %v4223 = vadd.f32 %v4031, %v4127
    %v4224 = vadd.f32 %v4032, %v4128
    %v4225 = vadd.f32 %v4033, %v4129
    %v4226 = vadd.f32 %v4034, %v4130
    %v4227 = vadd.f32 %v4035, %v4131
    %v4228 = vadd.f32 %v4036, %v4132
    %v4229 = vadd.f32 %v4037, %v4133
    %v4230 = vadd.f32 %v4038, %v4134
    %v4231 = vadd.f32 %v4039, %v4135
    %v4232 = vadd.f32 %v4040, %v4136
    %v4233 = vadd.f32 %v4041, %v4137
    %v4234 = vadd.f32 %v4042, %v4138
    %v4235 = vadd.f32 %v4043, %v4139
    %v4236 = vadd.f32 %v4044, %v4140
    %v4237 = vadd.f32 %v4045, %v4141
    %v4238 = vadd.f32 %v4046, %v4142
    %v4239 = vadd.f32 %v4047, %v4143
    %v4240 = vadd.f32 %v4048, %v4144
    %v4241 = vadd.f32 %v4049, %v4145
    %v4242 = vadd.f32 %v4050, %v4146
    %v4243 = vadd.f32 %v4051, %v4147
    %v4244 = vadd.f32 %v4052, %v4148
    %v4245 = vadd.f32 %v4053, %v4149
    %v4246 = vadd.f32 %v4054, %v4150
    %v4247 = vadd.f32 %v4055, %v4151
    %v4248 = vadd.f32 %v4056, %v4152
    %v4249 = vadd.f32 %v4057, %v4153
    %v4250 = vadd.f32 %v4058, %v4154
    %v4251 = vadd.f32 %v4059, %v4155
    %v4252 = vadd.f32 %v4060, %v4156
    %v4253 = vadd.f32 %v4061, %v4157
    %v4254 = vadd.f32 %v4062, %v4158
    %v4255 = vadd.f32 %v4063, %v4159
    %v4256 = vadd.f32 %v4064, %v4160
    %v4257 = vadd.f32 %v4065, %v4161
    %v4258 = vadd.f32 %v4066, %v4162
    %v4259 = vadd.f32 %v4067, %v4163
    %v4260 = vrsqrt.pop %v4164
    %v4261 = vmul.f32 %v4260, %v4164
    %v4262 = vmul.f32 %v4261, %v4260
    %v4263 = vmul.f32 0.5, %v4262
    %v4264 = vsub.f32 1.5, %v4263
    %v4265 = vmul.f32 %v4260, %v4264
    %v4266 = vmul.f32 %v4164, %v4265
    %vm4267 = vcmp.eq.f32.partialorder %v4164, inf
    %v4268 = vsel %vm4267, %v4164, %v4266
    %vm4269 = vcmp.eq.f32.partialorder %v4164, 0.0
    %v4270 = vand.u32 %v4164, 2147483648
    %v4271 = vsel %vm4269, %v4270, %v4268
    %v4272 = vrsqrt.pop %v4165
    %v4273 = vmul.f32 %v4272, %v4165
    %v4274 = vmul.f32 %v4273, %v4272
    %v4275 = vmul.f32 0.5, %v4274
    %v4276 = vsub.f32 1.5, %v4275
    %v4277 = vmul.f32 %v4272, %v4276
    %v4278 = vmul.f32 %v4165, %v4277
    %vm4279 = vcmp.eq.f32.partialorder %v4165, inf
    %v4280 = vsel %vm4279, %v4165, %v4278
    %vm4281 = vcmp.eq.f32.partialorder %v4165, 0.0
    %v4282 = vand.u32 %v4165, 2147483648
    %v4283 = vsel %vm4281, %v4282, %v4280
    %v4284 = vrsqrt.pop %v4166
    %v4285 = vmul.f32 %v4284, %v4166
    %v4286 = vmul.f32 %v4285, %v4284
    %v4287 = vmul.f32 0.5, %v4286
    %v4288 = vsub.f32 1.5, %v4287
    %v4289 = vmul.f32 %v4284, %v4288
    %v4290 = vmul.f32 %v4166, %v4289
    %vm4291 = vcmp.eq.f32.partialorder %v4166, inf
    %v4292 = vsel %vm4291, %v4166, %v4290
    %vm4293 = vcmp.eq.f32.partialorder %v4166, 0.0
    %v4294 = vand.u32 %v4166, 2147483648
    %v4295 = vsel %vm4293, %v4294, %v4292
    %v4296 = vrsqrt.pop %v4167
    %v4297 = vmul.f32 %v4296, %v4167
    %v4298 = vmul.f32 %v4297, %v4296
    %v4299 = vmul.f32 0.5, %v4298
    %v4300 = vsub.f32 1.5, %v4299
    %v4301 = vmul.f32 %v4296, %v4300
    %v4302 = vmul.f32 %v4167, %v4301
    %vm4303 = vcmp.eq.f32.partialorder %v4167, inf
    %v4304 = vsel %vm4303, %v4167, %v4302
    %vm4305 = vcmp.eq.f32.partialorder %v4167, 0.0
    %v4306 = vand.u32 %v4167, 2147483648
    %v4307 = vsel %vm4305, %v4306, %v4304
    %v4308 = vrsqrt.pop %v4168
    %v4309 = vmul.f32 %v4308, %v4168
    %v4310 = vmul.f32 %v4309, %v4308
    %v4311 = vmul.f32 0.5, %v4310
    %v4312 = vsub.f32 1.5, %v4311
    %v4313 = vmul.f32 %v4308, %v4312
    %v4314 = vmul.f32 %v4168, %v4313
    %vm4315 = vcmp.eq.f32.partialorder %v4168, inf
    %v4316 = vsel %vm4315, %v4168, %v4314
    %vm4317 = vcmp.eq.f32.partialorder %v4168, 0.0
    %v4318 = vand.u32 %v4168, 2147483648
    %v4319 = vsel %vm4317, %v4318, %v4316
    %v4320 = vrsqrt.pop %v4169
    %v4321 = vmul.f32 %v4320, %v4169
    %v4322 = vmul.f32 %v4321, %v4320
    %v4323 = vmul.f32 0.5, %v4322
    %v4324 = vsub.f32 1.5, %v4323
    %v4325 = vmul.f32 %v4320, %v4324
    %v4326 = vmul.f32 %v4169, %v4325
    %vm4327 = vcmp.eq.f32.partialorder %v4169, inf
    %v4328 = vsel %vm4327, %v4169, %v4326
    %vm4329 = vcmp.eq.f32.partialorder %v4169, 0.0
    %v4330 = vand.u32 %v4169, 2147483648
    %v4331 = vsel %vm4329, %v4330, %v4328
    %v4332 = vrsqrt.pop %v4170
    %v4333 = vmul.f32 %v4332, %v4170
    %v4334 = vmul.f32 %v4333, %v4332
    %v4335 = vmul.f32 0.5, %v4334
    %v4336 = vsub.f32 1.5, %v4335
    %v4337 = vmul.f32 %v4332, %v4336
    %v4338 = vmul.f32 %v4170, %v4337
    %vm4339 = vcmp.eq.f32.partialorder %v4170, inf
    %v4340 = vsel %vm4339, %v4170, %v4338
    %vm4341 = vcmp.eq.f32.partialorder %v4170, 0.0
    %v4342 = vand.u32 %v4170, 2147483648
    %v4343 = vsel %vm4341, %v4342, %v4340
    %v4344 = vrsqrt.pop %v4171
    %v4345 = vmul.f32 %v4344, %v4171
    %v4346 = vmul.f32 %v4345, %v4344
    %v4347 = vmul.f32 0.5, %v4346
    %v4348 = vsub.f32 1.5, %v4347
    %v4349 = vmul.f32 %v4344, %v4348
    %v4350 = vmul.f32 %v4171, %v4349
    %vm4351 = vcmp.eq.f32.partialorder %v4171, inf
    %v4352 = vsel %vm4351, %v4171, %v4350
    %vm4353 = vcmp.eq.f32.partialorder %v4171, 0.0
    %v4354 = vand.u32 %v4171, 2147483648
    %v4355 = vsel %vm4353, %v4354, %v4352
    %v4356 = vrsqrt.pop %v4172
    %v4357 = vmul.f32 %v4356, %v4172
    %v4358 = vmul.f32 %v4357, %v4356
    %v4359 = vmul.f32 0.5, %v4358
    %v4360 = vsub.f32 1.5, %v4359
    %v4361 = vmul.f32 %v4356, %v4360
    %v4362 = vmul.f32 %v4172, %v4361
    %vm4363 = vcmp.eq.f32.partialorder %v4172, inf
    %v4364 = vsel %vm4363, %v4172, %v4362
    %vm4365 = vcmp.eq.f32.partialorder %v4172, 0.0
    %v4366 = vand.u32 %v4172, 2147483648
    %v4367 = vsel %vm4365, %v4366, %v4364
    %v4368 = vrsqrt.pop %v4173
    %v4369 = vmul.f32 %v4368, %v4173
    %v4370 = vmul.f32 %v4369, %v4368
    %v4371 = vmul.f32 0.5, %v4370
    %v4372 = vsub.f32 1.5, %v4371
    %v4373 = vmul.f32 %v4368, %v4372
    %v4374 = vmul.f32 %v4173, %v4373
    %vm4375 = vcmp.eq.f32.partialorder %v4173, inf
    %v4376 = vsel %vm4375, %v4173, %v4374
    %vm4377 = vcmp.eq.f32.partialorder %v4173, 0.0
    %v4378 = vand.u32 %v4173, 2147483648
    %v4379 = vsel %vm4377, %v4378, %v4376
    %v4380 = vrsqrt.pop %v4174
    %v4381 = vmul.f32 %v4380, %v4174
    %v4382 = vmul.f32 %v4381, %v4380
    %v4383 = vmul.f32 0.5, %v4382
    %v4384 = vsub.f32 1.5, %v4383
    %v4385 = vmul.f32 %v4380, %v4384
    %v4386 = vmul.f32 %v4174, %v4385
    %vm4387 = vcmp.eq.f32.partialorder %v4174, inf
    %v4388 = vsel %vm4387, %v4174, %v4386
    %vm4389 = vcmp.eq.f32.partialorder %v4174, 0.0
    %v4390 = vand.u32 %v4174, 2147483648
    %v4391 = vsel %vm4389, %v4390, %v4388
    %v4392 = vrsqrt.pop %v4175
    %v4393 = vmul.f32 %v4392, %v4175
    %v4394 = vmul.f32 %v4393, %v4392
    %v4395 = vmul.f32 0.5, %v4394
    %v4396 = vsub.f32 1.5, %v4395
    %v4397 = vmul.f32 %v4392, %v4396
    %v4398 = vmul.f32 %v4175, %v4397
    %vm4399 = vcmp.eq.f32.partialorder %v4175, inf
    %v4400 = vsel %vm4399, %v4175, %v4398
    %vm4401 = vcmp.eq.f32.partialorder %v4175, 0.0
    %v4402 = vand.u32 %v4175, 2147483648
    %v4403 = vsel %vm4401, %v4402, %v4400
    %v4404 = vrsqrt.pop %v4176
    %v4405 = vmul.f32 %v4404, %v4176
    %v4406 = vmul.f32 %v4405, %v4404
    %v4407 = vmul.f32 0.5, %v4406
    %v4408 = vsub.f32 1.5, %v4407
    %v4409 = vmul.f32 %v4404, %v4408
    %v4410 = vmul.f32 %v4176, %v4409
    %vm4411 = vcmp.eq.f32.partialorder %v4176, inf
    %v4412 = vsel %vm4411, %v4176, %v4410
    %vm4413 = vcmp.eq.f32.partialorder %v4176, 0.0
    %v4414 = vand.u32 %v4176, 2147483648
    %v4415 = vsel %vm4413, %v4414, %v4412
    %v4416 = vrsqrt.pop %v4177
    %v4417 = vmul.f32 %v4416, %v4177
    %v4418 = vmul.f32 %v4417, %v4416
    %v4419 = vmul.f32 0.5, %v4418
    %v4420 = vsub.f32 1.5, %v4419
    %v4421 = vmul.f32 %v4416, %v4420
    %v4422 = vmul.f32 %v4177, %v4421
    %vm4423 = vcmp.eq.f32.partialorder %v4177, inf
    %v4424 = vsel %vm4423, %v4177, %v4422
    %vm4425 = vcmp.eq.f32.partialorder %v4177, 0.0
    %v4426 = vand.u32 %v4177, 2147483648
    %v4427 = vsel %vm4425, %v4426, %v4424
    %v4428 = vrsqrt.pop %v4178
    %v4429 = vmul.f32 %v4428, %v4178
    %v4430 = vmul.f32 %v4429, %v4428
    %v4431 = vmul.f32 0.5, %v4430
    %v4432 = vsub.f32 1.5, %v4431
    %v4433 = vmul.f32 %v4428, %v4432
    %v4434 = vmul.f32 %v4178, %v4433
    %vm4435 = vcmp.eq.f32.partialorder %v4178, inf
    %v4436 = vsel %vm4435, %v4178, %v4434
    %vm4437 = vcmp.eq.f32.partialorder %v4178, 0.0
    %v4438 = vand.u32 %v4178, 2147483648
    %v4439 = vsel %vm4437, %v4438, %v4436
    %v4440 = vrsqrt.pop %v4179
    %v4441 = vmul.f32 %v4440, %v4179
    %v4442 = vmul.f32 %v4441, %v4440
    %v4443 = vmul.f32 0.5, %v4442
    %v4444 = vsub.f32 1.5, %v4443
    %v4445 = vmul.f32 %v4440, %v4444
    %v4446 = vmul.f32 %v4179, %v4445
    %vm4447 = vcmp.eq.f32.partialorder %v4179, inf
    %v4448 = vsel %vm4447, %v4179, %v4446
    %vm4449 = vcmp.eq.f32.partialorder %v4179, 0.0
    %v4450 = vand.u32 %v4179, 2147483648
    %v4451 = vsel %vm4449, %v4450, %v4448
    %v4452 = vrsqrt.pop %v4180
    %v4453 = vmul.f32 %v4452, %v4180
    %v4454 = vmul.f32 %v4453, %v4452
    %v4455 = vmul.f32 0.5, %v4454
    %v4456 = vsub.f32 1.5, %v4455
    %v4457 = vmul.f32 %v4452, %v4456
    %v4458 = vmul.f32 %v4180, %v4457
    %vm4459 = vcmp.eq.f32.partialorder %v4180, inf
    %v4460 = vsel %vm4459, %v4180, %v4458
    %vm4461 = vcmp.eq.f32.partialorder %v4180, 0.0
    %v4462 = vand.u32 %v4180, 2147483648
    %v4463 = vsel %vm4461, %v4462, %v4460
    %v4464 = vrsqrt.pop %v4181
    %v4465 = vmul.f32 %v4464, %v4181
    %v4466 = vmul.f32 %v4465, %v4464
    %v4467 = vmul.f32 0.5, %v4466
    %v4468 = vsub.f32 1.5, %v4467
    %v4469 = vmul.f32 %v4464, %v4468
    %v4470 = vmul.f32 %v4181, %v4469
    %vm4471 = vcmp.eq.f32.partialorder %v4181, inf
    %v4472 = vsel %vm4471, %v4181, %v4470
    %vm4473 = vcmp.eq.f32.partialorder %v4181, 0.0
    %v4474 = vand.u32 %v4181, 2147483648
    %v4475 = vsel %vm4473, %v4474, %v4472
    %v4476 = vrsqrt.pop %v4182
    %v4477 = vmul.f32 %v4476, %v4182
    %v4478 = vmul.f32 %v4477, %v4476
    %v4479 = vmul.f32 0.5, %v4478
    %v4480 = vsub.f32 1.5, %v4479
    %v4481 = vmul.f32 %v4476, %v4480
    %v4482 = vmul.f32 %v4182, %v4481
    %vm4483 = vcmp.eq.f32.partialorder %v4182, inf
    %v4484 = vsel %vm4483, %v4182, %v4482
    %vm4485 = vcmp.eq.f32.partialorder %v4182, 0.0
    %v4486 = vand.u32 %v4182, 2147483648
    %v4487 = vsel %vm4485, %v4486, %v4484
    %v4488 = vrsqrt.pop %v4183
    %v4489 = vmul.f32 %v4488, %v4183
    %v4490 = vmul.f32 %v4489, %v4488
    %v4491 = vmul.f32 0.5, %v4490
    %v4492 = vsub.f32 1.5, %v4491
    %v4493 = vmul.f32 %v4488, %v4492
    %v4494 = vmul.f32 %v4183, %v4493
    %vm4495 = vcmp.eq.f32.partialorder %v4183, inf
    %v4496 = vsel %vm4495, %v4183, %v4494
    %vm4497 = vcmp.eq.f32.partialorder %v4183, 0.0
    %v4498 = vand.u32 %v4183, 2147483648
    %v4499 = vsel %vm4497, %v4498, %v4496
    %v4500 = vrsqrt.pop %v4184
    %v4501 = vmul.f32 %v4500, %v4184
    %v4502 = vmul.f32 %v4501, %v4500
    %v4503 = vmul.f32 0.5, %v4502
    %v4504 = vsub.f32 1.5, %v4503
    %v4505 = vmul.f32 %v4500, %v4504
    %v4506 = vmul.f32 %v4184, %v4505
    %vm4507 = vcmp.eq.f32.partialorder %v4184, inf
    %v4508 = vsel %vm4507, %v4184, %v4506
    %vm4509 = vcmp.eq.f32.partialorder %v4184, 0.0
    %v4510 = vand.u32 %v4184, 2147483648
    %v4511 = vsel %vm4509, %v4510, %v4508
    %v4512 = vrsqrt.pop %v4185
    %v4513 = vmul.f32 %v4512, %v4185
    %v4514 = vmul.f32 %v4513, %v4512
    %v4515 = vmul.f32 0.5, %v4514
    %v4516 = vsub.f32 1.5, %v4515
    %v4517 = vmul.f32 %v4512, %v4516
    %v4518 = vmul.f32 %v4185, %v4517
    %vm4519 = vcmp.eq.f32.partialorder %v4185, inf
    %v4520 = vsel %vm4519, %v4185, %v4518
    %vm4521 = vcmp.eq.f32.partialorder %v4185, 0.0
    %v4522 = vand.u32 %v4185, 2147483648
    %v4523 = vsel %vm4521, %v4522, %v4520
    %v4524 = vrsqrt.pop %v4186
    %v4525 = vmul.f32 %v4524, %v4186
    %v4526 = vmul.f32 %v4525, %v4524
    %v4527 = vmul.f32 0.5, %v4526
    %v4528 = vsub.f32 1.5, %v4527
    %v4529 = vmul.f32 %v4524, %v4528
    %v4530 = vmul.f32 %v4186, %v4529
    %vm4531 = vcmp.eq.f32.partialorder %v4186, inf
    %v4532 = vsel %vm4531, %v4186, %v4530
    %vm4533 = vcmp.eq.f32.partialorder %v4186, 0.0
    %v4534 = vand.u32 %v4186, 2147483648
    %v4535 = vsel %vm4533, %v4534, %v4532
    %v4536 = vrsqrt.pop %v4187
    %v4537 = vmul.f32 %v4536, %v4187
    %v4538 = vmul.f32 %v4537, %v4536
    %v4539 = vmul.f32 0.5, %v4538
    %v4540 = vsub.f32 1.5, %v4539
    %v4541 = vmul.f32 %v4536, %v4540
    %v4542 = vmul.f32 %v4187, %v4541
    %vm4543 = vcmp.eq.f32.partialorder %v4187, inf
    %v4544 = vsel %vm4543, %v4187, %v4542
    %vm4545 = vcmp.eq.f32.partialorder %v4187, 0.0
    %v4546 = vand.u32 %v4187, 2147483648
    %v4547 = vsel %vm4545, %v4546, %v4544
    %v4548 = vrsqrt.pop %v4188
    %v4549 = vmul.f32 %v4548, %v4188
    %v4550 = vmul.f32 %v4549, %v4548
    %v4551 = vmul.f32 0.5, %v4550
    %v4552 = vsub.f32 1.5, %v4551
    %v4553 = vmul.f32 %v4548, %v4552
    %v4554 = vmul.f32 %v4188, %v4553
    %vm4555 = vcmp.eq.f32.partialorder %v4188, inf
    %v4556 = vsel %vm4555, %v4188, %v4554
    %vm4557 = vcmp.eq.f32.partialorder %v4188, 0.0
    %v4558 = vand.u32 %v4188, 2147483648
    %v4559 = vsel %vm4557, %v4558, %v4556
    %v4560 = vrsqrt.pop %v4189
    %v4561 = vmul.f32 %v4560, %v4189
    %v4562 = vmul.f32 %v4561, %v4560
    %v4563 = vmul.f32 0.5, %v4562
    %v4564 = vsub.f32 1.5, %v4563
    %v4565 = vmul.f32 %v4560, %v4564
    %v4566 = vmul.f32 %v4189, %v4565
    %vm4567 = vcmp.eq.f32.partialorder %v4189, inf
    %v4568 = vsel %vm4567, %v4189, %v4566
    %vm4569 = vcmp.eq.f32.partialorder %v4189, 0.0
    %v4570 = vand.u32 %v4189, 2147483648
    %v4571 = vsel %vm4569, %v4570, %v4568
    %v4572 = vrsqrt.pop %v4190
    %v4573 = vmul.f32 %v4572, %v4190
    %v4574 = vmul.f32 %v4573, %v4572
    %v4575 = vmul.f32 0.5, %v4574
    %v4576 = vsub.f32 1.5, %v4575
    %v4577 = vmul.f32 %v4572, %v4576
    %v4578 = vmul.f32 %v4190, %v4577
    %vm4579 = vcmp.eq.f32.partialorder %v4190, inf
    %v4580 = vsel %vm4579, %v4190, %v4578
    %vm4581 = vcmp.eq.f32.partialorder %v4190, 0.0
    %v4582 = vand.u32 %v4190, 2147483648
    %v4583 = vsel %vm4581, %v4582, %v4580
    %v4584 = vrsqrt.pop %v4191
    %v4585 = vmul.f32 %v4584, %v4191
    %v4586 = vmul.f32 %v4585, %v4584
    %v4587 = vmul.f32 0.5, %v4586
    %v4588 = vsub.f32 1.5, %v4587
    %v4589 = vmul.f32 %v4584, %v4588
    %v4590 = vmul.f32 %v4191, %v4589
    %vm4591 = vcmp.eq.f32.partialorder %v4191, inf
    %v4592 = vsel %vm4591, %v4191, %v4590
    %vm4593 = vcmp.eq.f32.partialorder %v4191, 0.0
    %v4594 = vand.u32 %v4191, 2147483648
    %v4595 = vsel %vm4593, %v4594, %v4592
    %v4596 = vrsqrt.pop %v4192
    %v4597 = vmul.f32 %v4596, %v4192
    %v4598 = vmul.f32 %v4597, %v4596
    %v4599 = vmul.f32 0.5, %v4598
    %v4600 = vsub.f32 1.5, %v4599
    %v4601 = vmul.f32 %v4596, %v4600
    %v4602 = vmul.f32 %v4192, %v4601
    %vm4603 = vcmp.eq.f32.partialorder %v4192, inf
    %v4604 = vsel %vm4603, %v4192, %v4602
    %vm4605 = vcmp.eq.f32.partialorder %v4192, 0.0
    %v4606 = vand.u32 %v4192, 2147483648
    %v4607 = vsel %vm4605, %v4606, %v4604
    %v4608 = vrsqrt.pop %v4193
    %v4609 = vmul.f32 %v4608, %v4193
    %v4610 = vmul.f32 %v4609, %v4608
    %v4611 = vmul.f32 0.5, %v4610
    %v4612 = vsub.f32 1.5, %v4611
    %v4613 = vmul.f32 %v4608, %v4612
    %v4614 = vmul.f32 %v4193, %v4613
    %vm4615 = vcmp.eq.f32.partialorder %v4193, inf
    %v4616 = vsel %vm4615, %v4193, %v4614
    %vm4617 = vcmp.eq.f32.partialorder %v4193, 0.0
    %v4618 = vand.u32 %v4193, 2147483648
    %v4619 = vsel %vm4617, %v4618, %v4616
    %v4620 = vrsqrt.pop %v4194
    %v4621 = vmul.f32 %v4620, %v4194
    %v4622 = vmul.f32 %v4621, %v4620
    %v4623 = vmul.f32 0.5, %v4622
    %v4624 = vsub.f32 1.5, %v4623
    %v4625 = vmul.f32 %v4620, %v4624
    %v4626 = vmul.f32 %v4194, %v4625
    %vm4627 = vcmp.eq.f32.partialorder %v4194, inf
    %v4628 = vsel %vm4627, %v4194, %v4626
    %vm4629 = vcmp.eq.f32.partialorder %v4194, 0.0
    %v4630 = vand.u32 %v4194, 2147483648
    %v4631 = vsel %vm4629, %v4630, %v4628
    %v4632 = vrsqrt.pop %v4195
    %v4633 = vmul.f32 %v4632, %v4195
    %v4634 = vmul.f32 %v4633, %v4632
    %v4635 = vmul.f32 0.5, %v4634
    %v4636 = vsub.f32 1.5, %v4635
    %v4637 = vmul.f32 %v4632, %v4636
    %v4638 = vmul.f32 %v4195, %v4637
    %vm4639 = vcmp.eq.f32.partialorder %v4195, inf
    %v4640 = vsel %vm4639, %v4195, %v4638
    %vm4641 = vcmp.eq.f32.partialorder %v4195, 0.0
    %v4642 = vand.u32 %v4195, 2147483648
    %v4643 = vsel %vm4641, %v4642, %v4640
    %v4644 = vrsqrt.pop %v4196
    %v4645 = vmul.f32 %v4644, %v4196
    %v4646 = vmul.f32 %v4645, %v4644
    %v4647 = vmul.f32 0.5, %v4646
    %v4648 = vsub.f32 1.5, %v4647
    %v4649 = vmul.f32 %v4644, %v4648
    %v4650 = vmul.f32 %v4196, %v4649
    %vm4651 = vcmp.eq.f32.partialorder %v4196, inf
    %v4652 = vsel %vm4651, %v4196, %v4650
    %vm4653 = vcmp.eq.f32.partialorder %v4196, 0.0
    %v4654 = vand.u32 %v4196, 2147483648
    %v4655 = vsel %vm4653, %v4654, %v4652
    %v4656 = vrsqrt.pop %v4197
    %v4657 = vmul.f32 %v4656, %v4197
    %v4658 = vmul.f32 %v4657, %v4656
    %v4659 = vmul.f32 0.5, %v4658
    %v4660 = vsub.f32 1.5, %v4659
    %v4661 = vmul.f32 %v4656, %v4660
    %v4662 = vmul.f32 %v4197, %v4661
    %vm4663 = vcmp.eq.f32.partialorder %v4197, inf
    %v4664 = vsel %vm4663, %v4197, %v4662
    %vm4665 = vcmp.eq.f32.partialorder %v4197, 0.0
    %v4666 = vand.u32 %v4197, 2147483648
    %v4667 = vsel %vm4665, %v4666, %v4664
    %v4668 = vrsqrt.pop %v4198
    %v4669 = vmul.f32 %v4668, %v4198
    %v4670 = vmul.f32 %v4669, %v4668
    %v4671 = vmul.f32 0.5, %v4670
    %v4672 = vsub.f32 1.5, %v4671
    %v4673 = vmul.f32 %v4668, %v4672
    %v4674 = vmul.f32 %v4198, %v4673
    %vm4675 = vcmp.eq.f32.partialorder %v4198, inf
    %v4676 = vsel %vm4675, %v4198, %v4674
    %vm4677 = vcmp.eq.f32.partialorder %v4198, 0.0
    %v4678 = vand.u32 %v4198, 2147483648
    %v4679 = vsel %vm4677, %v4678, %v4676
    %v4680 = vrsqrt.pop %v4199
    %v4681 = vmul.f32 %v4680, %v4199
    %v4682 = vmul.f32 %v4681, %v4680
    %v4683 = vmul.f32 0.5, %v4682
    %v4684 = vsub.f32 1.5, %v4683
    %v4685 = vmul.f32 %v4680, %v4684
    %v4686 = vmul.f32 %v4199, %v4685
    %vm4687 = vcmp.eq.f32.partialorder %v4199, inf
    %v4688 = vsel %vm4687, %v4199, %v4686
    %vm4689 = vcmp.eq.f32.partialorder %v4199, 0.0
    %v4690 = vand.u32 %v4199, 2147483648
    %v4691 = vsel %vm4689, %v4690, %v4688
    %v4692 = vrsqrt.pop %v4200
    %v4693 = vmul.f32 %v4692, %v4200
    %v4694 = vmul.f32 %v4693, %v4692
    %v4695 = vmul.f32 0.5, %v4694
    %v4696 = vsub.f32 1.5, %v4695
    %v4697 = vmul.f32 %v4692, %v4696
    %v4698 = vmul.f32 %v4200, %v4697
    %vm4699 = vcmp.eq.f32.partialorder %v4200, inf
    %v4700 = vsel %vm4699, %v4200, %v4698
    %vm4701 = vcmp.eq.f32.partialorder %v4200, 0.0
    %v4702 = vand.u32 %v4200, 2147483648
    %v4703 = vsel %vm4701, %v4702, %v4700
    %v4704 = vrsqrt.pop %v4201
    %v4705 = vmul.f32 %v4704, %v4201
    %v4706 = vmul.f32 %v4705, %v4704
    %v4707 = vmul.f32 0.5, %v4706
    %v4708 = vsub.f32 1.5, %v4707
    %v4709 = vmul.f32 %v4704, %v4708
    %v4710 = vmul.f32 %v4201, %v4709
    %vm4711 = vcmp.eq.f32.partialorder %v4201, inf
    %v4712 = vsel %vm4711, %v4201, %v4710
    %vm4713 = vcmp.eq.f32.partialorder %v4201, 0.0
    %v4714 = vand.u32 %v4201, 2147483648
    %v4715 = vsel %vm4713, %v4714, %v4712
    %v4716 = vrsqrt.pop %v4202
    %v4717 = vmul.f32 %v4716, %v4202
    %v4718 = vmul.f32 %v4717, %v4716
    %v4719 = vmul.f32 0.5, %v4718
    %v4720 = vsub.f32 1.5, %v4719
    %v4721 = vmul.f32 %v4716, %v4720
    %v4722 = vmul.f32 %v4202, %v4721
    %vm4723 = vcmp.eq.f32.partialorder %v4202, inf
    %v4724 = vsel %vm4723, %v4202, %v4722
    %vm4725 = vcmp.eq.f32.partialorder %v4202, 0.0
    %v4726 = vand.u32 %v4202, 2147483648
    %v4727 = vsel %vm4725, %v4726, %v4724
    %v4728 = vrsqrt.pop %v4203
    %v4729 = vmul.f32 %v4728, %v4203
    %v4730 = vmul.f32 %v4729, %v4728
    %v4731 = vmul.f32 0.5, %v4730
    %v4732 = vsub.f32 1.5, %v4731
    %v4733 = vmul.f32 %v4728, %v4732
    %v4734 = vmul.f32 %v4203, %v4733
    %vm4735 = vcmp.eq.f32.partialorder %v4203, inf
    %v4736 = vsel %vm4735, %v4203, %v4734
    %vm4737 = vcmp.eq.f32.partialorder %v4203, 0.0
    %v4738 = vand.u32 %v4203, 2147483648
    %v4739 = vsel %vm4737, %v4738, %v4736
    %v4740 = vrsqrt.pop %v4204
    %v4741 = vmul.f32 %v4740, %v4204
    %v4742 = vmul.f32 %v4741, %v4740
    %v4743 = vmul.f32 0.5, %v4742
    %v4744 = vsub.f32 1.5, %v4743
    %v4745 = vmul.f32 %v4740, %v4744
    %v4746 = vmul.f32 %v4204, %v4745
    %vm4747 = vcmp.eq.f32.partialorder %v4204, inf
    %v4748 = vsel %vm4747, %v4204, %v4746
    %vm4749 = vcmp.eq.f32.partialorder %v4204, 0.0
    %v4750 = vand.u32 %v4204, 2147483648
    %v4751 = vsel %vm4749, %v4750, %v4748
    %v4752 = vrsqrt.pop %v4205
    %v4753 = vmul.f32 %v4752, %v4205
    %v4754 = vmul.f32 %v4753, %v4752
    %v4755 = vmul.f32 0.5, %v4754
    %v4756 = vsub.f32 1.5, %v4755
    %v4757 = vmul.f32 %v4752, %v4756
    %v4758 = vmul.f32 %v4205, %v4757
    %vm4759 = vcmp.eq.f32.partialorder %v4205, inf
    %v4760 = vsel %vm4759, %v4205, %v4758
    %vm4761 = vcmp.eq.f32.partialorder %v4205, 0.0
    %v4762 = vand.u32 %v4205, 2147483648
    %v4763 = vsel %vm4761, %v4762, %v4760
    %v4764 = vrsqrt.pop %v4206
    %v4765 = vmul.f32 %v4764, %v4206
    %v4766 = vmul.f32 %v4765, %v4764
    %v4767 = vmul.f32 0.5, %v4766
    %v4768 = vsub.f32 1.5, %v4767
    %v4769 = vmul.f32 %v4764, %v4768
    %v4770 = vmul.f32 %v4206, %v4769
    %vm4771 = vcmp.eq.f32.partialorder %v4206, inf
    %v4772 = vsel %vm4771, %v4206, %v4770
    %vm4773 = vcmp.eq.f32.partialorder %v4206, 0.0
    %v4774 = vand.u32 %v4206, 2147483648
    %v4775 = vsel %vm4773, %v4774, %v4772
    %v4776 = vrsqrt.pop %v4207
    %v4777 = vmul.f32 %v4776, %v4207
    %v4778 = vmul.f32 %v4777, %v4776
    %v4779 = vmul.f32 0.5, %v4778
    %v4780 = vsub.f32 1.5, %v4779
    %v4781 = vmul.f32 %v4776, %v4780
    %v4782 = vmul.f32 %v4207, %v4781
    %vm4783 = vcmp.eq.f32.partialorder %v4207, inf
    %v4784 = vsel %vm4783, %v4207, %v4782
    %vm4785 = vcmp.eq.f32.partialorder %v4207, 0.0
    %v4786 = vand.u32 %v4207, 2147483648
    %v4787 = vsel %vm4785, %v4786, %v4784
    %v4788 = vrsqrt.pop %v4208
    %v4789 = vmul.f32 %v4788, %v4208
    %v4790 = vmul.f32 %v4789, %v4788
    %v4791 = vmul.f32 0.5, %v4790
    %v4792 = vsub.f32 1.5, %v4791
    %v4793 = vmul.f32 %v4788, %v4792
    %v4794 = vmul.f32 %v4208, %v4793
    %vm4795 = vcmp.eq.f32.partialorder %v4208, inf
    %v4796 = vsel %vm4795, %v4208, %v4794
    %vm4797 = vcmp.eq.f32.partialorder %v4208, 0.0
    %v4798 = vand.u32 %v4208, 2147483648
    %v4799 = vsel %vm4797, %v4798, %v4796
    %v4800 = vrsqrt.pop %v4209
    %v4801 = vmul.f32 %v4800, %v4209
    %v4802 = vmul.f32 %v4801, %v4800
    %v4803 = vmul.f32 0.5, %v4802
    %v4804 = vsub.f32 1.5, %v4803
    %v4805 = vmul.f32 %v4800, %v4804
    %v4806 = vmul.f32 %v4209, %v4805
    %vm4807 = vcmp.eq.f32.partialorder %v4209, inf
    %v4808 = vsel %vm4807, %v4209, %v4806
    %vm4809 = vcmp.eq.f32.partialorder %v4209, 0.0
    %v4810 = vand.u32 %v4209, 2147483648
    %v4811 = vsel %vm4809, %v4810, %v4808
    %v4812 = vrsqrt.pop %v4210
    %v4813 = vmul.f32 %v4812, %v4210
    %v4814 = vmul.f32 %v4813, %v4812
    %v4815 = vmul.f32 0.5, %v4814
    %v4816 = vsub.f32 1.5, %v4815
    %v4817 = vmul.f32 %v4812, %v4816
    %v4818 = vmul.f32 %v4210, %v4817
    %vm4819 = vcmp.eq.f32.partialorder %v4210, inf
    %v4820 = vsel %vm4819, %v4210, %v4818
    %vm4821 = vcmp.eq.f32.partialorder %v4210, 0.0
    %v4822 = vand.u32 %v4210, 2147483648
    %v4823 = vsel %vm4821, %v4822, %v4820
    %v4824 = vrsqrt.pop %v4211
    %v4825 = vmul.f32 %v4824, %v4211
    %v4826 = vmul.f32 %v4825, %v4824
    %v4827 = vmul.f32 0.5, %v4826
    %v4828 = vsub.f32 1.5, %v4827
    %v4829 = vmul.f32 %v4824, %v4828
    %v4830 = vmul.f32 %v4211, %v4829
    %vm4831 = vcmp.eq.f32.partialorder %v4211, inf
    %v4832 = vsel %vm4831, %v4211, %v4830
    %vm4833 = vcmp.eq.f32.partialorder %v4211, 0.0
    %v4834 = vand.u32 %v4211, 2147483648
    %v4835 = vsel %vm4833, %v4834, %v4832
    %v4836 = vrsqrt.pop %v4212
    %v4837 = vmul.f32 %v4836, %v4212
    %v4838 = vmul.f32 %v4837, %v4836
    %v4839 = vmul.f32 0.5, %v4838
    %v4840 = vsub.f32 1.5, %v4839
    %v4841 = vmul.f32 %v4836, %v4840
    %v4842 = vmul.f32 %v4212, %v4841
    %vm4843 = vcmp.eq.f32.partialorder %v4212, inf
    %v4844 = vsel %vm4843, %v4212, %v4842
    %vm4845 = vcmp.eq.f32.partialorder %v4212, 0.0
    %v4846 = vand.u32 %v4212, 2147483648
    %v4847 = vsel %vm4845, %v4846, %v4844
    %v4848 = vrsqrt.pop %v4213
    %v4849 = vmul.f32 %v4848, %v4213
    %v4850 = vmul.f32 %v4849, %v4848
    %v4851 = vmul.f32 0.5, %v4850
    %v4852 = vsub.f32 1.5, %v4851
    %v4853 = vmul.f32 %v4848, %v4852
    %v4854 = vmul.f32 %v4213, %v4853
    %vm4855 = vcmp.eq.f32.partialorder %v4213, inf
    %v4856 = vsel %vm4855, %v4213, %v4854
    %vm4857 = vcmp.eq.f32.partialorder %v4213, 0.0
    %v4858 = vand.u32 %v4213, 2147483648
    %v4859 = vsel %vm4857, %v4858, %v4856
    %v4860 = vrsqrt.pop %v4214
    %v4861 = vmul.f32 %v4860, %v4214
    %v4862 = vmul.f32 %v4861, %v4860
    %v4863 = vmul.f32 0.5, %v4862
    %v4864 = vsub.f32 1.5, %v4863
    %v4865 = vmul.f32 %v4860, %v4864
    %v4866 = vmul.f32 %v4214, %v4865
    %vm4867 = vcmp.eq.f32.partialorder %v4214, inf
    %v4868 = vsel %vm4867, %v4214, %v4866
    %vm4869 = vcmp.eq.f32.partialorder %v4214, 0.0
    %v4870 = vand.u32 %v4214, 2147483648
    %v4871 = vsel %vm4869, %v4870, %v4868
    %v4872 = vrsqrt.pop %v4215
    %v4873 = vmul.f32 %v4872, %v4215
    %v4874 = vmul.f32 %v4873, %v4872
    %v4875 = vmul.f32 0.5, %v4874
    %v4876 = vsub.f32 1.5, %v4875
    %v4877 = vmul.f32 %v4872, %v4876
    %v4878 = vmul.f32 %v4215, %v4877
    %vm4879 = vcmp.eq.f32.partialorder %v4215, inf
    %v4880 = vsel %vm4879, %v4215, %v4878
    %vm4881 = vcmp.eq.f32.partialorder %v4215, 0.0
    %v4882 = vand.u32 %v4215, 2147483648
    %v4883 = vsel %vm4881, %v4882, %v4880
    %v4884 = vrsqrt.pop %v4216
    %v4885 = vmul.f32 %v4884, %v4216
    %v4886 = vmul.f32 %v4885, %v4884
    %v4887 = vmul.f32 0.5, %v4886
    %v4888 = vsub.f32 1.5, %v4887
    %v4889 = vmul.f32 %v4884, %v4888
    %v4890 = vmul.f32 %v4216, %v4889
    %vm4891 = vcmp.eq.f32.partialorder %v4216, inf
    %v4892 = vsel %vm4891, %v4216, %v4890
    %vm4893 = vcmp.eq.f32.partialorder %v4216, 0.0
    %v4894 = vand.u32 %v4216, 2147483648
    %v4895 = vsel %vm4893, %v4894, %v4892
    %v4896 = vrsqrt.pop %v4217
    %v4897 = vmul.f32 %v4896, %v4217
    %v4898 = vmul.f32 %v4897, %v4896
    %v4899 = vmul.f32 0.5, %v4898
    %v4900 = vsub.f32 1.5, %v4899
    %v4901 = vmul.f32 %v4896, %v4900
    %v4902 = vmul.f32 %v4217, %v4901
    %vm4903 = vcmp.eq.f32.partialorder %v4217, inf
    %v4904 = vsel %vm4903, %v4217, %v4902
    %vm4905 = vcmp.eq.f32.partialorder %v4217, 0.0
    %v4906 = vand.u32 %v4217, 2147483648
    %v4907 = vsel %vm4905, %v4906, %v4904
    %v4908 = vrsqrt.pop %v4218
    %v4909 = vmul.f32 %v4908, %v4218
    %v4910 = vmul.f32 %v4909, %v4908
    %v4911 = vmul.f32 0.5, %v4910
    %v4912 = vsub.f32 1.5, %v4911
    %v4913 = vmul.f32 %v4908, %v4912
    %v4914 = vmul.f32 %v4218, %v4913
    %vm4915 = vcmp.eq.f32.partialorder %v4218, inf
    %v4916 = vsel %vm4915, %v4218, %v4914
    %vm4917 = vcmp.eq.f32.partialorder %v4218, 0.0
    %v4918 = vand.u32 %v4218, 2147483648
    %v4919 = vsel %vm4917, %v4918, %v4916
    %v4920 = vrsqrt.pop %v4219
    %v4921 = vmul.f32 %v4920, %v4219
    %v4922 = vmul.f32 %v4921, %v4920
    %v4923 = vmul.f32 0.5, %v4922
    %v4924 = vsub.f32 1.5, %v4923
    %v4925 = vmul.f32 %v4920, %v4924
    %v4926 = vmul.f32 %v4219, %v4925
    %vm4927 = vcmp.eq.f32.partialorder %v4219, inf
    %v4928 = vsel %vm4927, %v4219, %v4926
    %vm4929 = vcmp.eq.f32.partialorder %v4219, 0.0
    %v4930 = vand.u32 %v4219, 2147483648
    %v4931 = vsel %vm4929, %v4930, %v4928
    %v4932 = vrsqrt.pop %v4220
    %v4933 = vmul.f32 %v4932, %v4220
    %v4934 = vmul.f32 %v4933, %v4932
    %v4935 = vmul.f32 0.5, %v4934
    %v4936 = vsub.f32 1.5, %v4935
    %v4937 = vmul.f32 %v4932, %v4936
    %v4938 = vmul.f32 %v4220, %v4937
    %vm4939 = vcmp.eq.f32.partialorder %v4220, inf
    %v4940 = vsel %vm4939, %v4220, %v4938
    %vm4941 = vcmp.eq.f32.partialorder %v4220, 0.0
    %v4942 = vand.u32 %v4220, 2147483648
    %v4943 = vsel %vm4941, %v4942, %v4940
    %v4944 = vrsqrt.pop %v4221
    %v4945 = vmul.f32 %v4944, %v4221
    %v4946 = vmul.f32 %v4945, %v4944
    %v4947 = vmul.f32 0.5, %v4946
    %v4948 = vsub.f32 1.5, %v4947
    %v4949 = vmul.f32 %v4944, %v4948
    %v4950 = vmul.f32 %v4221, %v4949
    %vm4951 = vcmp.eq.f32.partialorder %v4221, inf
    %v4952 = vsel %vm4951, %v4221, %v4950
    %vm4953 = vcmp.eq.f32.partialorder %v4221, 0.0
    %v4954 = vand.u32 %v4221, 2147483648
    %v4955 = vsel %vm4953, %v4954, %v4952
    %v4956 = vrsqrt.pop %v4222
    %v4957 = vmul.f32 %v4956, %v4222
    %v4958 = vmul.f32 %v4957, %v4956
    %v4959 = vmul.f32 0.5, %v4958
    %v4960 = vsub.f32 1.5, %v4959
    %v4961 = vmul.f32 %v4956, %v4960
    %v4962 = vmul.f32 %v4222, %v4961
    %vm4963 = vcmp.eq.f32.partialorder %v4222, inf
    %v4964 = vsel %vm4963, %v4222, %v4962
    %vm4965 = vcmp.eq.f32.partialorder %v4222, 0.0
    %v4966 = vand.u32 %v4222, 2147483648
    %v4967 = vsel %vm4965, %v4966, %v4964
    %v4968 = vrsqrt.pop %v4223
    %v4969 = vmul.f32 %v4968, %v4223
    %v4970 = vmul.f32 %v4969, %v4968
    %v4971 = vmul.f32 0.5, %v4970
    %v4972 = vsub.f32 1.5, %v4971
    %v4973 = vmul.f32 %v4968, %v4972
    %v4974 = vmul.f32 %v4223, %v4973
    %vm4975 = vcmp.eq.f32.partialorder %v4223, inf
    %v4976 = vsel %vm4975, %v4223, %v4974
    %vm4977 = vcmp.eq.f32.partialorder %v4223, 0.0
    %v4978 = vand.u32 %v4223, 2147483648
    %v4979 = vsel %vm4977, %v4978, %v4976
    %v4980 = vrsqrt.pop %v4224
    %v4981 = vmul.f32 %v4980, %v4224
    %v4982 = vmul.f32 %v4981, %v4980
    %v4983 = vmul.f32 0.5, %v4982
    %v4984 = vsub.f32 1.5, %v4983
    %v4985 = vmul.f32 %v4980, %v4984
    %v4986 = vmul.f32 %v4224, %v4985
    %vm4987 = vcmp.eq.f32.partialorder %v4224, inf
    %v4988 = vsel %vm4987, %v4224, %v4986
    %vm4989 = vcmp.eq.f32.partialorder %v4224, 0.0
    %v4990 = vand.u32 %v4224, 2147483648
    %v4991 = vsel %vm4989, %v4990, %v4988
    %v4992 = vrsqrt.pop %v4225
    %v4993 = vmul.f32 %v4992, %v4225
    %v4994 = vmul.f32 %v4993, %v4992
    %v4995 = vmul.f32 0.5, %v4994
    %v4996 = vsub.f32 1.5, %v4995
    %v4997 = vmul.f32 %v4992, %v4996
    %v4998 = vmul.f32 %v4225, %v4997
    %vm4999 = vcmp.eq.f32.partialorder %v4225, inf
    %v5000 = vsel %vm4999, %v4225, %v4998
    %vm5001 = vcmp.eq.f32.partialorder %v4225, 0.0
    %v5002 = vand.u32 %v4225, 2147483648
    %v5003 = vsel %vm5001, %v5002, %v5000
    %v5004 = vrsqrt.pop %v4226
    %v5005 = vmul.f32 %v5004, %v4226
    %v5006 = vmul.f32 %v5005, %v5004
    %v5007 = vmul.f32 0.5, %v5006
    %v5008 = vsub.f32 1.5, %v5007
    %v5009 = vmul.f32 %v5004, %v5008
    %v5010 = vmul.f32 %v4226, %v5009
    %vm5011 = vcmp.eq.f32.partialorder %v4226, inf
    %v5012 = vsel %vm5011, %v4226, %v5010
    %vm5013 = vcmp.eq.f32.partialorder %v4226, 0.0
    %v5014 = vand.u32 %v4226, 2147483648
    %v5015 = vsel %vm5013, %v5014, %v5012
    %v5016 = vrsqrt.pop %v4227
    %v5017 = vmul.f32 %v5016, %v4227
    %v5018 = vmul.f32 %v5017, %v5016
    %v5019 = vmul.f32 0.5, %v5018
    %v5020 = vsub.f32 1.5, %v5019
    %v5021 = vmul.f32 %v5016, %v5020
    %v5022 = vmul.f32 %v4227, %v5021
    %vm5023 = vcmp.eq.f32.partialorder %v4227, inf
    %v5024 = vsel %vm5023, %v4227, %v5022
    %vm5025 = vcmp.eq.f32.partialorder %v4227, 0.0
    %v5026 = vand.u32 %v4227, 2147483648
    %v5027 = vsel %vm5025, %v5026, %v5024
    %v5028 = vrsqrt.pop %v4228
    %v5029 = vmul.f32 %v5028, %v4228
    %v5030 = vmul.f32 %v5029, %v5028
    %v5031 = vmul.f32 0.5, %v5030
    %v5032 = vsub.f32 1.5, %v5031
    %v5033 = vmul.f32 %v5028, %v5032
    %v5034 = vmul.f32 %v4228, %v5033
    %vm5035 = vcmp.eq.f32.partialorder %v4228, inf
    %v5036 = vsel %vm5035, %v4228, %v5034
    %vm5037 = vcmp.eq.f32.partialorder %v4228, 0.0
    %v5038 = vand.u32 %v4228, 2147483648
    %v5039 = vsel %vm5037, %v5038, %v5036
    %v5040 = vrsqrt.pop %v4229
    %v5041 = vmul.f32 %v5040, %v4229
    %v5042 = vmul.f32 %v5041, %v5040
    %v5043 = vmul.f32 0.5, %v5042
    %v5044 = vsub.f32 1.5, %v5043
    %v5045 = vmul.f32 %v5040, %v5044
    %v5046 = vmul.f32 %v4229, %v5045
    %vm5047 = vcmp.eq.f32.partialorder %v4229, inf
    %v5048 = vsel %vm5047, %v4229, %v5046
    %vm5049 = vcmp.eq.f32.partialorder %v4229, 0.0
    %v5050 = vand.u32 %v4229, 2147483648
    %v5051 = vsel %vm5049, %v5050, %v5048
    %v5052 = vrsqrt.pop %v4230
    %v5053 = vmul.f32 %v5052, %v4230
    %v5054 = vmul.f32 %v5053, %v5052
    %v5055 = vmul.f32 0.5, %v5054
    %v5056 = vsub.f32 1.5, %v5055
    %v5057 = vmul.f32 %v5052, %v5056
    %v5058 = vmul.f32 %v4230, %v5057
    %vm5059 = vcmp.eq.f32.partialorder %v4230, inf
    %v5060 = vsel %vm5059, %v4230, %v5058
    %vm5061 = vcmp.eq.f32.partialorder %v4230, 0.0
    %v5062 = vand.u32 %v4230, 2147483648
    %v5063 = vsel %vm5061, %v5062, %v5060
    %v5064 = vrsqrt.pop %v4231
    %v5065 = vmul.f32 %v5064, %v4231
    %v5066 = vmul.f32 %v5065, %v5064
    %v5067 = vmul.f32 0.5, %v5066
    %v5068 = vsub.f32 1.5, %v5067
    %v5069 = vmul.f32 %v5064, %v5068
    %v5070 = vmul.f32 %v4231, %v5069
    %vm5071 = vcmp.eq.f32.partialorder %v4231, inf
    %v5072 = vsel %vm5071, %v4231, %v5070
    %vm5073 = vcmp.eq.f32.partialorder %v4231, 0.0
    %v5074 = vand.u32 %v4231, 2147483648
    %v5075 = vsel %vm5073, %v5074, %v5072
    %v5076 = vrsqrt.pop %v4232
    %v5077 = vmul.f32 %v5076, %v4232
    %v5078 = vmul.f32 %v5077, %v5076
    %v5079 = vmul.f32 0.5, %v5078
    %v5080 = vsub.f32 1.5, %v5079
    %v5081 = vmul.f32 %v5076, %v5080
    %v5082 = vmul.f32 %v4232, %v5081
    %vm5083 = vcmp.eq.f32.partialorder %v4232, inf
    %v5084 = vsel %vm5083, %v4232, %v5082
    %vm5085 = vcmp.eq.f32.partialorder %v4232, 0.0
    %v5086 = vand.u32 %v4232, 2147483648
    %v5087 = vsel %vm5085, %v5086, %v5084
    %v5088 = vrsqrt.pop %v4233
    %v5089 = vmul.f32 %v5088, %v4233
    %v5090 = vmul.f32 %v5089, %v5088
    %v5091 = vmul.f32 0.5, %v5090
    %v5092 = vsub.f32 1.5, %v5091
    %v5093 = vmul.f32 %v5088, %v5092
    %v5094 = vmul.f32 %v4233, %v5093
    %vm5095 = vcmp.eq.f32.partialorder %v4233, inf
    %v5096 = vsel %vm5095, %v4233, %v5094
    %vm5097 = vcmp.eq.f32.partialorder %v4233, 0.0
    %v5098 = vand.u32 %v4233, 2147483648
    %v5099 = vsel %vm5097, %v5098, %v5096
    %v5100 = vrsqrt.pop %v4234
    %v5101 = vmul.f32 %v5100, %v4234
    %v5102 = vmul.f32 %v5101, %v5100
    %v5103 = vmul.f32 0.5, %v5102
    %v5104 = vsub.f32 1.5, %v5103
    %v5105 = vmul.f32 %v5100, %v5104
    %v5106 = vmul.f32 %v4234, %v5105
    %vm5107 = vcmp.eq.f32.partialorder %v4234, inf
    %v5108 = vsel %vm5107, %v4234, %v5106
    %vm5109 = vcmp.eq.f32.partialorder %v4234, 0.0
    %v5110 = vand.u32 %v4234, 2147483648
    %v5111 = vsel %vm5109, %v5110, %v5108
    %v5112 = vrsqrt.pop %v4235
    %v5113 = vmul.f32 %v5112, %v4235
    %v5114 = vmul.f32 %v5113, %v5112
    %v5115 = vmul.f32 0.5, %v5114
    %v5116 = vsub.f32 1.5, %v5115
    %v5117 = vmul.f32 %v5112, %v5116
    %v5118 = vmul.f32 %v4235, %v5117
    %vm5119 = vcmp.eq.f32.partialorder %v4235, inf
    %v5120 = vsel %vm5119, %v4235, %v5118
    %vm5121 = vcmp.eq.f32.partialorder %v4235, 0.0
    %v5122 = vand.u32 %v4235, 2147483648
    %v5123 = vsel %vm5121, %v5122, %v5120
    %v5124 = vrsqrt.pop %v4236
    %v5125 = vmul.f32 %v5124, %v4236
    %v5126 = vmul.f32 %v5125, %v5124
    %v5127 = vmul.f32 0.5, %v5126
    %v5128 = vsub.f32 1.5, %v5127
    %v5129 = vmul.f32 %v5124, %v5128
    %v5130 = vmul.f32 %v4236, %v5129
    %vm5131 = vcmp.eq.f32.partialorder %v4236, inf
    %v5132 = vsel %vm5131, %v4236, %v5130
    %vm5133 = vcmp.eq.f32.partialorder %v4236, 0.0
    %v5134 = vand.u32 %v4236, 2147483648
    %v5135 = vsel %vm5133, %v5134, %v5132
    %v5136 = vrsqrt.pop %v4237
    %v5137 = vmul.f32 %v5136, %v4237
    %v5138 = vmul.f32 %v5137, %v5136
    %v5139 = vmul.f32 0.5, %v5138
    %v5140 = vsub.f32 1.5, %v5139
    %v5141 = vmul.f32 %v5136, %v5140
    %v5142 = vmul.f32 %v4237, %v5141
    %vm5143 = vcmp.eq.f32.partialorder %v4237, inf
    %v5144 = vsel %vm5143, %v4237, %v5142
    %vm5145 = vcmp.eq.f32.partialorder %v4237, 0.0
    %v5146 = vand.u32 %v4237, 2147483648
    %v5147 = vsel %vm5145, %v5146, %v5144
    %v5148 = vrsqrt.pop %v4238
    %v5149 = vmul.f32 %v5148, %v4238
    %v5150 = vmul.f32 %v5149, %v5148
    %v5151 = vmul.f32 0.5, %v5150
    %v5152 = vsub.f32 1.5, %v5151
    %v5153 = vmul.f32 %v5148, %v5152
    %v5154 = vmul.f32 %v4238, %v5153
    %vm5155 = vcmp.eq.f32.partialorder %v4238, inf
    %v5156 = vsel %vm5155, %v4238, %v5154
    %vm5157 = vcmp.eq.f32.partialorder %v4238, 0.0
    %v5158 = vand.u32 %v4238, 2147483648
    %v5159 = vsel %vm5157, %v5158, %v5156
    %v5160 = vrsqrt.pop %v4239
    %v5161 = vmul.f32 %v5160, %v4239
    %v5162 = vmul.f32 %v5161, %v5160
    %v5163 = vmul.f32 0.5, %v5162
    %v5164 = vsub.f32 1.5, %v5163
    %v5165 = vmul.f32 %v5160, %v5164
    %v5166 = vmul.f32 %v4239, %v5165
    %vm5167 = vcmp.eq.f32.partialorder %v4239, inf
    %v5168 = vsel %vm5167, %v4239, %v5166
    %vm5169 = vcmp.eq.f32.partialorder %v4239, 0.0
    %v5170 = vand.u32 %v4239, 2147483648
    %v5171 = vsel %vm5169, %v5170, %v5168
    %v5172 = vrsqrt.pop %v4240
    %v5173 = vmul.f32 %v5172, %v4240
    %v5174 = vmul.f32 %v5173, %v5172
    %v5175 = vmul.f32 0.5, %v5174
    %v5176 = vsub.f32 1.5, %v5175
    %v5177 = vmul.f32 %v5172, %v5176
    %v5178 = vmul.f32 %v4240, %v5177
    %vm5179 = vcmp.eq.f32.partialorder %v4240, inf
    %v5180 = vsel %vm5179, %v4240, %v5178
    %vm5181 = vcmp.eq.f32.partialorder %v4240, 0.0
    %v5182 = vand.u32 %v4240, 2147483648
    %v5183 = vsel %vm5181, %v5182, %v5180
    %v5184 = vrsqrt.pop %v4241
    %v5185 = vmul.f32 %v5184, %v4241
    %v5186 = vmul.f32 %v5185, %v5184
    %v5187 = vmul.f32 0.5, %v5186
    %v5188 = vsub.f32 1.5, %v5187
    %v5189 = vmul.f32 %v5184, %v5188
    %v5190 = vmul.f32 %v4241, %v5189
    %vm5191 = vcmp.eq.f32.partialorder %v4241, inf
    %v5192 = vsel %vm5191, %v4241, %v5190
    %vm5193 = vcmp.eq.f32.partialorder %v4241, 0.0
    %v5194 = vand.u32 %v4241, 2147483648
    %v5195 = vsel %vm5193, %v5194, %v5192
    %v5196 = vrsqrt.pop %v4242
    %v5197 = vmul.f32 %v5196, %v4242
    %v5198 = vmul.f32 %v5197, %v5196
    %v5199 = vmul.f32 0.5, %v5198
    %v5200 = vsub.f32 1.5, %v5199
    %v5201 = vmul.f32 %v5196, %v5200
    %v5202 = vmul.f32 %v4242, %v5201
    %vm5203 = vcmp.eq.f32.partialorder %v4242, inf
    %v5204 = vsel %vm5203, %v4242, %v5202
    %vm5205 = vcmp.eq.f32.partialorder %v4242, 0.0
    %v5206 = vand.u32 %v4242, 2147483648
    %v5207 = vsel %vm5205, %v5206, %v5204
    %v5208 = vrsqrt.pop %v4243
    %v5209 = vmul.f32 %v5208, %v4243
    %v5210 = vmul.f32 %v5209, %v5208
    %v5211 = vmul.f32 0.5, %v5210
    %v5212 = vsub.f32 1.5, %v5211
    %v5213 = vmul.f32 %v5208, %v5212
    %v5214 = vmul.f32 %v4243, %v5213
    %vm5215 = vcmp.eq.f32.partialorder %v4243, inf
    %v5216 = vsel %vm5215, %v4243, %v5214
    %vm5217 = vcmp.eq.f32.partialorder %v4243, 0.0
    %v5218 = vand.u32 %v4243, 2147483648
    %v5219 = vsel %vm5217, %v5218, %v5216
    %v5220 = vrsqrt.pop %v4244
    %v5221 = vmul.f32 %v5220, %v4244
    %v5222 = vmul.f32 %v5221, %v5220
    %v5223 = vmul.f32 0.5, %v5222
    %v5224 = vsub.f32 1.5, %v5223
    %v5225 = vmul.f32 %v5220, %v5224
    %v5226 = vmul.f32 %v4244, %v5225
    %vm5227 = vcmp.eq.f32.partialorder %v4244, inf
    %v5228 = vsel %vm5227, %v4244, %v5226
    %vm5229 = vcmp.eq.f32.partialorder %v4244, 0.0
    %v5230 = vand.u32 %v4244, 2147483648
    %v5231 = vsel %vm5229, %v5230, %v5228
    %v5232 = vrsqrt.pop %v4245
    %v5233 = vmul.f32 %v5232, %v4245
    %v5234 = vmul.f32 %v5233, %v5232
    %v5235 = vmul.f32 0.5, %v5234
    %v5236 = vsub.f32 1.5, %v5235
    %v5237 = vmul.f32 %v5232, %v5236
    %v5238 = vmul.f32 %v4245, %v5237
    %vm5239 = vcmp.eq.f32.partialorder %v4245, inf
    %v5240 = vsel %vm5239, %v4245, %v5238
    %vm5241 = vcmp.eq.f32.partialorder %v4245, 0.0
    %v5242 = vand.u32 %v4245, 2147483648
    %v5243 = vsel %vm5241, %v5242, %v5240
    %v5244 = vrsqrt.pop %v4246
    %v5245 = vmul.f32 %v5244, %v4246
    %v5246 = vmul.f32 %v5245, %v5244
    %v5247 = vmul.f32 0.5, %v5246
    %v5248 = vsub.f32 1.5, %v5247
    %v5249 = vmul.f32 %v5244, %v5248
    %v5250 = vmul.f32 %v4246, %v5249
    %vm5251 = vcmp.eq.f32.partialorder %v4246, inf
    %v5252 = vsel %vm5251, %v4246, %v5250
    %vm5253 = vcmp.eq.f32.partialorder %v4246, 0.0
    %v5254 = vand.u32 %v4246, 2147483648
    %v5255 = vsel %vm5253, %v5254, %v5252
    %v5256 = vrsqrt.pop %v4247
    %v5257 = vmul.f32 %v5256, %v4247
    %v5258 = vmul.f32 %v5257, %v5256
    %v5259 = vmul.f32 0.5, %v5258
    %v5260 = vsub.f32 1.5, %v5259
    %v5261 = vmul.f32 %v5256, %v5260
    %v5262 = vmul.f32 %v4247, %v5261
    %vm5263 = vcmp.eq.f32.partialorder %v4247, inf
    %v5264 = vsel %vm5263, %v4247, %v5262
    %vm5265 = vcmp.eq.f32.partialorder %v4247, 0.0
    %v5266 = vand.u32 %v4247, 2147483648
    %v5267 = vsel %vm5265, %v5266, %v5264
    %v5268 = vrsqrt.pop %v4248
    %v5269 = vmul.f32 %v5268, %v4248
    %v5270 = vmul.f32 %v5269, %v5268
    %v5271 = vmul.f32 0.5, %v5270
    %v5272 = vsub.f32 1.5, %v5271
    %v5273 = vmul.f32 %v5268, %v5272
    %v5274 = vmul.f32 %v4248, %v5273
    %vm5275 = vcmp.eq.f32.partialorder %v4248, inf
    %v5276 = vsel %vm5275, %v4248, %v5274
    %vm5277 = vcmp.eq.f32.partialorder %v4248, 0.0
    %v5278 = vand.u32 %v4248, 2147483648
    %v5279 = vsel %vm5277, %v5278, %v5276
    %v5280 = vrsqrt.pop %v4249
    %v5281 = vmul.f32 %v5280, %v4249
    %v5282 = vmul.f32 %v5281, %v5280
    %v5283 = vmul.f32 0.5, %v5282
    %v5284 = vsub.f32 1.5, %v5283
    %v5285 = vmul.f32 %v5280, %v5284
    %v5286 = vmul.f32 %v4249, %v5285
    %vm5287 = vcmp.eq.f32.partialorder %v4249, inf
    %v5288 = vsel %vm5287, %v4249, %v5286
    %vm5289 = vcmp.eq.f32.partialorder %v4249, 0.0
    %v5290 = vand.u32 %v4249, 2147483648
    %v5291 = vsel %vm5289, %v5290, %v5288
    %v5292 = vrsqrt.pop %v4250
    %v5293 = vmul.f32 %v5292, %v4250
    %v5294 = vmul.f32 %v5293, %v5292
    %v5295 = vmul.f32 0.5, %v5294
    %v5296 = vsub.f32 1.5, %v5295
    %v5297 = vmul.f32 %v5292, %v5296
    %v5298 = vmul.f32 %v4250, %v5297
    %vm5299 = vcmp.eq.f32.partialorder %v4250, inf
    %v5300 = vsel %vm5299, %v4250, %v5298
    %vm5301 = vcmp.eq.f32.partialorder %v4250, 0.0
    %v5302 = vand.u32 %v4250, 2147483648
    %v5303 = vsel %vm5301, %v5302, %v5300
    %v5304 = vrsqrt.pop %v4251
    %v5305 = vmul.f32 %v5304, %v4251
    %v5306 = vmul.f32 %v5305, %v5304
    %v5307 = vmul.f32 0.5, %v5306
    %v5308 = vsub.f32 1.5, %v5307
    %v5309 = vmul.f32 %v5304, %v5308
    %v5310 = vmul.f32 %v4251, %v5309
    %vm5311 = vcmp.eq.f32.partialorder %v4251, inf
    %v5312 = vsel %vm5311, %v4251, %v5310
    %vm5313 = vcmp.eq.f32.partialorder %v4251, 0.0
    %v5314 = vand.u32 %v4251, 2147483648
    %v5315 = vsel %vm5313, %v5314, %v5312
    %v5316 = vrsqrt.pop %v4252
    %v5317 = vmul.f32 %v5316, %v4252
    %v5318 = vmul.f32 %v5317, %v5316
    %v5319 = vmul.f32 0.5, %v5318
    %v5320 = vsub.f32 1.5, %v5319
    %v5321 = vmul.f32 %v5316, %v5320
    %v5322 = vmul.f32 %v4252, %v5321
    %vm5323 = vcmp.eq.f32.partialorder %v4252, inf
    %v5324 = vsel %vm5323, %v4252, %v5322
    %vm5325 = vcmp.eq.f32.partialorder %v4252, 0.0
    %v5326 = vand.u32 %v4252, 2147483648
    %v5327 = vsel %vm5325, %v5326, %v5324
    %v5328 = vrsqrt.pop %v4253
    %v5329 = vmul.f32 %v5328, %v4253
    %v5330 = vmul.f32 %v5329, %v5328
    %v5331 = vmul.f32 0.5, %v5330
    %v5332 = vsub.f32 1.5, %v5331
    %v5333 = vmul.f32 %v5328, %v5332
    %v5334 = vmul.f32 %v4253, %v5333
    %vm5335 = vcmp.eq.f32.partialorder %v4253, inf
    %v5336 = vsel %vm5335, %v4253, %v5334
    %vm5337 = vcmp.eq.f32.partialorder %v4253, 0.0
    %v5338 = vand.u32 %v4253, 2147483648
    %v5339 = vsel %vm5337, %v5338, %v5336
    %v5340 = vrsqrt.pop %v4254
    %v5341 = vmul.f32 %v5340, %v4254
    %v5342 = vmul.f32 %v5341, %v5340
    %v5343 = vmul.f32 0.5, %v5342
    %v5344 = vsub.f32 1.5, %v5343
    %v5345 = vmul.f32 %v5340, %v5344
    %v5346 = vmul.f32 %v4254, %v5345
    %vm5347 = vcmp.eq.f32.partialorder %v4254, inf
    %v5348 = vsel %vm5347, %v4254, %v5346
    %vm5349 = vcmp.eq.f32.partialorder %v4254, 0.0
    %v5350 = vand.u32 %v4254, 2147483648
    %v5351 = vsel %vm5349, %v5350, %v5348
    %v5352 = vrsqrt.pop %v4255
    %v5353 = vmul.f32 %v5352, %v4255
    %v5354 = vmul.f32 %v5353, %v5352
    %v5355 = vmul.f32 0.5, %v5354
    %v5356 = vsub.f32 1.5, %v5355
    %v5357 = vmul.f32 %v5352, %v5356
    %v5358 = vmul.f32 %v4255, %v5357
    %vm5359 = vcmp.eq.f32.partialorder %v4255, inf
    %v5360 = vsel %vm5359, %v4255, %v5358
    %vm5361 = vcmp.eq.f32.partialorder %v4255, 0.0
    %v5362 = vand.u32 %v4255, 2147483648
    %v5363 = vsel %vm5361, %v5362, %v5360
    %v5364 = vrsqrt.pop %v4256
    %v5365 = vmul.f32 %v5364, %v4256
    %v5366 = vmul.f32 %v5365, %v5364
    %v5367 = vmul.f32 0.5, %v5366
    %v5368 = vsub.f32 1.5, %v5367
    %v5369 = vmul.f32 %v5364, %v5368
    %v5370 = vmul.f32 %v4256, %v5369
    %vm5371 = vcmp.eq.f32.partialorder %v4256, inf
    %v5372 = vsel %vm5371, %v4256, %v5370
    %vm5373 = vcmp.eq.f32.partialorder %v4256, 0.0
    %v5374 = vand.u32 %v4256, 2147483648
    %v5375 = vsel %vm5373, %v5374, %v5372
    %v5376 = vrsqrt.pop %v4257
    %v5377 = vmul.f32 %v5376, %v4257
    %v5378 = vmul.f32 %v5377, %v5376
    %v5379 = vmul.f32 0.5, %v5378
    %v5380 = vsub.f32 1.5, %v5379
    %v5381 = vmul.f32 %v5376, %v5380
    %v5382 = vmul.f32 %v4257, %v5381
    %vm5383 = vcmp.eq.f32.partialorder %v4257, inf
    %v5384 = vsel %vm5383, %v4257, %v5382
    %vm5385 = vcmp.eq.f32.partialorder %v4257, 0.0
    %v5386 = vand.u32 %v4257, 2147483648
    %v5387 = vsel %vm5385, %v5386, %v5384
    %v5388 = vrsqrt.pop %v4258
    %v5389 = vmul.f32 %v5388, %v4258
    %v5390 = vmul.f32 %v5389, %v5388
    %v5391 = vmul.f32 0.5, %v5390
    %v5392 = vsub.f32 1.5, %v5391
    %v5393 = vmul.f32 %v5388, %v5392
    %v5394 = vmul.f32 %v4258, %v5393
    %vm5395 = vcmp.eq.f32.partialorder %v4258, inf
    %v5396 = vsel %vm5395, %v4258, %v5394
    %vm5397 = vcmp.eq.f32.partialorder %v4258, 0.0
    %v5398 = vand.u32 %v4258, 2147483648
    %v5399 = vsel %vm5397, %v5398, %v5396
    %v5400 = vrsqrt.pop %v4259
    %v5401 = vmul.f32 %v5400, %v4259
    %v5402 = vmul.f32 %v5401, %v5400
    %v5403 = vmul.f32 0.5, %v5402
    %v5404 = vsub.f32 1.5, %v5403
    %v5405 = vmul.f32 %v5400, %v5404
    %v5406 = vmul.f32 %v4259, %v5405
    %vm5407 = vcmp.eq.f32.partialorder %v4259, inf
    %v5408 = vsel %vm5407, %v4259, %v5406
    %vm5409 = vcmp.eq.f32.partialorder %v4259, 0.0
    %v5410 = vand.u32 %v4259, 2147483648
    %v5411 = vsel %vm5409, %v5410, %v5408
    %5412 = vst [vmem:[#allocation5] sm:$0xff] %v4271
    %5413 = vst [vmem:[#allocation5 + $0x8] sm:$0xff] %v4283
    %5414 = vst [vmem:[#allocation5 + $0x10] sm:$0xff] %v4295
    %5415 = vst [vmem:[#allocation5 + $0x18] sm:$0xff] %v4307
    %5416 = vst [vmem:[#allocation5 + $0x20] sm:$0xff] %v4319
    %5417 = vst [vmem:[#allocation5 + $0x28] sm:$0xff] %v4331
    %5418 = vst [vmem:[#allocation5 + $0x30] sm:$0xff] %v4343
    %5419 = vst [vmem:[#allocation5 + $0x38] sm:$0xff] %v4355
    %5420 = vst [vmem:[#allocation5 + $0x40] sm:$0xff] %v4367
    %5421 = vst [vmem:[#allocation5 + $0x48] sm:$0xff] %v4379
    %5422 = vst [vmem:[#allocation5 + $0x50] sm:$0xff] %v4391
    %5423 = vst [vmem:[#allocation5 + $0x58] sm:$0xff] %v4403
    %5424 = vst [vmem:[#allocation5 + $0x60] sm:$0xff] %v4415
    %5425 = vst [vmem:[#allocation5 + $0x68] sm:$0xff] %v4427
    %5426 = vst [vmem:[#allocation5 + $0x70] sm:$0xff] %v4439
    %5427 = vst [vmem:[#allocation5 + $0x78] sm:$0xff] %v4451
    %5428 = vst [vmem:[#allocation5 + $0x80] sm:$0xff] %v4463
    %5429 = vst [vmem:[#allocation5 + $0x88] sm:$0xff] %v4475
    %5430 = vst [vmem:[#allocation5 + $0x90] sm:$0xff] %v4487
    %5431 = vst [vmem:[#allocation5 + $0x98] sm:$0xff] %v4499
    %5432 = vst [vmem:[#allocation5 + $0xa0] sm:$0xff] %v4511
    %5433 = vst [vmem:[#allocation5 + $0xa8] sm:$0xff] %v4523
    %5434 = vst [vmem:[#allocation5 + $0xb0] sm:$0xff] %v4535
    %5435 = vst [vmem:[#allocation5 + $0xb8] sm:$0xff] %v4547
    %5436 = vst [vmem:[#allocation5 + $0xc0] sm:$0xff] %v4559
    %5437 = vst [vmem:[#allocation5 + $0xc8] sm:$0xff] %v4571
    %5438 = vst [vmem:[#allocation5 + $0xd0] sm:$0xff] %v4583
    %5439 = vst [vmem:[#allocation5 + $0xd8] sm:$0xff] %v4595
    %5440 = vst [vmem:[#allocation5 + $0xe0] sm:$0xff] %v4607
    %5441 = vst [vmem:[#allocation5 + $0xe8] sm:$0xff] %v4619
    %5442 = vst [vmem:[#allocation5 + $0xf0] sm:$0xff] %v4631
    %5443 = vst [vmem:[#allocation5 + $0xf8] sm:$0xff] %v4643
    %5444 = vst [vmem:[#allocation5 + $0x100] sm:$0xff] %v4655
    %5445 = vst [vmem:[#allocation5 + $0x108] sm:$0xff] %v4667
    %5446 = vst [vmem:[#allocation5 + $0x110] sm:$0xff] %v4679
    %5447 = vst [vmem:[#allocation5 + $0x118] sm:$0xff] %v4691
    %5448 = vst [vmem:[#allocation5 + $0x120] sm:$0xff] %v4703
    %5449 = vst [vmem:[#allocation5 + $0x128] sm:$0xff] %v4715
    %5450 = vst [vmem:[#allocation5 + $0x130] sm:$0xff] %v4727
    %5451 = vst [vmem:[#allocation5 + $0x138] sm:$0xff] %v4739
    %5452 = vst [vmem:[#allocation5 + $0x140] sm:$0xff] %v4751
    %5453 = vst [vmem:[#allocation5 + $0x148] sm:$0xff] %v4763
    %5454 = vst [vmem:[#allocation5 + $0x150] sm:$0xff] %v4775
    %5455 = vst [vmem:[#allocation5 + $0x158] sm:$0xff] %v4787
    %5456 = vst [vmem:[#allocation5 + $0x160] sm:$0xff] %v4799
    %5457 = vst [vmem:[#allocation5 + $0x168] sm:$0xff] %v4811
    %5458 = vst [vmem:[#allocation5 + $0x170] sm:$0xff] %v4823
    %5459 = vst [vmem:[#allocation5 + $0x178] sm:$0xff] %v4835
    %5460 = vst [vmem:[#allocation5 + $0x180] sm:$0xff] %v4847
    %5461 = vst [vmem:[#allocation5 + $0x188] sm:$0xff] %v4859
    %5462 = vst [vmem:[#allocation5 + $0x190] sm:$0xff] %v4871
    %5463 = vst [vmem:[#allocation5 + $0x198] sm:$0xff] %v4883
    %5464 = vst [vmem:[#allocation5 + $0x1a0] sm:$0xff] %v4895
    %5465 = vst [vmem:[#allocation5 + $0x1a8] sm:$0xff] %v4907
    %5466 = vst [vmem:[#allocation5 + $0x1b0] sm:$0xff] %v4919
    %5467 = vst [vmem:[#allocation5 + $0x1b8] sm:$0xff] %v4931
    %5468 = vst [vmem:[#allocation5 + $0x1c0] sm:$0xff] %v4943
    %5469 = vst [vmem:[#allocation5 + $0x1c8] sm:$0xff] %v4955
    %5470 = vst [vmem:[#allocation5 + $0x1d0] sm:$0xff] %v4967
    %5471 = vst [vmem:[#allocation5 + $0x1d8] sm:$0xff] %v4979
    %5472 = vst [vmem:[#allocation5 + $0x1e0] sm:$0xff] %v4991
    %5473 = vst [vmem:[#allocation5 + $0x1e8] sm:$0xff] %v5003
    %5474 = vst [vmem:[#allocation5 + $0x1f0] sm:$0xff] %v5015
    %5475 = vst [vmem:[#allocation5 + $0x1f8] sm:$0xff] %v5027
    %5476 = vst [vmem:[#allocation5 + $0x200] sm:$0xff] %v5039
    %5477 = vst [vmem:[#allocation5 + $0x208] sm:$0xff] %v5051
    %5478 = vst [vmem:[#allocation5 + $0x210] sm:$0xff] %v5063
    %5479 = vst [vmem:[#allocation5 + $0x218] sm:$0xff] %v5075
    %5480 = vst [vmem:[#allocation5 + $0x220] sm:$0xff] %v5087
    %5481 = vst [vmem:[#allocation5 + $0x228] sm:$0xff] %v5099
    %5482 = vst [vmem:[#allocation5 + $0x230] sm:$0xff] %v5111
    %5483 = vst [vmem:[#allocation5 + $0x238] sm:$0xff] %v5123
    %5484 = vst [vmem:[#allocation5 + $0x240] sm:$0xff] %v5135
    %5485 = vst [vmem:[#allocation5 + $0x248] sm:$0xff] %v5147
    %5486 = vst [vmem:[#allocation5 + $0x250] sm:$0xff] %v5159
    %5487 = vst [vmem:[#allocation5 + $0x258] sm:$0xff] %v5171
    %5488 = vst [vmem:[#allocation5 + $0x260] sm:$0xff] %v5183
    %5489 = vst [vmem:[#allocation5 + $0x268] sm:$0xff] %v5195
    %5490 = vst [vmem:[#allocation5 + $0x270] sm:$0xff] %v5207
    %5491 = vst [vmem:[#allocation5 + $0x278] sm:$0xff] %v5219
    %5492 = vst [vmem:[#allocation5 + $0x280] sm:$0xff] %v5231
    %5493 = vst [vmem:[#allocation5 + $0x288] sm:$0xff] %v5243
    %5494 = vst [vmem:[#allocation5 + $0x290] sm:$0xff] %v5255
    %5495 = vst [vmem:[#allocation5 + $0x298] sm:$0xff] %v5267
    %5496 = vst [vmem:[#allocation5 + $0x2a0] sm:$0xff] %v5279
    %5497 = vst [vmem:[#allocation5 + $0x2a8] sm:$0xff] %v5291
    %5498 = vst [vmem:[#allocation5 + $0x2b0] sm:$0xff] %v5303
    %5499 = vst [vmem:[#allocation5 + $0x2b8] sm:$0xff] %v5315
    %5500 = vst [vmem:[#allocation5 + $0x2c0] sm:$0xff] %v5327
    %5501 = vst [vmem:[#allocation5 + $0x2c8] sm:$0xff] %v5339
    %5502 = vst [vmem:[#allocation5 + $0x2d0] sm:$0xff] %v5351
    %5503 = vst [vmem:[#allocation5 + $0x2d8] sm:$0xff] %v5363
    %5504 = vst [vmem:[#allocation5 + $0x2e0] sm:$0xff] %v5375
    %5505 = vst [vmem:[#allocation5 + $0x2e8] sm:$0xff] %v5387
    %5506 = vst [vmem:[#allocation5 + $0x2f0] sm:$0xff] %v5399
    %5507 = vst [vmem:[#allocation5 + $0x2f8] sm:$0xff] %v5411
    // Predicated region
    $region10: #{tpu_custom_call.1} parent=1 // pred_check
      _
    $region11: #{tpu_custom_call.1} parent=1 // pred_check_branch
      %5509 = sbr.rel (0) target = $region13
    $region12: #{tpu_custom_call.1} parent=1 // pred_region
      %5511 = vsyncadd [#allocation4], 0
      %s5512 = sshll.u32 [#allocation5], 4
      %s5513 = int_to_ptr.vmem [resolvable:$true] %s5512
      %s5514 = sshll.u32 %s1, 4
      %s5515 = int_to_ptr.hbm [resolvable:$true] %s5514
      %5520 = dma.vmem_to_hbm [thread:$0]  %s5513, 12288, %s5515, [#allocation4], 128, 128, 8
    $region13: #{tpu_custom_call.1} parent=1 // pred_fallthru
      _
    // Predicated region
    $region14: #{tpu_custom_call.1} parent=1 // pred_check
      _
    $region15: #{tpu_custom_call.1} parent=1 // pred_check_branch
      %5522 = sbr.rel (0) target = $region17
    $region16: #{tpu_custom_call.1} parent=1 // pred_region
      %5524 = dma.done [#allocation4], 12288
    $region17: #{tpu_custom_call.1} parent=1 // pred_fallthru
      _
    %5525 = vsyncpa [#allocation3], 1
    %5526 = vsyncpa [#allocation4], 1

</llo_original>
